<compile_context>
chip_gen: v5e
topology: v5e:2x2
jax: 0.10.0
libtpu: 0.0.40
codegen_flags: <defaults>
</compile_context>

<pallas_src>
import jax
import jax.numpy as jnp
from jax.experimental import pallas as pl
from jax.experimental.pallas import tpu as pltpu

# ---- config (matches nn.TransformerEncoderLayer defaults) -------------------
D_MODEL = 128        # condition_dim
N_HEAD = 4           # nhead (seq_len==1 so the head split is algebraically inert)
D_FF = 2048          # dim_feedforward default
N_LAYERS = 2
LN_EPS = 1e-5        # layer_norm_eps default


def _layernorm(x, gamma, beta):
    mu = jnp.mean(x, axis=-1, keepdims=True)
    var = jnp.mean((x - mu) ** 2, axis=-1, keepdims=True)
    return (x - mu) * jax.lax.rsqrt(var + LN_EPS) * gamma + beta


def encoder_kernel(x_ref, wlin_ref, blin_ref,
                   wv_ref, bv_ref, wout_ref, bout_ref,
                   g1_ref, be1_ref, w1_ref, b1_ref, w2_ref, b2_ref,
                   g2_ref, be2_ref, o_ref):
    bf16 = jnp.bfloat16

    # input linear: (BM, C*H*W) @ (C*H*W, d) + b   (bf16 weights, f32 accumulate)
    h = jnp.dot(x_ref[...].astype(bf16), wlin_ref[...],
                preferred_element_type=jnp.float32) + blin_ref[...]

    # two post-norm encoder layers (unrolled; weights stacked on leading axis)
    for l in range(N_LAYERS):
        # ---- self-attention, seq_len == 1 => attn output == out_proj(V) -----
        v = jnp.dot(h.astype(bf16), wv_ref[l],
                    preferred_element_type=jnp.float32) + bv_ref[l]
        attn = jnp.dot(v.astype(bf16), wout_ref[l],
                       preferred_element_type=jnp.float32) + bout_ref[l]
        # residual + LayerNorm (norm_first=False; dropout = identity in eval)
        h = _layernorm(h + attn, g1_ref[l], be1_ref[l])

        # ---- feed-forward: Linear -> ReLU -> Linear --------------------------
        ff = jnp.dot(h.astype(bf16), w1_ref[l],
                     preferred_element_type=jnp.float32) + b1_ref[l]
        ff = jnp.maximum(ff, 0.0).astype(bf16)   # keep (BM, 2048) in bf16
        ff = jnp.dot(ff, w2_ref[l],
                     preferred_element_type=jnp.float32) + b2_ref[l]
        h = _layernorm(h + ff, g2_ref[l], be2_ref[l])

    o_ref[...] = h


# -----------------------------------------------------------------------------
# Parameter handling.
#
# To map real PyTorch weights: nn.Linear.weight is (out, in) -> pass weight.T;
# MultiheadAttention.in_proj_weight is (3d, d) -> w_v = in_proj_weight[2d:3d].T,
# b_v = in_proj_bias[2d:3d]. Only the V block is ever used (seq_len == 1).
# -----------------------------------------------------------------------------
def prepare_params(full):
    d = D_MODEL
    bf = lambda a: a.astype(jnp.bfloat16)
    return dict(
        w_lin=bf(full["w_lin"]), b_lin=full["b_lin"],
        w_v=bf(full["w_in"][:, :, 2 * d:3 * d]),
        b_v=full["b_in"][:, :, 2 * d:3 * d],
        w_out=bf(full["w_out"]), b_out=full["b_out"],
        g1=full["g1"], be1=full["be1"],
        w1=bf(full["w1"]), b1=full["b1"],
        w2=bf(full["w2"]), b2=full["b2"],
        g2=full["g2"], be2=full["be2"],
    )


def init_params(key, d_in):
    ks = jax.random.split(key, 10)

    def w(k, shape, scale=0.02):
        return (scale * jax.random.normal(k, shape)).astype(jnp.float32)

    full = dict(
        w_lin=w(ks[0], (d_in, D_MODEL)),
        b_lin=w(ks[1], (1, D_MODEL)),
        w_in=w(ks[2], (N_LAYERS, D_MODEL, 3 * D_MODEL)),
        b_in=w(ks[3], (N_LAYERS, 1, 3 * D_MODEL)),
        w_out=w(ks[4], (N_LAYERS, D_MODEL, D_MODEL)),
        b_out=w(ks[5], (N_LAYERS, 1, D_MODEL)),
        g1=jnp.ones((N_LAYERS, 1, D_MODEL), jnp.float32),
        be1=jnp.zeros((N_LAYERS, 1, D_MODEL), jnp.float32),
        w1=w(ks[6], (N_LAYERS, D_MODEL, D_FF)),
        b1=w(ks[7], (N_LAYERS, 1, D_FF)),
        w2=w(ks[8], (N_LAYERS, D_FF, D_MODEL)),
        b2=w(ks[9], (N_LAYERS, 1, D_MODEL)),
        g2=jnp.ones((N_LAYERS, 1, D_MODEL), jnp.float32),
        be2=jnp.zeros((N_LAYERS, 1, D_MODEL), jnp.float32),
    )
    return prepare_params(full)


def _round_up(x, m):
    return (x + m - 1) // m * m


@jax.jit
def transformer_condition_encoder(x, params):
    B = x.shape[0]
    x_flat = x.reshape(B, -1).astype(jnp.float32)   # == torch.nn.Flatten on NCHW
    d_in = x_flat.shape[1]

    # batch tile: amortize the (bf16) weight fetch over as many rows as possible
    BM = 256 if B >= 256 else _round_up(B, 8)
    B_pad = _round_up(B, BM)
    if B_pad != B:
        x_flat = jnp.pad(x_flat, ((0, B_pad - B), (0, 0)))

    grid = (B_pad // BM,)
    const2 = lambda i: (0, 0)
    const3 = lambda i: (0, 0, 0)

    in_specs = [
        pl.BlockSpec((BM, d_in), lambda i: (i, 0)),            # x (batch-tiled)
        pl.BlockSpec((d_in, D_MODEL), const2),                 # w_lin (bf16)
        pl.BlockSpec((1, D_MODEL), const2),                    # b_lin
        pl.BlockSpec((N_LAYERS, D_MODEL, D_MODEL), const3),    # w_v   (bf16)
        pl.BlockSpec((N_LAYERS, 1, D_MODEL), const3),          # b_v
        pl.BlockSpec((N_LAYERS, D_MODEL, D_MODEL), const3),    # w_out (bf16)
        pl.BlockSpec((N_LAYERS, 1, D_MODEL), const3),          # b_out
        pl.BlockSpec((N_LAYERS, 1, D_MODEL), const3),          # g1
        pl.BlockSpec((N_LAYERS, 1, D_MODEL), const3),          # be1
        pl.BlockSpec((N_LAYERS, D_MODEL, D_FF), const3),       # w1    (bf16)
        pl.BlockSpec((N_LAYERS, 1, D_FF), const3),             # b1
        pl.BlockSpec((N_LAYERS, D_FF, D_MODEL), const3),       # w2    (bf16)
        pl.BlockSpec((N_LAYERS, 1, D_MODEL), const3),          # b2
        pl.BlockSpec((N_LAYERS, 1, D_MODEL), const3),          # g2
        pl.BlockSpec((N_LAYERS, 1, D_MODEL), const3),          # be2
    ]
    out_specs = pl.BlockSpec((BM, D_MODEL), lambda i: (i, 0))

    out = pl.pallas_call(
        encoder_kernel,
        out_shape=jax.ShapeDtypeStruct((B_pad, D_MODEL), jnp.float32),
        grid_spec=pltpu.PrefetchScalarGridSpec(
            num_scalar_prefetch=0,
            grid=grid,
            in_specs=in_specs,
            out_specs=out_specs,
        ),
        compiler_params=pltpu.CompilerParams(
            dimension_semantics=("parallel",)),
    )(x_flat,
      params["w_lin"], params["b_lin"],
      params["w_v"], params["b_v"], params["w_out"], params["b_out"],
      params["g1"], params["be1"],
      params["w1"], params["b1"], params["w2"], params["b2"],
      params["g2"], params["be2"])
    return out[:B]


def reference(x, params):
    """Pure-JAX f32 reference (same bf16 weights upcast to f32)."""
    B = x.shape[0]
    f32 = lambda a: a.astype(jnp.float32)
    h = x.reshape(B, -1).astype(jnp.float32)
    h = h @ f32(params["w_lin"]) + params["b_lin"]
    for l in range(N_LAYERS):
        v = h @ f32(params["w_v"][l]) + params["b_v"][l]
        attn = v @ f32(params["w_out"][l]) + params["b_out"][l]
        h = _layernorm(h + attn, params["g1"][l], params["be1"][l])
        ff = jnp.maximum(h @ f32(params["w1"][l]) + params["b1"][l], 0.0)
        ff = ff @ f32(params["w2"][l]) + params["b2"][l]
        h = _layernorm(h + ff, params["g2"][l], params["be2"][l])
    return h


if __name__ == "__main__":
    key = jax.random.PRNGKey(0)
    k_x, k_p = jax.random.split(key)

    B, C, H, W = 8, 4, 16, 16          # img_shape = (4, 16, 16), batch = 8
    x = jax.random.normal(k_x, (B, C, H, W), dtype=jnp.float32)
    params = init_params(k_p, C * H * W)

    out = transformer_condition_encoder(x, params)
    jax.block_until_ready(out)

    assert out.shape == (B, D_MODEL) and out.dtype == jnp.float32
    assert bool(jnp.all(jnp.isfinite(out)))

    ref = reference(x, params)
    assert bool(jnp.allclose(out, ref, rtol=0.1, atol=0.1))
    print("KERNEL_OK")
</pallas_src>

<mosaic_0001>
module attributes {stable_mosaic.version = 11 : i64} {
  func.func @encoder_kernel(%arg0: i32, %arg1: memref<8x1024xf32, #tpu.memory_space<vmem>>, %arg2: memref<1024x128xbf16, #tpu.memory_space<vmem>>, %arg3: memref<1x128xf32, #tpu.memory_space<vmem>>, %arg4: memref<2x128x128xbf16, #tpu.memory_space<vmem>>, %arg5: memref<2x1x128xf32, #tpu.memory_space<vmem>>, %arg6: memref<2x128x128xbf16, #tpu.memory_space<vmem>>, %arg7: memref<2x1x128xf32, #tpu.memory_space<vmem>>, %arg8: memref<2x1x128xf32, #tpu.memory_space<vmem>>, %arg9: memref<2x1x128xf32, #tpu.memory_space<vmem>>, %arg10: memref<2x128x2048xbf16, #tpu.memory_space<vmem>>, %arg11: memref<2x1x2048xf32, #tpu.memory_space<vmem>>, %arg12: memref<2x2048x128xbf16, #tpu.memory_space<vmem>>, %arg13: memref<2x1x128xf32, #tpu.memory_space<vmem>>, %arg14: memref<2x1x128xf32, #tpu.memory_space<vmem>>, %arg15: memref<2x1x128xf32, #tpu.memory_space<vmem>>, %arg16: memref<8x128xf32, #tpu.memory_space<vmem>>) attributes {dimension_semantics = [#tpu.dimension_semantics<parallel>], iteration_bounds = array<i64: 1>, scalar_prefetch = 0 : i64, scratch_operands = 0 : i64, tpu.core_type = #tpu.core_type<tc>, window_params = [{transform_indices = @transform_0, window_bounds = array<i64: 8, 1024>}, {pipeline_mode = #tpu.pipeline_mode<synchronous>, transform_indices = @transform_1, window_bounds = array<i64: 1024, 128>}, {pipeline_mode = #tpu.pipeline_mode<synchronous>, transform_indices = @transform_2, window_bounds = array<i64: 1, 128>}, {pipeline_mode = #tpu.pipeline_mode<synchronous>, transform_indices = @transform_3, window_bounds = array<i64: 2, 128, 128>}, {pipeline_mode = #tpu.pipeline_mode<synchronous>, transform_indices = @transform_4, window_bounds = array<i64: 2, 1, 128>}, {pipeline_mode = #tpu.pipeline_mode<synchronous>, transform_indices = @transform_5, window_bounds = array<i64: 2, 128, 128>}, {pipeline_mode = #tpu.pipeline_mode<synchronous>, transform_indices = @transform_6, window_bounds = array<i64: 2, 1, 128>}, {pipeline_mode = #tpu.pipeline_mode<synchronous>, transform_indices = @transform_7, window_bounds = array<i64: 2, 1, 128>}, {pipeline_mode = #tpu.pipeline_mode<synchronous>, transform_indices = @transform_8, window_bounds = array<i64: 2, 1, 128>}, {pipeline_mode = #tpu.pipeline_mode<synchronous>, transform_indices = @transform_9, window_bounds = array<i64: 2, 128, 2048>}, {pipeline_mode = #tpu.pipeline_mode<synchronous>, transform_indices = @transform_10, window_bounds = array<i64: 2, 1, 2048>}, {pipeline_mode = #tpu.pipeline_mode<synchronous>, transform_indices = @transform_11, window_bounds = array<i64: 2, 2048, 128>}, {pipeline_mode = #tpu.pipeline_mode<synchronous>, transform_indices = @transform_12, window_bounds = array<i64: 2, 1, 128>}, {pipeline_mode = #tpu.pipeline_mode<synchronous>, transform_indices = @transform_13, window_bounds = array<i64: 2, 1, 128>}, {pipeline_mode = #tpu.pipeline_mode<synchronous>, transform_indices = @transform_14, window_bounds = array<i64: 2, 1, 128>}, {transform_indices = @transform_15, window_bounds = array<i64: 8, 128>}]} {
    %c0 = arith.constant 0 : index
    %c0_0 = arith.constant 0 : index
    %0 = vector.load %arg1[%c0, %c0_0] : memref<8x1024xf32, #tpu.memory_space<vmem>>, vector<8x1024xf32>
    %1 = arith.truncf %0 : vector<8x1024xf32> to vector<8x1024xbf16>
    %c0_1 = arith.constant 0 : index
    %c0_2 = arith.constant 0 : index
    %2 = vector.load %arg2[%c0_1, %c0_2] : memref<1024x128xbf16, #tpu.memory_space<vmem>>, vector<1024x128xbf16>
    %cst = arith.constant dense<0.000000e+00> : vector<8x128xf32>
    %3 = tpu.matmul %1, %2, %cst {dimension_numbers = #tpu.dot_dimension_numbers<[1], [0], [0], [1], [0, 0, 1, 1], [], []>} : vector<8x1024xbf16>, vector<1024x128xbf16>, vector<8x128xf32> -> vector<8x128xf32>
    %c0_3 = arith.constant 0 : index
    %c0_4 = arith.constant 0 : index
    %4 = vector.load %arg3[%c0_3, %c0_4] : memref<1x128xf32, #tpu.memory_space<vmem>>, vector<1x128xf32>
    %5 = vector.broadcast %4 : vector<1x128xf32> to vector<8x128xf32>
    %6 = arith.addf %3, %5 : vector<8x128xf32>
    %7 = arith.truncf %6 : vector<8x128xf32> to vector<8x128xbf16>
    %c0_5 = arith.constant 0 : index
    %c0_6 = arith.constant 0 : index
    %c0_7 = arith.constant 0 : index
    %8 = vector.load %arg4[%c0_5, %c0_6, %c0_7] : memref<2x128x128xbf16, #tpu.memory_space<vmem>>, vector<1x128x128xbf16>
    %9 = vector.shape_cast %8 : vector<1x128x128xbf16> to vector<128x128xbf16>
    %cst_8 = arith.constant dense<0.000000e+00> : vector<8x128xf32>
    %10 = tpu.matmul %7, %9, %cst_8 {dimension_numbers = #tpu.dot_dimension_numbers<[1], [0], [0], [1], [0, 0, 1, 1], [], []>} : vector<8x128xbf16>, vector<128x128xbf16>, vector<8x128xf32> -> vector<8x128xf32>
    %c0_9 = arith.constant 0 : index
    %c0_10 = arith.constant 0 : index
    %c0_11 = arith.constant 0 : index
    %11 = vector.load %arg5[%c0_9, %c0_10, %c0_11] : memref<2x1x128xf32, #tpu.memory_space<vmem>>, vector<1x1x128xf32>
    %12 = vector.shape_cast %11 : vector<1x1x128xf32> to vector<1x128xf32>
    %13 = vector.broadcast %12 : vector<1x128xf32> to vector<8x128xf32>
    %14 = arith.addf %10, %13 : vector<8x128xf32>
    %15 = arith.truncf %14 : vector<8x128xf32> to vector<8x128xbf16>
    %c0_12 = arith.constant 0 : index
    %c0_13 = arith.constant 0 : index
    %c0_14 = arith.constant 0 : index
    %16 = vector.load %arg6[%c0_12, %c0_13, %c0_14] : memref<2x128x128xbf16, #tpu.memory_space<vmem>>, vector<1x128x128xbf16>
    %17 = vector.shape_cast %16 : vector<1x128x128xbf16> to vector<128x128xbf16>
    %cst_15 = arith.constant dense<0.000000e+00> : vector<8x128xf32>
    %18 = tpu.matmul %15, %17, %cst_15 {dimension_numbers = #tpu.dot_dimension_numbers<[1], [0], [0], [1], [0, 0, 1, 1], [], []>} : vector<8x128xbf16>, vector<128x128xbf16>, vector<8x128xf32> -> vector<8x128xf32>
    %c0_16 = arith.constant 0 : index
    %c0_17 = arith.constant 0 : index
    %c0_18 = arith.constant 0 : index
    %19 = vector.load %arg7[%c0_16, %c0_17, %c0_18] : memref<2x1x128xf32, #tpu.memory_space<vmem>>, vector<1x1x128xf32>
    %20 = vector.shape_cast %19 : vector<1x1x128xf32> to vector<1x128xf32>
    %21 = vector.broadcast %20 : vector<1x128xf32> to vector<8x128xf32>
    %22 = arith.addf %18, %21 : vector<8x128xf32>
    %23 = arith.addf %6, %22 : vector<8x128xf32>
    %c0_19 = arith.constant 0 : index
    %c0_20 = arith.constant 0 : index
    %c0_21 = arith.constant 0 : index
    %24 = vector.load %arg8[%c0_19, %c0_20, %c0_21] : memref<2x1x128xf32, #tpu.memory_space<vmem>>, vector<1x1x128xf32>
    %25 = vector.shape_cast %24 : vector<1x1x128xf32> to vector<1x128xf32>
    %c0_22 = arith.constant 0 : index
    %c0_23 = arith.constant 0 : index
    %c0_24 = arith.constant 0 : index
    %26 = vector.load %arg9[%c0_22, %c0_23, %c0_24] : memref<2x1x128xf32, #tpu.memory_space<vmem>>, vector<1x1x128xf32>
    %27 = vector.shape_cast %26 : vector<1x1x128xf32> to vector<1x128xf32>
    %cst_25 = arith.constant dense<0.000000e+00> : vector<8xf32>
    %28 = vector.multi_reduction <add>, %23, %cst_25 [1] : vector<8x128xf32> to vector<8xf32>
    %29 = vector.shape_cast %28 : vector<8xf32> to vector<8x1xf32>
    %cst_26 = arith.constant 1.280000e+02 : f32
    %30 = vector.broadcast %cst_26 : f32 to vector<8x1xf32>
    %31 = arith.divf %29, %30 : vector<8x1xf32>
    %32 = vector.broadcast %31 : vector<8x1xf32> to vector<8x128xf32>
    %33 = arith.subf %23, %32 : vector<8x128xf32>
    %34 = arith.mulf %33, %33 : vector<8x128xf32>
    %cst_27 = arith.constant dense<0.000000e+00> : vector<8xf32>
    %35 = vector.multi_reduction <add>, %34, %cst_27 [1] : vector<8x128xf32> to vector<8xf32>
    %36 = vector.shape_cast %35 : vector<8xf32> to vector<8x1xf32>
    %cst_28 = arith.constant 1.280000e+02 : f32
    %37 = vector.broadcast %cst_28 : f32 to vector<8x1xf32>
    %38 = arith.divf %36, %37 : vector<8x1xf32>
    %39 = vector.broadcast %31 : vector<8x1xf32> to vector<8x128xf32>
    %40 = arith.subf %23, %39 : vector<8x128xf32>
    %cst_29 = arith.constant 9.99999974E-6 : f32
    %41 = vector.broadcast %cst_29 : f32 to vector<8x1xf32>
    %42 = arith.addf %38, %41 : vector<8x1xf32>
    %43 = math.rsqrt %42 : vector<8x1xf32>
    %44 = vector.broadcast %43 : vector<8x1xf32> to vector<8x128xf32>
    %45 = arith.mulf %40, %44 : vector<8x128xf32>
    %46 = vector.broadcast %25 : vector<1x128xf32> to vector<8x128xf32>
    %47 = arith.mulf %45, %46 : vector<8x128xf32>
    %48 = vector.broadcast %27 : vector<1x128xf32> to vector<8x128xf32>
    %49 = arith.addf %47, %48 : vector<8x128xf32>
    %50 = arith.truncf %49 : vector<8x128xf32> to vector<8x128xbf16>
    %c0_30 = arith.constant 0 : index
    %c0_31 = arith.constant 0 : index
    %c0_32 = arith.constant 0 : index
    %51 = vector.load %arg10[%c0_30, %c0_31, %c0_32] : memref<2x128x2048xbf16, #tpu.memory_space<vmem>>, vector<1x128x2048xbf16>
    %52 = vector.shape_cast %51 : vector<1x128x2048xbf16> to vector<128x2048xbf16>
    %cst_33 = arith.constant dense<0.000000e+00> : vector<8x2048xf32>
    %53 = tpu.matmul %50, %52, %cst_33 {dimension_numbers = #tpu.dot_dimension_numbers<[1], [0], [0], [1], [0, 0, 1, 1], [], []>} : vector<8x128xbf16>, vector<128x2048xbf16>, vector<8x2048xf32> -> vector<8x2048xf32>
    %c0_34 = arith.constant 0 : index
    %c0_35 = arith.constant 0 : index
    %c0_36 = arith.constant 0 : index
    %54 = vector.load %arg11[%c0_34, %c0_35, %c0_36] : memref<2x1x2048xf32, #tpu.memory_space<vmem>>, vector<1x1x2048xf32>
    %55 = vector.shape_cast %54 : vector<1x1x2048xf32> to vector<1x2048xf32>
    %56 = vector.broadcast %55 : vector<1x2048xf32> to vector<8x2048xf32>
    %57 = arith.addf %53, %56 : vector<8x2048xf32>
    %cst_37 = arith.constant 0.000000e+00 : f32
    %58 = vector.broadcast %cst_37 : f32 to vector<8x2048xf32>
    %59 = arith.maximumf %57, %58 : vector<8x2048xf32>
    %60 = arith.truncf %59 : vector<8x2048xf32> to vector<8x2048xbf16>
    %c0_38 = arith.constant 0 : index
    %c0_39 = arith.constant 0 : index
    %c0_40 = arith.constant 0 : index
    %61 = vector.load %arg12[%c0_38, %c0_39, %c0_40] : memref<2x2048x128xbf16, #tpu.memory_space<vmem>>, vector<1x2048x128xbf16>
    %62 = vector.shape_cast %61 : vector<1x2048x128xbf16> to vector<2048x128xbf16>
    %cst_41 = arith.constant dense<0.000000e+00> : vector<8x128xf32>
    %63 = tpu.matmul %60, %62, %cst_41 {dimension_numbers = #tpu.dot_dimension_numbers<[1], [0], [0], [1], [0, 0, 1, 1], [], []>} : vector<8x2048xbf16>, vector<2048x128xbf16>, vector<8x128xf32> -> vector<8x128xf32>
    %c0_42 = arith.constant 0 : index
    %c0_43 = arith.constant 0 : index
    %c0_44 = arith.constant 0 : index
    %64 = vector.load %arg13[%c0_42, %c0_43, %c0_44] : memref<2x1x128xf32, #tpu.memory_space<vmem>>, vector<1x1x128xf32>
    %65 = vector.shape_cast %64 : vector<1x1x128xf32> to vector<1x128xf32>
    %66 = vector.broadcast %65 : vector<1x128xf32> to vector<8x128xf32>
    %67 = arith.addf %63, %66 : vector<8x128xf32>
    %68 = arith.addf %49, %67 : vector<8x128xf32>
    %c0_45 = arith.constant 0 : index
    %c0_46 = arith.constant 0 : index
    %c0_47 = arith.constant 0 : index
    %69 = vector.load %arg14[%c0_45, %c0_46, %c0_47] : memref<2x1x128xf32, #tpu.memory_space<vmem>>, vector<1x1x128xf32>
    %70 = vector.shape_cast %69 : vector<1x1x128xf32> to vector<1x128xf32>
    %c0_48 = arith.constant 0 : index
    %c0_49 = arith.constant 0 : index
    %c0_50 = arith.constant 0 : index
    %71 = vector.load %arg15[%c0_48, %c0_49, %c0_50] : memref<2x1x128xf32, #tpu.memory_space<vmem>>, vector<1x1x128xf32>
    %72 = vector.shape_cast %71 : vector<1x1x128xf32> to vector<1x128xf32>
    %cst_51 = arith.constant dense<0.000000e+00> : vector<8xf32>
    %73 = vector.multi_reduction <add>, %68, %cst_51 [1] : vector<8x128xf32> to vector<8xf32>
    %74 = vector.shape_cast %73 : vector<8xf32> to vector<8x1xf32>
    %cst_52 = arith.constant 1.280000e+02 : f32
    %75 = vector.broadcast %cst_52 : f32 to vector<8x1xf32>
    %76 = arith.divf %74, %75 : vector<8x1xf32>
    %77 = vector.broadcast %76 : vector<8x1xf32> to vector<8x128xf32>
    %78 = arith.subf %68, %77 : vector<8x128xf32>
    %79 = arith.mulf %78, %78 : vector<8x128xf32>
    %cst_53 = arith.constant dense<0.000000e+00> : vector<8xf32>
    %80 = vector.multi_reduction <add>, %79, %cst_53 [1] : vector<8x128xf32> to vector<8xf32>
    %81 = vector.shape_cast %80 : vector<8xf32> to vector<8x1xf32>
    %cst_54 = arith.constant 1.280000e+02 : f32
    %82 = vector.broadcast %cst_54 : f32 to vector<8x1xf32>
    %83 = arith.divf %81, %82 : vector<8x1xf32>
    %84 = vector.broadcast %76 : vector<8x1xf32> to vector<8x128xf32>
    %85 = arith.subf %68, %84 : vector<8x128xf32>
    %cst_55 = arith.constant 9.99999974E-6 : f32
    %86 = vector.broadcast %cst_55 : f32 to vector<8x1xf32>
    %87 = arith.addf %83, %86 : vector<8x1xf32>
    %88 = math.rsqrt %87 : vector<8x1xf32>
    %89 = vector.broadcast %88 : vector<8x1xf32> to vector<8x128xf32>
    %90 = arith.mulf %85, %89 : vector<8x128xf32>
    %91 = vector.broadcast %70 : vector<1x128xf32> to vector<8x128xf32>
    %92 = arith.mulf %90, %91 : vector<8x128xf32>
    %93 = vector.broadcast %72 : vector<1x128xf32> to vector<8x128xf32>
    %94 = arith.addf %92, %93 : vector<8x128xf32>
    %95 = arith.truncf %94 : vector<8x128xf32> to vector<8x128xbf16>
    %c1 = arith.constant 1 : index
    %c0_56 = arith.constant 0 : index
    %c0_57 = arith.constant 0 : index
    %96 = vector.load %arg4[%c1, %c0_56, %c0_57] : memref<2x128x128xbf16, #tpu.memory_space<vmem>>, vector<1x128x128xbf16>
    %97 = vector.shape_cast %96 : vector<1x128x128xbf16> to vector<128x128xbf16>
    %cst_58 = arith.constant dense<0.000000e+00> : vector<8x128xf32>
    %98 = tpu.matmul %95, %97, %cst_58 {dimension_numbers = #tpu.dot_dimension_numbers<[1], [0], [0], [1], [0, 0, 1, 1], [], []>} : vector<8x128xbf16>, vector<128x128xbf16>, vector<8x128xf32> -> vector<8x128xf32>
    %c1_59 = arith.constant 1 : index
    %c0_60 = arith.constant 0 : index
    %c0_61 = arith.constant 0 : index
    %99 = vector.load %arg5[%c1_59, %c0_60, %c0_61] : memref<2x1x128xf32, #tpu.memory_space<vmem>>, vector<1x1x128xf32>
    %100 = vector.shape_cast %99 : vector<1x1x128xf32> to vector<1x128xf32>
    %101 = vector.broadcast %100 : vector<1x128xf32> to vector<8x128xf32>
    %102 = arith.addf %98, %101 : vector<8x128xf32>
    %103 = arith.truncf %102 : vector<8x128xf32> to vector<8x128xbf16>
    %c1_62 = arith.constant 1 : index
    %c0_63 = arith.constant 0 : index
    %c0_64 = arith.constant 0 : index
    %104 = vector.load %arg6[%c1_62, %c0_63, %c0_64] : memref<2x128x128xbf16, #tpu.memory_space<vmem>>, vector<1x128x128xbf16>
    %105 = vector.shape_cast %104 : vector<1x128x128xbf16> to vector<128x128xbf16>
    %cst_65 = arith.constant dense<0.000000e+00> : vector<8x128xf32>
    %106 = tpu.matmul %103, %105, %cst_65 {dimension_numbers = #tpu.dot_dimension_numbers<[1], [0], [0], [1], [0, 0, 1, 1], [], []>} : vector<8x128xbf16>, vector<128x128xbf16>, vector<8x128xf32> -> vector<8x128xf32>
    %c1_66 = arith.constant 1 : index
    %c0_67 = arith.constant 0 : index
    %c0_68 = arith.constant 0 : index
    %107 = vector.load %arg7[%c1_66, %c0_67, %c0_68] : memref<2x1x128xf32, #tpu.memory_space<vmem>>, vector<1x1x128xf32>
    %108 = vector.shape_cast %107 : vector<1x1x128xf32> to vector<1x128xf32>
    %109 = vector.broadcast %108 : vector<1x128xf32> to vector<8x128xf32>
    %110 = arith.addf %106, %109 : vector<8x128xf32>
    %111 = arith.addf %94, %110 : vector<8x128xf32>
    %c1_69 = arith.constant 1 : index
    %c0_70 = arith.constant 0 : index
    %c0_71 = arith.constant 0 : index
    %112 = vector.load %arg8[%c1_69, %c0_70, %c0_71] : memref<2x1x128xf32, #tpu.memory_space<vmem>>, vector<1x1x128xf32>
    %113 = vector.shape_cast %112 : vector<1x1x128xf32> to vector<1x128xf32>
    %c1_72 = arith.constant 1 : index
    %c0_73 = arith.constant 0 : index
    %c0_74 = arith.constant 0 : index
    %114 = vector.load %arg9[%c1_72, %c0_73, %c0_74] : memref<2x1x128xf32, #tpu.memory_space<vmem>>, vector<1x1x128xf32>
    %115 = vector.shape_cast %114 : vector<1x1x128xf32> to vector<1x128xf32>
    %cst_75 = arith.constant dense<0.000000e+00> : vector<8xf32>
    %116 = vector.multi_reduction <add>, %111, %cst_75 [1] : vector<8x128xf32> to vector<8xf32>
    %117 = vector.shape_cast %116 : vector<8xf32> to vector<8x1xf32>
    %cst_76 = arith.constant 1.280000e+02 : f32
    %118 = vector.broadcast %cst_76 : f32 to vector<8x1xf32>
    %119 = arith.divf %117, %118 : vector<8x1xf32>
    %120 = vector.broadcast %119 : vector<8x1xf32> to vector<8x128xf32>
    %121 = arith.subf %111, %120 : vector<8x128xf32>
    %122 = arith.mulf %121, %121 : vector<8x128xf32>
    %cst_77 = arith.constant dense<0.000000e+00> : vector<8xf32>
    %123 = vector.multi_reduction <add>, %122, %cst_77 [1] : vector<8x128xf32> to vector<8xf32>
    %124 = vector.shape_cast %123 : vector<8xf32> to vector<8x1xf32>
    %cst_78 = arith.constant 1.280000e+02 : f32
    %125 = vector.broadcast %cst_78 : f32 to vector<8x1xf32>
    %126 = arith.divf %124, %125 : vector<8x1xf32>
    %127 = vector.broadcast %119 : vector<8x1xf32> to vector<8x128xf32>
    %128 = arith.subf %111, %127 : vector<8x128xf32>
    %cst_79 = arith.constant 9.99999974E-6 : f32
    %129 = vector.broadcast %cst_79 : f32 to vector<8x1xf32>
    %130 = arith.addf %126, %129 : vector<8x1xf32>
    %131 = math.rsqrt %130 : vector<8x1xf32>
    %132 = vector.broadcast %131 : vector<8x1xf32> to vector<8x128xf32>
    %133 = arith.mulf %128, %132 : vector<8x128xf32>
    %134 = vector.broadcast %113 : vector<1x128xf32> to vector<8x128xf32>
    %135 = arith.mulf %133, %134 : vector<8x128xf32>
    %136 = vector.broadcast %115 : vector<1x128xf32> to vector<8x128xf32>
    %137 = arith.addf %135, %136 : vector<8x128xf32>
    %138 = arith.truncf %137 : vector<8x128xf32> to vector<8x128xbf16>
    %c1_80 = arith.constant 1 : index
    %c0_81 = arith.constant 0 : index
    %c0_82 = arith.constant 0 : index
    %139 = vector.load %arg10[%c1_80, %c0_81, %c0_82] : memref<2x128x2048xbf16, #tpu.memory_space<vmem>>, vector<1x128x2048xbf16>
    %140 = vector.shape_cast %139 : vector<1x128x2048xbf16> to vector<128x2048xbf16>
    %cst_83 = arith.constant dense<0.000000e+00> : vector<8x2048xf32>
    %141 = tpu.matmul %138, %140, %cst_83 {dimension_numbers = #tpu.dot_dimension_numbers<[1], [0], [0], [1], [0, 0, 1, 1], [], []>} : vector<8x128xbf16>, vector<128x2048xbf16>, vector<8x2048xf32> -> vector<8x2048xf32>
    %c1_84 = arith.constant 1 : index
    %c0_85 = arith.constant 0 : index
    %c0_86 = arith.constant 0 : index
    %142 = vector.load %arg11[%c1_84, %c0_85, %c0_86] : memref<2x1x2048xf32, #tpu.memory_space<vmem>>, vector<1x1x2048xf32>
    %143 = vector.shape_cast %142 : vector<1x1x2048xf32> to vector<1x2048xf32>
    %144 = vector.broadcast %143 : vector<1x2048xf32> to vector<8x2048xf32>
    %145 = arith.addf %141, %144 : vector<8x2048xf32>
    %cst_87 = arith.constant 0.000000e+00 : f32
    %146 = vector.broadcast %cst_87 : f32 to vector<8x2048xf32>
    %147 = arith.maximumf %145, %146 : vector<8x2048xf32>
    %148 = arith.truncf %147 : vector<8x2048xf32> to vector<8x2048xbf16>
    %c1_88 = arith.constant 1 : index
    %c0_89 = arith.constant 0 : index
    %c0_90 = arith.constant 0 : index
    %149 = vector.load %arg12[%c1_88, %c0_89, %c0_90] : memref<2x2048x128xbf16, #tpu.memory_space<vmem>>, vector<1x2048x128xbf16>
    %150 = vector.shape_cast %149 : vector<1x2048x128xbf16> to vector<2048x128xbf16>
    %cst_91 = arith.constant dense<0.000000e+00> : vector<8x128xf32>
    %151 = tpu.matmul %148, %150, %cst_91 {dimension_numbers = #tpu.dot_dimension_numbers<[1], [0], [0], [1], [0, 0, 1, 1], [], []>} : vector<8x2048xbf16>, vector<2048x128xbf16>, vector<8x128xf32> -> vector<8x128xf32>
    %c1_92 = arith.constant 1 : index
    %c0_93 = arith.constant 0 : index
    %c0_94 = arith.constant 0 : index
    %152 = vector.load %arg13[%c1_92, %c0_93, %c0_94] : memref<2x1x128xf32, #tpu.memory_space<vmem>>, vector<1x1x128xf32>
    %153 = vector.shape_cast %152 : vector<1x1x128xf32> to vector<1x128xf32>
    %154 = vector.broadcast %153 : vector<1x128xf32> to vector<8x128xf32>
    %155 = arith.addf %151, %154 : vector<8x128xf32>
    %156 = arith.addf %137, %155 : vector<8x128xf32>
    %c1_95 = arith.constant 1 : index
    %c0_96 = arith.constant 0 : index
    %c0_97 = arith.constant 0 : index
    %157 = vector.load %arg14[%c1_95, %c0_96, %c0_97] : memref<2x1x128xf32, #tpu.memory_space<vmem>>, vector<1x1x128xf32>
    %158 = vector.shape_cast %157 : vector<1x1x128xf32> to vector<1x128xf32>
    %c1_98 = arith.constant 1 : index
    %c0_99 = arith.constant 0 : index
    %c0_100 = arith.constant 0 : index
    %159 = vector.load %arg15[%c1_98, %c0_99, %c0_100] : memref<2x1x128xf32, #tpu.memory_space<vmem>>, vector<1x1x128xf32>
    %160 = vector.shape_cast %159 : vector<1x1x128xf32> to vector<1x128xf32>
    %cst_101 = arith.constant dense<0.000000e+00> : vector<8xf32>
    %161 = vector.multi_reduction <add>, %156, %cst_101 [1] : vector<8x128xf32> to vector<8xf32>
    %162 = vector.shape_cast %161 : vector<8xf32> to vector<8x1xf32>
    %cst_102 = arith.constant 1.280000e+02 : f32
    %163 = vector.broadcast %cst_102 : f32 to vector<8x1xf32>
    %164 = arith.divf %162, %163 : vector<8x1xf32>
    %165 = vector.broadcast %164 : vector<8x1xf32> to vector<8x128xf32>
    %166 = arith.subf %156, %165 : vector<8x128xf32>
    %167 = arith.mulf %166, %166 : vector<8x128xf32>
    %cst_103 = arith.constant dense<0.000000e+00> : vector<8xf32>
    %168 = vector.multi_reduction <add>, %167, %cst_103 [1] : vector<8x128xf32> to vector<8xf32>
    %169 = vector.shape_cast %168 : vector<8xf32> to vector<8x1xf32>
    %cst_104 = arith.constant 1.280000e+02 : f32
    %170 = vector.broadcast %cst_104 : f32 to vector<8x1xf32>
    %171 = arith.divf %169, %170 : vector<8x1xf32>
    %172 = vector.broadcast %164 : vector<8x1xf32> to vector<8x128xf32>
    %173 = arith.subf %156, %172 : vector<8x128xf32>
    %cst_105 = arith.constant 9.99999974E-6 : f32
    %174 = vector.broadcast %cst_105 : f32 to vector<8x1xf32>
    %175 = arith.addf %171, %174 : vector<8x1xf32>
    %176 = math.rsqrt %175 : vector<8x1xf32>
    %177 = vector.broadcast %176 : vector<8x1xf32> to vector<8x128xf32>
    %178 = arith.mulf %173, %177 : vector<8x128xf32>
    %179 = vector.broadcast %158 : vector<1x128xf32> to vector<8x128xf32>
    %180 = arith.mulf %178, %179 : vector<8x128xf32>
    %181 = vector.broadcast %160 : vector<1x128xf32> to vector<8x128xf32>
    %182 = arith.addf %180, %181 : vector<8x128xf32>
    %c0_106 = arith.constant 0 : index
    %c0_107 = arith.constant 0 : index
    %183 = vector.load %arg16[%c0_106, %c0_107] : memref<8x128xf32, #tpu.memory_space<vmem>>, vector<8x128xf32>
    tpu.vector_store %arg16[%c0_106, %c0_107], %182 {strides = array<i32>} : memref<8x128xf32, #tpu.memory_space<vmem>>, vector<8x128xf32>,
    return
  }
  func.func @transform_0(%arg0: i32) -> (i32, i32) {
    %c0_i32 = arith.constant 0 : i32
    %c0_i32_0 = arith.constant 0 : i32
    return %arg0, %c0_i32 : i32, i32
  }
  func.func @transform_1(%arg0: i32) -> (i32, i32) {
    %c0_i32 = arith.constant 0 : i32
    %c0_i32_0 = arith.constant 0 : i32
    %c0_i32_1 = arith.constant 0 : i32
    return %c0_i32, %c0_i32_0 : i32, i32
  }
  func.func @transform_2(%arg0: i32) -> (i32, i32) {
    %c0_i32 = arith.constant 0 : i32
    %c0_i32_0 = arith.constant 0 : i32
    %c0_i32_1 = arith.constant 0 : i32
    return %c0_i32, %c0_i32_0 : i32, i32
  }
  func.func @transform_3(%arg0: i32) -> (i32, i32, i32) {
    %c0_i32 = arith.constant 0 : i32
    %c0_i32_0 = arith.constant 0 : i32
    %c0_i32_1 = arith.constant 0 : i32
    %c0_i32_2 = arith.constant 0 : i32
    return %c0_i32, %c0_i32_0, %c0_i32_1 : i32, i32, i32
  }
  func.func @transform_4(%arg0: i32) -> (i32, i32, i32) {
    %c0_i32 = arith.constant 0 : i32
    %c0_i32_0 = arith.constant 0 : i32
    %c0_i32_1 = arith.constant 0 : i32
    %c0_i32_2 = arith.constant 0 : i32
    return %c0_i32, %c0_i32_0, %c0_i32_1 : i32, i32, i32
  }
  func.func @transform_5(%arg0: i32) -> (i32, i32, i32) {
    %c0_i32 = arith.constant 0 : i32
    %c0_i32_0 = arith.constant 0 : i32
    %c0_i32_1 = arith.constant 0 : i32
    %c0_i32_2 = arith.constant 0 : i32
    return %c0_i32, %c0_i32_0, %c0_i32_1 : i32, i32, i32
  }
  func.func @transform_6(%arg0: i32) -> (i32, i32, i32) {
    %c0_i32 = arith.constant 0 : i32
    %c0_i32_0 = arith.constant 0 : i32
    %c0_i32_1 = arith.constant 0 : i32
    %c0_i32_2 = arith.constant 0 : i32
    return %c0_i32, %c0_i32_0, %c0_i32_1 : i32, i32, i32
  }
  func.func @transform_7(%arg0: i32) -> (i32, i32, i32) {
    %c0_i32 = arith.constant 0 : i32
    %c0_i32_0 = arith.constant 0 : i32
    %c0_i32_1 = arith.constant 0 : i32
    %c0_i32_2 = arith.constant 0 : i32
    return %c0_i32, %c0_i32_0, %c0_i32_1 : i32, i32, i32
  }
  func.func @transform_8(%arg0: i32) -> (i32, i32, i32) {
    %c0_i32 = arith.constant 0 : i32
    %c0_i32_0 = arith.constant 0 : i32
    %c0_i32_1 = arith.constant 0 : i32
    %c0_i32_2 = arith.constant 0 : i32
    return %c0_i32, %c0_i32_0, %c0_i32_1 : i32, i32, i32
  }
  func.func @transform_9(%arg0: i32) -> (i32, i32, i32) {
    %c0_i32 = arith.constant 0 : i32
    %c0_i32_0 = arith.constant 0 : i32
    %c0_i32_1 = arith.constant 0 : i32
    %c0_i32_2 = arith.constant 0 : i32
    return %c0_i32, %c0_i32_0, %c0_i32_1 : i32, i32, i32
  }
  func.func @transform_10(%arg0: i32) -> (i32, i32, i32) {
    %c0_i32 = arith.constant 0 : i32
    %c0_i32_0 = arith.constant 0 : i32
    %c0_i32_1 = arith.constant 0 : i32
    %c0_i32_2 = arith.constant 0 : i32
    return %c0_i32, %c0_i32_0, %c0_i32_1 : i32, i32, i32
  }
  func.func @transform_11(%arg0: i32) -> (i32, i32, i32) {
    %c0_i32 = arith.constant 0 : i32
    %c0_i32_0 = arith.constant 0 : i32
    %c0_i32_1 = arith.constant 0 : i32
    %c0_i32_2 = arith.constant 0 : i32
    return %c0_i32, %c0_i32_0, %c0_i32_1 : i32, i32, i32
  }
  func.func @transform_12(%arg0: i32) -> (i32, i32, i32) {
    %c0_i32 = arith.constant 0 : i32
    %c0_i32_0 = arith.constant 0 : i32
    %c0_i32_1 = arith.constant 0 : i32
    %c0_i32_2 = arith.constant 0 : i32
    return %c0_i32, %c0_i32_0, %c0_i32_1 : i32, i32, i32
  }
  func.func @transform_13(%arg0: i32) -> (i32, i32, i32) {
    %c0_i32 = arith.constant 0 : i32
    %c0_i32_0 = arith.constant 0 : i32
    %c0_i32_1 = arith.constant 0 : i32
    %c0_i32_2 = arith.constant 0 : i32
    return %c0_i32, %c0_i32_0, %c0_i32_1 : i32, i32, i32
  }
  func.func @transform_14(%arg0: i32) -> (i32, i32, i32) {
    %c0_i32 = arith.constant 0 : i32
    %c0_i32_0 = arith.constant 0 : i32
    %c0_i32_1 = arith.constant 0 : i32
    %c0_i32_2 = arith.constant 0 : i32
    return %c0_i32, %c0_i32_0, %c0_i32_1 : i32, i32, i32
  }
  func.func @transform_15(%arg0: i32) -> (i32, i32) {
    %c0_i32 = arith.constant 0 : i32
    %c0_i32_0 = arith.constant 0 : i32
    return %arg0, %c0_i32 : i32, i32
  }
}

</mosaic_0001>

<llo_original>
// kernel: transformer_condition_encoder.1
$region0: #{transformer_condition_encoder.1}
  #allocation0 [shape = 'u32[]', space=smem, size = 0x4, offset = 0x4, fixed_abs, tag = 'smem constant byte address 0x4 - core index']
  #allocation1 [shape = 'u32[72,128]{1,0:T(1,128)}', space=vmem, size = 0x9000, scoped, tag = 'internal scratch']
  %s0 = inlined_call_operand.vmem [shape: f32[8,1024], index: 0, kind: input, shape index: {}]
  %s1 = inlined_call_operand.vmem [shape: bf16[1024,128], index: 1, kind: input, shape index: {}]
  %s2 = inlined_call_operand.vmem [shape: f32[1,128], index: 2, kind: input, shape index: {}]
  %s3 = inlined_call_operand.hbm [shape: bf16[2,128,128], index: 3, kind: input, shape index: {}]
  %s4 = inlined_call_operand.vmem [shape: f32[2,1,128], index: 4, kind: input, shape index: {}]
  %s5 = inlined_call_operand.hbm [shape: bf16[2,128,128], index: 5, kind: input, shape index: {}]
  %s6 = inlined_call_operand.vmem [shape: f32[2,1,128], index: 6, kind: input, shape index: {}]
  %s7 = inlined_call_operand.vmem [shape: f32[2,1,128], index: 7, kind: input, shape index: {}]
  %s8 = inlined_call_operand.vmem [shape: f32[2,1,128], index: 8, kind: input, shape index: {}]
  %s9 = inlined_call_operand.hbm [shape: bf16[2,128,2048], index: 9, kind: input, shape index: {}]
  %s10 = inlined_call_operand.vmem [shape: f32[2,1,2048], index: 10, kind: input, shape index: {}]
  %s11 = inlined_call_operand.hbm [shape: bf16[2,2048,128], index: 11, kind: input, shape index: {}]
  %s12 = inlined_call_operand.vmem [shape: f32[2,1,128], index: 12, kind: input, shape index: {}]
  %s13 = inlined_call_operand.vmem [shape: f32[2,1,128], index: 13, kind: input, shape index: {}]
  %s14 = inlined_call_operand.vmem [shape: f32[2,1,128], index: 14, kind: input, shape index: {}]
  %s15 = inlined_call_operand.hbm [shape: f32[8,128], index: 15, kind: output, shape index: {}]
  %s16 = sld [smem:[#allocation0]]
  $region86: #{transformer_condition_encoder.1} parent=0
    _
  %s18 = ssub.s32 1, %s16
  %s19 = scalar_select 0, %s18, %s16
  $region1: #{transformer_condition_encoder.1} parent=0
    #allocation2 [shape = 'u8[65536]{0}', space=vmem, size = 0x10000, scoped, tag = 'input window, operand 3, single buffered']
    #allocation3 [shape = 's32[1]{0}', space=sflag, size = 0x4, scoped, tag = 'scoped memory for transformer_condition_encoder.1']
    #allocation4 [shape = 's32[1]{0}', space=sflag, size = 0x4, scoped, tag = 'scoped memory for transformer_condition_encoder.1']
    #allocation5 [shape = 'u8[65536]{0}', space=vmem, size = 0x10000, scoped, tag = 'input window, operand 5, single buffered']
    #allocation6 [shape = 's32[1]{0}', space=sflag, size = 0x4, scoped, tag = 'scoped memory for transformer_condition_encoder.1']
    #allocation7 [shape = 'u8[1048576]{0}', space=vmem, size = 0x100000, scoped, tag = 'input window, operand 9, single buffered']
    #allocation8 [shape = 'u8[1048576]{0}', space=vmem, size = 0x100000, scoped, tag = 'input window, operand 11, single buffered']
    #allocation9 [shape = 's32[1]{0}', space=sflag, size = 0x4, scoped, tag = 'scoped memory for transformer_condition_encoder.1']
    #allocation10 [shape = 'u8[4096]{0}', space=vmem, size = 0x1000, scoped, tag = 'output window, operand 0, single buffered']
    %20 = vsyncpa [#allocation3], 0
    %21 = vsyncpa [#allocation6], 0
    %22 = vsyncpa [#allocation9], 0
    %23 = vsyncpa [#allocation4], 0
    // Predicated region
    $region2: #{transformer_condition_encoder.1} parent=1 // pred_check
      _
    $region3: #{transformer_condition_encoder.1} parent=1 // pred_check_branch
      %25 = sbr.rel (0) target = $region5
    $region4: #{transformer_condition_encoder.1} parent=1 // pred_region
      _
    $region5: #{transformer_condition_encoder.1} parent=1 // pred_fallthru
      _
    // Predicated region
    $region6: #{transformer_condition_encoder.1} parent=1 // pred_check
      _
    $region7: #{transformer_condition_encoder.1} parent=1 // pred_check_branch
      %27 = sbr.rel (0) target = $region9
    $region8: #{transformer_condition_encoder.1} parent=1 // pred_region
      _
    $region9: #{transformer_condition_encoder.1} parent=1 // pred_fallthru
      _
    // Predicated region
    $region10: #{transformer_condition_encoder.1} parent=1 // pred_check
      _
    $region11: #{transformer_condition_encoder.1} parent=1 // pred_check_branch
      %29 = sbr.rel (0) target = $region13
    $region12: #{transformer_condition_encoder.1} parent=1 // pred_region
      _
    $region13: #{transformer_condition_encoder.1} parent=1 // pred_fallthru
      _
    // Predicated region
    $region14: #{transformer_condition_encoder.1} parent=1 // pred_check
      _
    $region15: #{transformer_condition_encoder.1} parent=1 // pred_check_branch
      %31 = sbr.rel (0) target = $region17
    $region16: #{transformer_condition_encoder.1} parent=1 // pred_region
      %33 = vsyncadd [#allocation3], 0
      %s34 = sshll.u32 %s3, 4
      %s35 = int_to_ptr.hbm [resolvable:$true] %s34
      %s36 = sshll.u32 [#allocation2], 4
      %s37 = int_to_ptr.vmem [resolvable:$true] %s36
      %42 = dma.hbm_to_vmem [thread:$0]  %s35, 2048, %s37, [#allocation3], 64, 64, 4
    $region17: #{transformer_condition_encoder.1} parent=1 // pred_fallthru
      _
    // Predicated region
    $region18: #{transformer_condition_encoder.1} parent=1 // pred_check
      _
    $region19: #{transformer_condition_encoder.1} parent=1 // pred_check_branch
      %44 = sbr.rel (0) target = $region21
    $region20: #{transformer_condition_encoder.1} parent=1 // pred_region
      _
    $region21: #{transformer_condition_encoder.1} parent=1 // pred_fallthru
      _
    // Predicated region
    $region22: #{transformer_condition_encoder.1} parent=1 // pred_check
      _
    $region23: #{transformer_condition_encoder.1} parent=1 // pred_check_branch
      %46 = sbr.rel (0) target = $region25
    $region24: #{transformer_condition_encoder.1} parent=1 // pred_region
      %48 = vsyncadd [#allocation6], 0
      %s49 = sshll.u32 %s5, 4
      %s50 = int_to_ptr.hbm [resolvable:$true] %s49
      %s51 = sshll.u32 [#allocation5], 4
      %s52 = int_to_ptr.vmem [resolvable:$true] %s51
      %57 = dma.hbm_to_vmem [thread:$0]  %s50, 2048, %s52, [#allocation6], 64, 64, 4
    $region25: #{transformer_condition_encoder.1} parent=1 // pred_fallthru
      _
    // Predicated region
    $region26: #{transformer_condition_encoder.1} parent=1 // pred_check
      _
    $region27: #{transformer_condition_encoder.1} parent=1 // pred_check_branch
      %59 = sbr.rel (0) target = $region29
    $region28: #{transformer_condition_encoder.1} parent=1 // pred_region
      _
    $region29: #{transformer_condition_encoder.1} parent=1 // pred_fallthru
      _
    // Predicated region
    $region30: #{transformer_condition_encoder.1} parent=1 // pred_check
      _
    $region31: #{transformer_condition_encoder.1} parent=1 // pred_check_branch
      %61 = sbr.rel (0) target = $region33
    $region32: #{transformer_condition_encoder.1} parent=1 // pred_region
      _
    $region33: #{transformer_condition_encoder.1} parent=1 // pred_fallthru
      _
    // Predicated region
    $region34: #{transformer_condition_encoder.1} parent=1 // pred_check
      _
    $region35: #{transformer_condition_encoder.1} parent=1 // pred_check_branch
      %63 = sbr.rel (0) target = $region37
    $region36: #{transformer_condition_encoder.1} parent=1 // pred_region
      _
    $region37: #{transformer_condition_encoder.1} parent=1 // pred_fallthru
      _
    // Predicated region
    $region38: #{transformer_condition_encoder.1} parent=1 // pred_check
      _
    $region39: #{transformer_condition_encoder.1} parent=1 // pred_check_branch
      %65 = sbr.rel (0) target = $region41
    $region40: #{transformer_condition_encoder.1} parent=1 // pred_region
      %67 = vsyncadd [#allocation6], 0
      %s68 = sshll.u32 %s9, 4
      %s69 = int_to_ptr.hbm [resolvable:$true] %s68
      %s70 = sshll.u32 [#allocation7], 4
      %s71 = int_to_ptr.vmem [resolvable:$true] %s70
      %76 = dma.hbm_to_vmem [thread:$0]  %s69, 32768, %s71, [#allocation6], 1024, 1024, 64
    $region41: #{transformer_condition_encoder.1} parent=1 // pred_fallthru
      _
    // Predicated region
    $region42: #{transformer_condition_encoder.1} parent=1 // pred_check
      _
    $region43: #{transformer_condition_encoder.1} parent=1 // pred_check_branch
      %78 = sbr.rel (0) target = $region45
    $region44: #{transformer_condition_encoder.1} parent=1 // pred_region
      _
    $region45: #{transformer_condition_encoder.1} parent=1 // pred_fallthru
      _
    // Predicated region
    $region46: #{transformer_condition_encoder.1} parent=1 // pred_check
      _
    $region47: #{transformer_condition_encoder.1} parent=1 // pred_check_branch
      %80 = sbr.rel (0) target = $region49
    $region48: #{transformer_condition_encoder.1} parent=1 // pred_region
      %82 = vsyncadd [#allocation9], 0
      %s83 = sshll.u32 %s11, 4
      %s84 = int_to_ptr.hbm [resolvable:$true] %s83
      %s85 = sshll.u32 [#allocation8], 4
      %s86 = int_to_ptr.vmem [resolvable:$true] %s85
      %91 = dma.hbm_to_vmem [thread:$0]  %s84, 32768, %s86, [#allocation9], 64, 64, 4
    $region49: #{transformer_condition_encoder.1} parent=1 // pred_fallthru
      _
    // Predicated region
    $region50: #{transformer_condition_encoder.1} parent=1 // pred_check
      _
    $region51: #{transformer_condition_encoder.1} parent=1 // pred_check_branch
      %93 = sbr.rel (0) target = $region53
    $region52: #{transformer_condition_encoder.1} parent=1 // pred_region
      _
    $region53: #{transformer_condition_encoder.1} parent=1 // pred_fallthru
      _
    // Predicated region
    $region54: #{transformer_condition_encoder.1} parent=1 // pred_check
      _
    $region55: #{transformer_condition_encoder.1} parent=1 // pred_check_branch
      %95 = sbr.rel (0) target = $region57
    $region56: #{transformer_condition_encoder.1} parent=1 // pred_region
      _
    $region57: #{transformer_condition_encoder.1} parent=1 // pred_fallthru
      _
    // Predicated region
    $region58: #{transformer_condition_encoder.1} parent=1 // pred_check
      _
    $region59: #{transformer_condition_encoder.1} parent=1 // pred_check_branch
      %97 = sbr.rel (0) target = $region61
    $region60: #{transformer_condition_encoder.1} parent=1 // pred_region
      _
    $region61: #{transformer_condition_encoder.1} parent=1 // pred_fallthru
      _
    // Predicated region
    $region62: #{transformer_condition_encoder.1} parent=1 // pred_check
      _
    $region63: #{transformer_condition_encoder.1} parent=1 // pred_check_branch
      %99 = sbr.rel (0) target = $region65
    $region64: #{transformer_condition_encoder.1} parent=1 // pred_region
      %101 = dma.done [#allocation3], 2048
    $region65: #{transformer_condition_encoder.1} parent=1 // pred_fallthru
      _
    // Predicated region
    $region66: #{transformer_condition_encoder.1} parent=1 // pred_check
      _
    $region67: #{transformer_condition_encoder.1} parent=1 // pred_check_branch
      %103 = sbr.rel (0) target = $region69
    $region68: #{transformer_condition_encoder.1} parent=1 // pred_region
      %105 = dma.done [#allocation6], 2048
    $region69: #{transformer_condition_encoder.1} parent=1 // pred_fallthru
      _
    // Predicated region
    $region70: #{transformer_condition_encoder.1} parent=1 // pred_check
      _
    $region71: #{transformer_condition_encoder.1} parent=1 // pred_check_branch
      %107 = sbr.rel (0) target = $region73
    $region72: #{transformer_condition_encoder.1} parent=1 // pred_region
      %109 = dma.done [#allocation6], 32768
    $region73: #{transformer_condition_encoder.1} parent=1 // pred_fallthru
      _
    // Predicated region
    $region74: #{transformer_condition_encoder.1} parent=1 // pred_check
      _
    $region75: #{transformer_condition_encoder.1} parent=1 // pred_check_branch
      %111 = sbr.rel (0) target = $region77
    $region76: #{transformer_condition_encoder.1} parent=1 // pred_region
      %113 = dma.done [#allocation9], 32768
    $region77: #{transformer_condition_encoder.1} parent=1 // pred_fallthru
      _
    %v114 = vld [vmem:[%s0] sm:$0xff]
    %v115 = vld [vmem:[%s0 + $0x8] sm:$0xff]
    %v116 = vld [vmem:[%s0 + $0x10] sm:$0xff]
    %v117 = vld [vmem:[%s0 + $0x18] sm:$0xff]
    %v118 = vld [vmem:[%s0 + $0x20] sm:$0xff]
    %v119 = vld [vmem:[%s0 + $0x28] sm:$0xff]
    %v120 = vld [vmem:[%s0 + $0x30] sm:$0xff]
    %v121 = vld [vmem:[%s0 + $0x38] sm:$0xff]
    %v122 = vpack.c.bf16 %v114, %v114
    %v123 = vpack.c.bf16 %v115, %v115
    %v124 = vpack.c.bf16 %v116, %v116
    %v125 = vpack.c.bf16 %v117, %v117
    %v126 = vpack.c.bf16 %v118, %v118
    %v127 = vpack.c.bf16 %v119, %v119
    %v128 = vpack.c.bf16 %v120, %v120
    %v129 = vpack.c.bf16 %v121, %v121
    %v130 = vld [vmem:[%s1] sm:$0xf]
    %v131 = vld [vmem:[%s1 + $0x4] sm:$0xf]
    %v132 = vld [vmem:[%s1 + $0x8] sm:$0xf]
    %v133 = vld [vmem:[%s1 + $0xc] sm:$0xf]
    %v134 = vld [vmem:[%s1 + $0x10] sm:$0xf]
    %v135 = vld [vmem:[%s1 + $0x14] sm:$0xf]
    %v136 = vld [vmem:[%s1 + $0x18] sm:$0xf]
    %v137 = vld [vmem:[%s1 + $0x1c] sm:$0xf]
    %v138 = vld [vmem:[%s1 + $0x20] sm:$0xf]
    %v139 = vld [vmem:[%s1 + $0x24] sm:$0xf]
    %v140 = vld [vmem:[%s1 + $0x28] sm:$0xf]
    %v141 = vld [vmem:[%s1 + $0x2c] sm:$0xf]
    %v142 = vld [vmem:[%s1 + $0x30] sm:$0xf]
    %v143 = vld [vmem:[%s1 + $0x34] sm:$0xf]
    %v144 = vld [vmem:[%s1 + $0x38] sm:$0xf]
    %v145 = vld [vmem:[%s1 + $0x3c] sm:$0xf]
    %v146 = vld [vmem:[%s1 + $0x40] sm:$0xf]
    %v147 = vld [vmem:[%s1 + $0x44] sm:$0xf]
    %v148 = vld [vmem:[%s1 + $0x48] sm:$0xf]
    %v149 = vld [vmem:[%s1 + $0x4c] sm:$0xf]
    %v150 = vld [vmem:[%s1 + $0x50] sm:$0xf]
    %v151 = vld [vmem:[%s1 + $0x54] sm:$0xf]
    %v152 = vld [vmem:[%s1 + $0x58] sm:$0xf]
    %v153 = vld [vmem:[%s1 + $0x5c] sm:$0xf]
    %v154 = vld [vmem:[%s1 + $0x60] sm:$0xf]
    %v155 = vld [vmem:[%s1 + $0x64] sm:$0xf]
    %v156 = vld [vmem:[%s1 + $0x68] sm:$0xf]
    %v157 = vld [vmem:[%s1 + $0x6c] sm:$0xf]
    %v158 = vld [vmem:[%s1 + $0x70] sm:$0xf]
    %v159 = vld [vmem:[%s1 + $0x74] sm:$0xf]
    %v160 = vld [vmem:[%s1 + $0x78] sm:$0xf]
    %v161 = vld [vmem:[%s1 + $0x7c] sm:$0xf]
    %v162 = vld [vmem:[%s1 + $0x80] sm:$0xf]
    %v163 = vld [vmem:[%s1 + $0x84] sm:$0xf]
    %v164 = vld [vmem:[%s1 + $0x88] sm:$0xf]
    %v165 = vld [vmem:[%s1 + $0x8c] sm:$0xf]
    %v166 = vld [vmem:[%s1 + $0x90] sm:$0xf]
    %v167 = vld [vmem:[%s1 + $0x94] sm:$0xf]
    %v168 = vld [vmem:[%s1 + $0x98] sm:$0xf]
    %v169 = vld [vmem:[%s1 + $0x9c] sm:$0xf]
    %v170 = vld [vmem:[%s1 + $0xa0] sm:$0xf]
    %v171 = vld [vmem:[%s1 + $0xa4] sm:$0xf]
    %v172 = vld [vmem:[%s1 + $0xa8] sm:$0xf]
    %v173 = vld [vmem:[%s1 + $0xac] sm:$0xf]
    %v174 = vld [vmem:[%s1 + $0xb0] sm:$0xf]
    %v175 = vld [vmem:[%s1 + $0xb4] sm:$0xf]
    %v176 = vld [vmem:[%s1 + $0xb8] sm:$0xf]
    %v177 = vld [vmem:[%s1 + $0xbc] sm:$0xf]
    %v178 = vld [vmem:[%s1 + $0xc0] sm:$0xf]
    %v179 = vld [vmem:[%s1 + $0xc4] sm:$0xf]
    %v180 = vld [vmem:[%s1 + $0xc8] sm:$0xf]
    %v181 = vld [vmem:[%s1 + $0xcc] sm:$0xf]
    %v182 = vld [vmem:[%s1 + $0xd0] sm:$0xf]
    %v183 = vld [vmem:[%s1 + $0xd4] sm:$0xf]
    %v184 = vld [vmem:[%s1 + $0xd8] sm:$0xf]
    %v185 = vld [vmem:[%s1 + $0xdc] sm:$0xf]
    %v186 = vld [vmem:[%s1 + $0xe0] sm:$0xf]
    %v187 = vld [vmem:[%s1 + $0xe4] sm:$0xf]
    %v188 = vld [vmem:[%s1 + $0xe8] sm:$0xf]
    %v189 = vld [vmem:[%s1 + $0xec] sm:$0xf]
    %v190 = vld [vmem:[%s1 + $0xf0] sm:$0xf]
    %v191 = vld [vmem:[%s1 + $0xf4] sm:$0xf]
    %v192 = vld [vmem:[%s1 + $0xf8] sm:$0xf]
    %v193 = vld [vmem:[%s1 + $0xfc] sm:$0xf]
    %v194 = vld [vmem:[%s1 + $0x100] sm:$0xf]
    %v195 = vld [vmem:[%s1 + $0x104] sm:$0xf]
    %v196 = vld [vmem:[%s1 + $0x108] sm:$0xf]
    %v197 = vld [vmem:[%s1 + $0x10c] sm:$0xf]
    %v198 = vld [vmem:[%s1 + $0x110] sm:$0xf]
    %v199 = vld [vmem:[%s1 + $0x114] sm:$0xf]
    %v200 = vld [vmem:[%s1 + $0x118] sm:$0xf]
    %v201 = vld [vmem:[%s1 + $0x11c] sm:$0xf]
    %v202 = vld [vmem:[%s1 + $0x120] sm:$0xf]
    %v203 = vld [vmem:[%s1 + $0x124] sm:$0xf]
    %v204 = vld [vmem:[%s1 + $0x128] sm:$0xf]
    %v205 = vld [vmem:[%s1 + $0x12c] sm:$0xf]
    %v206 = vld [vmem:[%s1 + $0x130] sm:$0xf]
    %v207 = vld [vmem:[%s1 + $0x134] sm:$0xf]
    %v208 = vld [vmem:[%s1 + $0x138] sm:$0xf]
    %v209 = vld [vmem:[%s1 + $0x13c] sm:$0xf]
    %v210 = vld [vmem:[%s1 + $0x140] sm:$0xf]
    %v211 = vld [vmem:[%s1 + $0x144] sm:$0xf]
    %v212 = vld [vmem:[%s1 + $0x148] sm:$0xf]
    %v213 = vld [vmem:[%s1 + $0x14c] sm:$0xf]
    %v214 = vld [vmem:[%s1 + $0x150] sm:$0xf]
    %v215 = vld [vmem:[%s1 + $0x154] sm:$0xf]
    %v216 = vld [vmem:[%s1 + $0x158] sm:$0xf]
    %v217 = vld [vmem:[%s1 + $0x15c] sm:$0xf]
    %v218 = vld [vmem:[%s1 + $0x160] sm:$0xf]
    %v219 = vld [vmem:[%s1 + $0x164] sm:$0xf]
    %v220 = vld [vmem:[%s1 + $0x168] sm:$0xf]
    %v221 = vld [vmem:[%s1 + $0x16c] sm:$0xf]
    %v222 = vld [vmem:[%s1 + $0x170] sm:$0xf]
    %v223 = vld [vmem:[%s1 + $0x174] sm:$0xf]
    %v224 = vld [vmem:[%s1 + $0x178] sm:$0xf]
    %v225 = vld [vmem:[%s1 + $0x17c] sm:$0xf]
    %v226 = vld [vmem:[%s1 + $0x180] sm:$0xf]
    %v227 = vld [vmem:[%s1 + $0x184] sm:$0xf]
    %v228 = vld [vmem:[%s1 + $0x188] sm:$0xf]
    %v229 = vld [vmem:[%s1 + $0x18c] sm:$0xf]
    %v230 = vld [vmem:[%s1 + $0x190] sm:$0xf]
    %v231 = vld [vmem:[%s1 + $0x194] sm:$0xf]
    %v232 = vld [vmem:[%s1 + $0x198] sm:$0xf]
    %v233 = vld [vmem:[%s1 + $0x19c] sm:$0xf]
    %v234 = vld [vmem:[%s1 + $0x1a0] sm:$0xf]
    %v235 = vld [vmem:[%s1 + $0x1a4] sm:$0xf]
    %v236 = vld [vmem:[%s1 + $0x1a8] sm:$0xf]
    %v237 = vld [vmem:[%s1 + $0x1ac] sm:$0xf]
    %v238 = vld [vmem:[%s1 + $0x1b0] sm:$0xf]
    %v239 = vld [vmem:[%s1 + $0x1b4] sm:$0xf]
    %v240 = vld [vmem:[%s1 + $0x1b8] sm:$0xf]
    %v241 = vld [vmem:[%s1 + $0x1bc] sm:$0xf]
    %v242 = vld [vmem:[%s1 + $0x1c0] sm:$0xf]
    %v243 = vld [vmem:[%s1 + $0x1c4] sm:$0xf]
    %v244 = vld [vmem:[%s1 + $0x1c8] sm:$0xf]
    %v245 = vld [vmem:[%s1 + $0x1cc] sm:$0xf]
    %v246 = vld [vmem:[%s1 + $0x1d0] sm:$0xf]
    %v247 = vld [vmem:[%s1 + $0x1d4] sm:$0xf]
    %v248 = vld [vmem:[%s1 + $0x1d8] sm:$0xf]
    %v249 = vld [vmem:[%s1 + $0x1dc] sm:$0xf]
    %v250 = vld [vmem:[%s1 + $0x1e0] sm:$0xf]
    %v251 = vld [vmem:[%s1 + $0x1e4] sm:$0xf]
    %v252 = vld [vmem:[%s1 + $0x1e8] sm:$0xf]
    %v253 = vld [vmem:[%s1 + $0x1ec] sm:$0xf]
    %v254 = vld [vmem:[%s1 + $0x1f0] sm:$0xf]
    %v255 = vld [vmem:[%s1 + $0x1f4] sm:$0xf]
    %v256 = vld [vmem:[%s1 + $0x1f8] sm:$0xf]
    %v257 = vld [vmem:[%s1 + $0x1fc] sm:$0xf]
    %v258 = vld [vmem:[%s2] sm:$0x1]
    %v260 = vperm.slane %v258, 0
    %v390 = vunpack.c.l.b16 %v130
    %v391 = vunpack.c.l.b16 %v131
    %v392 = vunpack.c.l.b16 %v132
    %v393 = vunpack.c.l.b16 %v133
    %v394 = vunpack.c.l.b16 %v134
    %v395 = vunpack.c.l.b16 %v135
    %v396 = vunpack.c.l.b16 %v136
    %v397 = vunpack.c.l.b16 %v137
    %v398 = vunpack.c.l.b16 %v138
    %v399 = vunpack.c.l.b16 %v139
    %v400 = vunpack.c.l.b16 %v140
    %v401 = vunpack.c.l.b16 %v141
    %v402 = vunpack.c.l.b16 %v142
    %v403 = vunpack.c.l.b16 %v143
    %v404 = vunpack.c.l.b16 %v144
    %v405 = vunpack.c.l.b16 %v145
    %v406 = vunpack.c.l.b16 %v146
    %v407 = vunpack.c.l.b16 %v147
    %v408 = vunpack.c.l.b16 %v148
    %v409 = vunpack.c.l.b16 %v149
    %v410 = vunpack.c.l.b16 %v150
    %v411 = vunpack.c.l.b16 %v151
    %v412 = vunpack.c.l.b16 %v152
    %v413 = vunpack.c.l.b16 %v153
    %v414 = vunpack.c.l.b16 %v154
    %v415 = vunpack.c.l.b16 %v155
    %v416 = vunpack.c.l.b16 %v156
    %v417 = vunpack.c.l.b16 %v157
    %v418 = vunpack.c.l.b16 %v158
    %v419 = vunpack.c.l.b16 %v159
    %v420 = vunpack.c.l.b16 %v160
    %v421 = vunpack.c.l.b16 %v161
    %v422 = vunpack.c.l.b16 %v162
    %v423 = vunpack.c.l.b16 %v163
    %v424 = vunpack.c.l.b16 %v164
    %v425 = vunpack.c.l.b16 %v165
    %v426 = vunpack.c.l.b16 %v166
    %v427 = vunpack.c.l.b16 %v167
    %v428 = vunpack.c.l.b16 %v168
    %v429 = vunpack.c.l.b16 %v169
    %v430 = vunpack.c.l.b16 %v170
    %v431 = vunpack.c.l.b16 %v171
    %v432 = vunpack.c.l.b16 %v172
    %v433 = vunpack.c.l.b16 %v173
    %v434 = vunpack.c.l.b16 %v174
    %v435 = vunpack.c.l.b16 %v175
    %v436 = vunpack.c.l.b16 %v176
    %v437 = vunpack.c.l.b16 %v177
    %v438 = vunpack.c.l.b16 %v178
    %v439 = vunpack.c.l.b16 %v179
    %v440 = vunpack.c.l.b16 %v180
    %v441 = vunpack.c.l.b16 %v181
    %v442 = vunpack.c.l.b16 %v182
    %v443 = vunpack.c.l.b16 %v183
    %v444 = vunpack.c.l.b16 %v184
    %v445 = vunpack.c.l.b16 %v185
    %v446 = vunpack.c.l.b16 %v186
    %v447 = vunpack.c.l.b16 %v187
    %v448 = vunpack.c.l.b16 %v188
    %v449 = vunpack.c.l.b16 %v189
    %v450 = vunpack.c.l.b16 %v190
    %v451 = vunpack.c.l.b16 %v191
    %v452 = vunpack.c.l.b16 %v192
    %v453 = vunpack.c.l.b16 %v193
    %v454 = vunpack.c.l.b16 %v194
    %v455 = vunpack.c.l.b16 %v195
    %v456 = vunpack.c.l.b16 %v196
    %v457 = vunpack.c.l.b16 %v197
    %v458 = vunpack.c.l.b16 %v198
    %v459 = vunpack.c.l.b16 %v199
    %v460 = vunpack.c.l.b16 %v200
    %v461 = vunpack.c.l.b16 %v201
    %v462 = vunpack.c.l.b16 %v202
    %v463 = vunpack.c.l.b16 %v203
    %v464 = vunpack.c.l.b16 %v204
    %v465 = vunpack.c.l.b16 %v205
    %v466 = vunpack.c.l.b16 %v206
    %v467 = vunpack.c.l.b16 %v207
    %v468 = vunpack.c.l.b16 %v208
    %v469 = vunpack.c.l.b16 %v209
    %v470 = vunpack.c.l.b16 %v210
    %v471 = vunpack.c.l.b16 %v211
    %v472 = vunpack.c.l.b16 %v212
    %v473 = vunpack.c.l.b16 %v213
    %v474 = vunpack.c.l.b16 %v214
    %v475 = vunpack.c.l.b16 %v215
    %v476 = vunpack.c.l.b16 %v216
    %v477 = vunpack.c.l.b16 %v217
    %v478 = vunpack.c.l.b16 %v218
    %v479 = vunpack.c.l.b16 %v219
    %v480 = vunpack.c.l.b16 %v220
    %v481 = vunpack.c.l.b16 %v221
    %v482 = vunpack.c.l.b16 %v222
    %v483 = vunpack.c.l.b16 %v223
    %v484 = vunpack.c.l.b16 %v224
    %v485 = vunpack.c.l.b16 %v225
    %v486 = vunpack.c.l.b16 %v226
    %v487 = vunpack.c.l.b16 %v227
    %v488 = vunpack.c.l.b16 %v228
    %v489 = vunpack.c.l.b16 %v229
    %v490 = vunpack.c.l.b16 %v230
    %v491 = vunpack.c.l.b16 %v231
    %v492 = vunpack.c.l.b16 %v232
    %v493 = vunpack.c.l.b16 %v233
    %v494 = vunpack.c.l.b16 %v234
    %v495 = vunpack.c.l.b16 %v235
    %v496 = vunpack.c.l.b16 %v236
    %v497 = vunpack.c.l.b16 %v237
    %v498 = vunpack.c.l.b16 %v238
    %v499 = vunpack.c.l.b16 %v239
    %v500 = vunpack.c.l.b16 %v240
    %v501 = vunpack.c.l.b16 %v241
    %v502 = vunpack.c.l.b16 %v242
    %v503 = vunpack.c.l.b16 %v243
    %v504 = vunpack.c.l.b16 %v244
    %v505 = vunpack.c.l.b16 %v245
    %v506 = vunpack.c.l.b16 %v246
    %v507 = vunpack.c.l.b16 %v247
    %v508 = vunpack.c.l.b16 %v248
    %v509 = vunpack.c.l.b16 %v249
    %v510 = vunpack.c.l.b16 %v250
    %v511 = vunpack.c.l.b16 %v251
    %v512 = vunpack.c.l.b16 %v252
    %v513 = vunpack.c.l.b16 %v253
    %v514 = vunpack.c.l.b16 %v254
    %v515 = vunpack.c.l.b16 %v255
    %v516 = vunpack.c.l.b16 %v256
    %v517 = vunpack.c.l.b16 %v257
    %v518 = vpack.c.b16 %v391, %v390
    %v519 = vpack.c.b16 %v393, %v392
    %v520 = vpack.c.b16 %v395, %v394
    %v521 = vpack.c.b16 %v397, %v396
    %v522 = vpack.c.b16 %v399, %v398
    %v523 = vpack.c.b16 %v401, %v400
    %v524 = vpack.c.b16 %v403, %v402
    %v525 = vpack.c.b16 %v405, %v404
    %v526 = vpack.c.b16 %v407, %v406
    %v527 = vpack.c.b16 %v409, %v408
    %v528 = vpack.c.b16 %v411, %v410
    %v529 = vpack.c.b16 %v413, %v412
    %v530 = vpack.c.b16 %v415, %v414
    %v531 = vpack.c.b16 %v417, %v416
    %v532 = vpack.c.b16 %v419, %v418
    %v533 = vpack.c.b16 %v421, %v420
    %v534 = vpack.c.b16 %v423, %v422
    %v535 = vpack.c.b16 %v425, %v424
    %v536 = vpack.c.b16 %v427, %v426
    %v537 = vpack.c.b16 %v429, %v428
    %v538 = vpack.c.b16 %v431, %v430
    %v539 = vpack.c.b16 %v433, %v432
    %v540 = vpack.c.b16 %v435, %v434
    %v541 = vpack.c.b16 %v437, %v436
    %v542 = vpack.c.b16 %v439, %v438
    %v543 = vpack.c.b16 %v441, %v440
    %v544 = vpack.c.b16 %v443, %v442
    %v545 = vpack.c.b16 %v445, %v444
    %v546 = vpack.c.b16 %v447, %v446
    %v547 = vpack.c.b16 %v449, %v448
    %v548 = vpack.c.b16 %v451, %v450
    %v549 = vpack.c.b16 %v453, %v452
    %v550 = vpack.c.b16 %v455, %v454
    %v551 = vpack.c.b16 %v457, %v456
    %v552 = vpack.c.b16 %v459, %v458
    %v553 = vpack.c.b16 %v461, %v460
    %v554 = vpack.c.b16 %v463, %v462
    %v555 = vpack.c.b16 %v465, %v464
    %v556 = vpack.c.b16 %v467, %v466
    %v557 = vpack.c.b16 %v469, %v468
    %v558 = vpack.c.b16 %v471, %v470
    %v559 = vpack.c.b16 %v473, %v472
    %v560 = vpack.c.b16 %v475, %v474
    %v561 = vpack.c.b16 %v477, %v476
    %v562 = vpack.c.b16 %v479, %v478
    %v563 = vpack.c.b16 %v481, %v480
    %v564 = vpack.c.b16 %v483, %v482
    %v565 = vpack.c.b16 %v485, %v484
    %v566 = vpack.c.b16 %v487, %v486
    %v567 = vpack.c.b16 %v489, %v488
    %v568 = vpack.c.b16 %v491, %v490
    %v569 = vpack.c.b16 %v493, %v492
    %v570 = vpack.c.b16 %v495, %v494
    %v571 = vpack.c.b16 %v497, %v496
    %v572 = vpack.c.b16 %v499, %v498
    %v573 = vpack.c.b16 %v501, %v500
    %v574 = vpack.c.b16 %v503, %v502
    %v575 = vpack.c.b16 %v505, %v504
    %v576 = vpack.c.b16 %v507, %v506
    %v577 = vpack.c.b16 %v509, %v508
    %v578 = vpack.c.b16 %v511, %v510
    %v579 = vpack.c.b16 %v513, %v512
    %v580 = vpack.c.b16 %v515, %v514
    %v581 = vpack.c.b16 %v517, %v516
    %646 = vmatpush.bf16.msra.mxu0 %v525
    %647 = vmatpush.bf16.msra.mxu0 %v524
    %648 = vmatpush.bf16.msra.mxu0 %v523
    %649 = vmatpush.bf16.msra.mxu0 %v522
    %650 = vmatpush.bf16.msra.mxu0 %v521
    %651 = vmatpush.bf16.msra.mxu0 %v520
    %652 = vmatpush.bf16.msra.mxu0 %v519
    %653 = vmatpush.bf16.msra.mxu0 %v518
    %654 = vmatmul.bf16.gmra.mxu0 %v122
    %v655 = vpop.f32.mrf.mxu0
    %v656 = vadd.f32 %v260, %v655
    %v657 = vpop.f32.mrf.mxu0
    %658 = vdwg.mxu0
    %659 = vmatpush.bf16.msra.mxu0 %v533
    %660 = vmatpush.bf16.msra.mxu0 %v532
    %661 = vmatpush.bf16.msra.mxu0 %v531
    %662 = vmatpush.bf16.msra.mxu0 %v530
    %663 = vmatpush.bf16.msra.mxu0 %v529
    %664 = vmatpush.bf16.msra.mxu0 %v528
    %665 = vmatpush.bf16.msra.mxu0 %v527
    %666 = vmatpush.bf16.msra.mxu0 %v526
    %667 = vmatmul.bf16.gmra.mxu0 %v123
    %v668 = vpop.f32.mrf.mxu0
    %v669 = vadd.f32 %v656, %v668
    %v670 = vpop.f32.mrf.mxu0
    %671 = vdwg.mxu0
    %672 = vmatpush.bf16.msra.mxu0 %v541
    %673 = vmatpush.bf16.msra.mxu0 %v540
    %674 = vmatpush.bf16.msra.mxu0 %v539
    %675 = vmatpush.bf16.msra.mxu0 %v538
    %676 = vmatpush.bf16.msra.mxu0 %v537
    %677 = vmatpush.bf16.msra.mxu0 %v536
    %678 = vmatpush.bf16.msra.mxu0 %v535
    %679 = vmatpush.bf16.msra.mxu0 %v534
    %680 = vmatmul.bf16.gmra.mxu0 %v124
    %v681 = vpop.f32.mrf.mxu0
    %v682 = vadd.f32 %v669, %v681
    %v683 = vpop.f32.mrf.mxu0
    %684 = vdwg.mxu0
    %685 = vmatpush.bf16.msra.mxu0 %v549
    %686 = vmatpush.bf16.msra.mxu0 %v548
    %687 = vmatpush.bf16.msra.mxu0 %v547
    %688 = vmatpush.bf16.msra.mxu0 %v546
    %689 = vmatpush.bf16.msra.mxu0 %v545
    %690 = vmatpush.bf16.msra.mxu0 %v544
    %691 = vmatpush.bf16.msra.mxu0 %v543
    %692 = vmatpush.bf16.msra.mxu0 %v542
    %693 = vmatmul.bf16.gmra.mxu0 %v125
    %v694 = vpop.f32.mrf.mxu0
    %v695 = vadd.f32 %v682, %v694
    %v696 = vpop.f32.mrf.mxu0
    %697 = vdwg.mxu0
    %698 = vmatpush.bf16.msra.mxu0 %v557
    %699 = vmatpush.bf16.msra.mxu0 %v556
    %700 = vmatpush.bf16.msra.mxu0 %v555
    %701 = vmatpush.bf16.msra.mxu0 %v554
    %702 = vmatpush.bf16.msra.mxu0 %v553
    %703 = vmatpush.bf16.msra.mxu0 %v552
    %704 = vmatpush.bf16.msra.mxu0 %v551
    %705 = vmatpush.bf16.msra.mxu0 %v550
    %706 = vmatmul.bf16.gmra.mxu0 %v126
    %v707 = vpop.f32.mrf.mxu0
    %v708 = vadd.f32 %v695, %v707
    %v709 = vpop.f32.mrf.mxu0
    %710 = vdwg.mxu0
    %711 = vmatpush.bf16.msra.mxu0 %v565
    %712 = vmatpush.bf16.msra.mxu0 %v564
    %713 = vmatpush.bf16.msra.mxu0 %v563
    %714 = vmatpush.bf16.msra.mxu0 %v562
    %715 = vmatpush.bf16.msra.mxu0 %v561
    %716 = vmatpush.bf16.msra.mxu0 %v560
    %717 = vmatpush.bf16.msra.mxu0 %v559
    %718 = vmatpush.bf16.msra.mxu0 %v558
    %719 = vmatmul.bf16.gmra.mxu0 %v127
    %v720 = vpop.f32.mrf.mxu0
    %v721 = vadd.f32 %v708, %v720
    %v722 = vpop.f32.mrf.mxu0
    %723 = vdwg.mxu0
    %724 = vmatpush.bf16.msra.mxu0 %v573
    %725 = vmatpush.bf16.msra.mxu0 %v572
    %726 = vmatpush.bf16.msra.mxu0 %v571
    %727 = vmatpush.bf16.msra.mxu0 %v570
    %728 = vmatpush.bf16.msra.mxu0 %v569
    %729 = vmatpush.bf16.msra.mxu0 %v568
    %730 = vmatpush.bf16.msra.mxu0 %v567
    %731 = vmatpush.bf16.msra.mxu0 %v566
    %732 = vmatmul.bf16.gmra.mxu0 %v128
    %v733 = vpop.f32.mrf.mxu0
    %v734 = vadd.f32 %v721, %v733
    %v735 = vpop.f32.mrf.mxu0
    %736 = vdwg.mxu0
    %737 = vmatpush.bf16.msra.mxu0 %v581
    %738 = vmatpush.bf16.msra.mxu0 %v580
    %739 = vmatpush.bf16.msra.mxu0 %v579
    %740 = vmatpush.bf16.msra.mxu0 %v578
    %741 = vmatpush.bf16.msra.mxu0 %v577
    %742 = vmatpush.bf16.msra.mxu0 %v576
    %743 = vmatpush.bf16.msra.mxu0 %v575
    %744 = vmatpush.bf16.msra.mxu0 %v574
    %745 = vmatmul.bf16.gmra.mxu0 %v129
    %v746 = vpop.f32.mrf.mxu0
    %v747 = vadd.f32 %v734, %v746
    %v748 = vpop.f32.mrf.mxu0
    %749 = vdwg.mxu0
    %v750 = vpack.c.bf16 %v747, %v747
    %v751 = vld [vmem:[#allocation2] sm:$0xf]
    %v752 = vld [vmem:[#allocation2 + $0x4] sm:$0xf]
    %v753 = vld [vmem:[#allocation2 + $0x8] sm:$0xf]
    %v754 = vld [vmem:[#allocation2 + $0xc] sm:$0xf]
    %v755 = vld [vmem:[#allocation2 + $0x10] sm:$0xf]
    %v756 = vld [vmem:[#allocation2 + $0x14] sm:$0xf]
    %v757 = vld [vmem:[#allocation2 + $0x18] sm:$0xf]
    %v758 = vld [vmem:[#allocation2 + $0x1c] sm:$0xf]
    %v759 = vld [vmem:[#allocation2 + $0x20] sm:$0xf]
    %v760 = vld [vmem:[#allocation2 + $0x24] sm:$0xf]
    %v761 = vld [vmem:[#allocation2 + $0x28] sm:$0xf]
    %v762 = vld [vmem:[#allocation2 + $0x2c] sm:$0xf]
    %v763 = vld [vmem:[#allocation2 + $0x30] sm:$0xf]
    %v764 = vld [vmem:[#allocation2 + $0x34] sm:$0xf]
    %v765 = vld [vmem:[#allocation2 + $0x38] sm:$0xf]
    %v766 = vld [vmem:[#allocation2 + $0x3c] sm:$0xf]
    %v767 = vld [vmem:[%s4] sm:$0x1]
    %v769 = vperm.slane %v767, 0
    %v787 = vunpack.c.l.b16 %v751
    %v788 = vunpack.c.l.b16 %v752
    %v789 = vunpack.c.l.b16 %v753
    %v790 = vunpack.c.l.b16 %v754
    %v791 = vunpack.c.l.b16 %v755
    %v792 = vunpack.c.l.b16 %v756
    %v793 = vunpack.c.l.b16 %v757
    %v794 = vunpack.c.l.b16 %v758
    %v795 = vunpack.c.l.b16 %v759
    %v796 = vunpack.c.l.b16 %v760
    %v797 = vunpack.c.l.b16 %v761
    %v798 = vunpack.c.l.b16 %v762
    %v799 = vunpack.c.l.b16 %v763
    %v800 = vunpack.c.l.b16 %v764
    %v801 = vunpack.c.l.b16 %v765
    %v802 = vunpack.c.l.b16 %v766
    %v803 = vpack.c.b16 %v788, %v787
    %v804 = vpack.c.b16 %v790, %v789
    %v805 = vpack.c.b16 %v792, %v791
    %v806 = vpack.c.b16 %v794, %v793
    %v807 = vpack.c.b16 %v796, %v795
    %v808 = vpack.c.b16 %v798, %v797
    %v809 = vpack.c.b16 %v800, %v799
    %v810 = vpack.c.b16 %v802, %v801
    %819 = vmatpush.bf16.msra.mxu0 %v810
    %820 = vmatpush.bf16.msra.mxu0 %v809
    %821 = vmatpush.bf16.msra.mxu0 %v808
    %822 = vmatpush.bf16.msra.mxu0 %v807
    %823 = vmatpush.bf16.msra.mxu0 %v806
    %824 = vmatpush.bf16.msra.mxu0 %v805
    %825 = vmatpush.bf16.msra.mxu0 %v804
    %826 = vmatpush.bf16.msra.mxu0 %v803
    %827 = vmatmul.bf16.gmra.mxu0 %v750
    %v828 = vpop.f32.mrf.mxu0
    %v829 = vadd.f32 %v769, %v828
    %v830 = vpop.f32.mrf.mxu0
    %831 = vdwg.mxu0
    %v832 = vpack.c.bf16 %v829, %v829
    %v833 = vld [vmem:[#allocation5] sm:$0xf]
    %v834 = vld [vmem:[#allocation5 + $0x4] sm:$0xf]
    %v835 = vld [vmem:[#allocation5 + $0x8] sm:$0xf]
    %v836 = vld [vmem:[#allocation5 + $0xc] sm:$0xf]
    %v837 = vld [vmem:[#allocation5 + $0x10] sm:$0xf]
    %v838 = vld [vmem:[#allocation5 + $0x14] sm:$0xf]
    %v839 = vld [vmem:[#allocation5 + $0x18] sm:$0xf]
    %v840 = vld [vmem:[#allocation5 + $0x1c] sm:$0xf]
    %v841 = vld [vmem:[#allocation5 + $0x20] sm:$0xf]
    %v842 = vld [vmem:[#allocation5 + $0x24] sm:$0xf]
    %v843 = vld [vmem:[#allocation5 + $0x28] sm:$0xf]
    %v844 = vld [vmem:[#allocation5 + $0x2c] sm:$0xf]
    %v845 = vld [vmem:[#allocation5 + $0x30] sm:$0xf]
    %v846 = vld [vmem:[#allocation5 + $0x34] sm:$0xf]
    %v847 = vld [vmem:[#allocation5 + $0x38] sm:$0xf]
    %v848 = vld [vmem:[#allocation5 + $0x3c] sm:$0xf]
    %v849 = vld [vmem:[%s6] sm:$0x1]
    %v851 = vperm.slane %v849, 0
    %v869 = vunpack.c.l.b16 %v833
    %v870 = vunpack.c.l.b16 %v834
    %v871 = vunpack.c.l.b16 %v835
    %v872 = vunpack.c.l.b16 %v836
    %v873 = vunpack.c.l.b16 %v837
    %v874 = vunpack.c.l.b16 %v838
    %v875 = vunpack.c.l.b16 %v839
    %v876 = vunpack.c.l.b16 %v840
    %v877 = vunpack.c.l.b16 %v841
    %v878 = vunpack.c.l.b16 %v842
    %v879 = vunpack.c.l.b16 %v843
    %v880 = vunpack.c.l.b16 %v844
    %v881 = vunpack.c.l.b16 %v845
    %v882 = vunpack.c.l.b16 %v846
    %v883 = vunpack.c.l.b16 %v847
    %v884 = vunpack.c.l.b16 %v848
    %v885 = vpack.c.b16 %v870, %v869
    %v886 = vpack.c.b16 %v872, %v871
    %v887 = vpack.c.b16 %v874, %v873
    %v888 = vpack.c.b16 %v876, %v875
    %v889 = vpack.c.b16 %v878, %v877
    %v890 = vpack.c.b16 %v880, %v879
    %v891 = vpack.c.b16 %v882, %v881
    %v892 = vpack.c.b16 %v884, %v883
    %901 = vmatpush.bf16.msra.mxu0 %v892
    %902 = vmatpush.bf16.msra.mxu0 %v891
    %903 = vmatpush.bf16.msra.mxu0 %v890
    %904 = vmatpush.bf16.msra.mxu0 %v889
    %905 = vmatpush.bf16.msra.mxu0 %v888
    %906 = vmatpush.bf16.msra.mxu0 %v887
    %907 = vmatpush.bf16.msra.mxu0 %v886
    %908 = vmatpush.bf16.msra.mxu0 %v885
    %909 = vmatmul.bf16.gmra.mxu0 %v832
    %v910 = vpop.f32.mrf.mxu0
    %v911 = vadd.f32 %v851, %v910
    %v912 = vpop.f32.mrf.mxu0
    %913 = vdwg.mxu0
    %v914 = vadd.f32 %v747, %v911
    %v915 = vld [vmem:[%s7] sm:$0x1]
    %v916 = vld [vmem:[%s8] sm:$0x1]
    %917 = vadd.xlane.f32.xlu0 %v914
    %v918 = vpop.xlane.xlu0 %917
    %v919 = vrcp.pop 128.0
    %v920 = vmul.f32 128.0, %v919
    %v921 = vsub.f32 1.0, %v920
    %v922 = vmul.f32 %v919, %v921
    %v923 = vadd.f32 %v919, %v922
    %vm924 = vweird.f32 %v919
    %v925 = vsel %vm924, %v919, %v923
    %v926 = vmul.f32 %v918, %v925
    %v927 = vsub.f32 %v914, %v926
    %v928 = vmul.f32 %v927, %v927
    %929 = vadd.xlane.f32.xlu0 %v928
    %v930 = vpop.xlane.xlu0 %929
    %v931 = vmul.f32 %v930, %v925
    %v932 = vadd.f32 %v931, 1e-05
    %v933 = vrsqrt.pop %v932
    %v934 = vmul.f32 %v933, %v932
    %v935 = vmul.f32 %v934, %v933
    %v936 = vmul.f32 0.5, %v935
    %v937 = vsub.f32 1.5, %v936
    %v938 = vmul.f32 %v933, %v937
    %vm939 = vweird.f32 %v932
    %vm940 = vweird.f32 %v933
    %vm941 = vmor %vm939, %vm940
    %v942 = vsel %vm941, %v933, %v938
    %v943 = vmul.f32 %v927, %v942
    %v945 = vperm.slane %v915, 0
    %v947 = vmul.f32 %v943, %v945
    %v949 = vperm.slane %v916, 0
    %v951 = vadd.f32 %v947, %v949
    %v952 = vpack.c.bf16 %v951, %v951
    %v953 = vld [vmem:[#allocation7] sm:$0xff]
    %v954 = vld [vmem:[#allocation7 + $0x8] sm:$0xff]
    %v955 = vld [vmem:[#allocation7 + $0x10] sm:$0xff]
    %v956 = vld [vmem:[#allocation7 + $0x18] sm:$0xff]
    %v957 = vld [vmem:[#allocation7 + $0x20] sm:$0xff]
    %v958 = vld [vmem:[#allocation7 + $0x28] sm:$0xff]
    %v959 = vld [vmem:[#allocation7 + $0x30] sm:$0xff]
    %v960 = vld [vmem:[#allocation7 + $0x38] sm:$0xff]
    %v961 = vld [vmem:[#allocation7 + $0x40] sm:$0xff]
    %v962 = vld [vmem:[#allocation7 + $0x48] sm:$0xff]
    %v963 = vld [vmem:[#allocation7 + $0x50] sm:$0xff]
    %v964 = vld [vmem:[#allocation7 + $0x58] sm:$0xff]
    %v965 = vld [vmem:[#allocation7 + $0x60] sm:$0xff]
    %v966 = vld [vmem:[#allocation7 + $0x68] sm:$0xff]
    %v967 = vld [vmem:[#allocation7 + $0x70] sm:$0xff]
    %v968 = vld [vmem:[#allocation7 + $0x78] sm:$0xff]
    %v969 = vld [vmem:[#allocation7 + $0x80] sm:$0xff]
    %v970 = vld [vmem:[#allocation7 + $0x88] sm:$0xff]
    %v971 = vld [vmem:[#allocation7 + $0x90] sm:$0xff]
    %v972 = vld [vmem:[#allocation7 + $0x98] sm:$0xff]
    %v973 = vld [vmem:[#allocation7 + $0xa0] sm:$0xff]
    %v974 = vld [vmem:[#allocation7 + $0xa8] sm:$0xff]
    %v975 = vld [vmem:[#allocation7 + $0xb0] sm:$0xff]
    %v976 = vld [vmem:[#allocation7 + $0xb8] sm:$0xff]
    %v977 = vld [vmem:[#allocation7 + $0xc0] sm:$0xff]
    %v978 = vld [vmem:[#allocation7 + $0xc8] sm:$0xff]
    %v979 = vld [vmem:[#allocation7 + $0xd0] sm:$0xff]
    %v980 = vld [vmem:[#allocation7 + $0xd8] sm:$0xff]
    %v981 = vld [vmem:[#allocation7 + $0xe0] sm:$0xff]
    %v982 = vld [vmem:[#allocation7 + $0xe8] sm:$0xff]
    %v983 = vld [vmem:[#allocation7 + $0xf0] sm:$0xff]
    %v984 = vld [vmem:[#allocation7 + $0xf8] sm:$0xff]
    %v985 = vld [vmem:[#allocation7 + $0x100] sm:$0xff]
    %v986 = vld [vmem:[#allocation7 + $0x108] sm:$0xff]
    %v987 = vld [vmem:[#allocation7 + $0x110] sm:$0xff]
    %v988 = vld [vmem:[#allocation7 + $0x118] sm:$0xff]
    %v989 = vld [vmem:[#allocation7 + $0x120] sm:$0xff]
    %v990 = vld [vmem:[#allocation7 + $0x128] sm:$0xff]
    %v991 = vld [vmem:[#allocation7 + $0x130] sm:$0xff]
    %v992 = vld [vmem:[#allocation7 + $0x138] sm:$0xff]
    %v993 = vld [vmem:[#allocation7 + $0x140] sm:$0xff]
    %v994 = vld [vmem:[#allocation7 + $0x148] sm:$0xff]
    %v995 = vld [vmem:[#allocation7 + $0x150] sm:$0xff]
    %v996 = vld [vmem:[#allocation7 + $0x158] sm:$0xff]
    %v997 = vld [vmem:[#allocation7 + $0x160] sm:$0xff]
    %v998 = vld [vmem:[#allocation7 + $0x168] sm:$0xff]
    %v999 = vld [vmem:[#allocation7 + $0x170] sm:$0xff]
    %v1000 = vld [vmem:[#allocation7 + $0x178] sm:$0xff]
    %v1001 = vld [vmem:[#allocation7 + $0x180] sm:$0xff]
    %v1002 = vld [vmem:[#allocation7 + $0x188] sm:$0xff]
    %v1003 = vld [vmem:[#allocation7 + $0x190] sm:$0xff]
    %v1004 = vld [vmem:[#allocation7 + $0x198] sm:$0xff]
    %v1005 = vld [vmem:[#allocation7 + $0x1a0] sm:$0xff]
    %v1006 = vld [vmem:[#allocation7 + $0x1a8] sm:$0xff]
    %v1007 = vld [vmem:[#allocation7 + $0x1b0] sm:$0xff]
    %v1008 = vld [vmem:[#allocation7 + $0x1b8] sm:$0xff]
    %v1009 = vld [vmem:[#allocation7 + $0x1c0] sm:$0xff]
    %v1010 = vld [vmem:[#allocation7 + $0x1c8] sm:$0xff]
    %v1011 = vld [vmem:[#allocation7 + $0x1d0] sm:$0xff]
    %v1012 = vld [vmem:[#allocation7 + $0x1d8] sm:$0xff]
    %v1013 = vld [vmem:[#allocation7 + $0x1e0] sm:$0xff]
    %v1014 = vld [vmem:[#allocation7 + $0x1e8] sm:$0xff]
    %v1015 = vld [vmem:[#allocation7 + $0x1f0] sm:$0xff]
    %v1016 = vld [vmem:[#allocation7 + $0x1f8] sm:$0xff]
    %v1017 = vld [vmem:[#allocation7 + $0x200] sm:$0xff]
    %v1018 = vld [vmem:[#allocation7 + $0x208] sm:$0xff]
    %v1019 = vld [vmem:[#allocation7 + $0x210] sm:$0xff]
    %v1020 = vld [vmem:[#allocation7 + $0x218] sm:$0xff]
    %v1021 = vld [vmem:[#allocation7 + $0x220] sm:$0xff]
    %v1022 = vld [vmem:[#allocation7 + $0x228] sm:$0xff]
    %v1023 = vld [vmem:[#allocation7 + $0x230] sm:$0xff]
    %v1024 = vld [vmem:[#allocation7 + $0x238] sm:$0xff]
    %v1025 = vld [vmem:[#allocation7 + $0x240] sm:$0xff]
    %v1026 = vld [vmem:[#allocation7 + $0x248] sm:$0xff]
    %v1027 = vld [vmem:[#allocation7 + $0x250] sm:$0xff]
    %v1028 = vld [vmem:[#allocation7 + $0x258] sm:$0xff]
    %v1029 = vld [vmem:[#allocation7 + $0x260] sm:$0xff]
    %v1030 = vld [vmem:[#allocation7 + $0x268] sm:$0xff]
    %v1031 = vld [vmem:[#allocation7 + $0x270] sm:$0xff]
    %v1032 = vld [vmem:[#allocation7 + $0x278] sm:$0xff]
    %v1033 = vld [vmem:[#allocation7 + $0x280] sm:$0xff]
    %v1034 = vld [vmem:[#allocation7 + $0x288] sm:$0xff]
    %v1035 = vld [vmem:[#allocation7 + $0x290] sm:$0xff]
    %v1036 = vld [vmem:[#allocation7 + $0x298] sm:$0xff]
    %v1037 = vld [vmem:[#allocation7 + $0x2a0] sm:$0xff]
    %v1038 = vld [vmem:[#allocation7 + $0x2a8] sm:$0xff]
    %v1039 = vld [vmem:[#allocation7 + $0x2b0] sm:$0xff]
    %v1040 = vld [vmem:[#allocation7 + $0x2b8] sm:$0xff]
    %v1041 = vld [vmem:[#allocation7 + $0x2c0] sm:$0xff]
    %v1042 = vld [vmem:[#allocation7 + $0x2c8] sm:$0xff]
    %v1043 = vld [vmem:[#allocation7 + $0x2d0] sm:$0xff]
    %v1044 = vld [vmem:[#allocation7 + $0x2d8] sm:$0xff]
    %v1045 = vld [vmem:[#allocation7 + $0x2e0] sm:$0xff]
    %v1046 = vld [vmem:[#allocation7 + $0x2e8] sm:$0xff]
    %v1047 = vld [vmem:[#allocation7 + $0x2f0] sm:$0xff]
    %v1048 = vld [vmem:[#allocation7 + $0x2f8] sm:$0xff]
    %v1049 = vld [vmem:[#allocation7 + $0x300] sm:$0xff]
    %v1050 = vld [vmem:[#allocation7 + $0x308] sm:$0xff]
    %v1051 = vld [vmem:[#allocation7 + $0x310] sm:$0xff]
    %v1052 = vld [vmem:[#allocation7 + $0x318] sm:$0xff]
    %v1053 = vld [vmem:[#allocation7 + $0x320] sm:$0xff]
    %v1054 = vld [vmem:[#allocation7 + $0x328] sm:$0xff]
    %v1055 = vld [vmem:[#allocation7 + $0x330] sm:$0xff]
    %v1056 = vld [vmem:[#allocation7 + $0x338] sm:$0xff]
    %v1057 = vld [vmem:[#allocation7 + $0x340] sm:$0xff]
    %v1058 = vld [vmem:[#allocation7 + $0x348] sm:$0xff]
    %v1059 = vld [vmem:[#allocation7 + $0x350] sm:$0xff]
    %v1060 = vld [vmem:[#allocation7 + $0x358] sm:$0xff]
    %v1061 = vld [vmem:[#allocation7 + $0x360] sm:$0xff]
    %v1062 = vld [vmem:[#allocation7 + $0x368] sm:$0xff]
    %v1063 = vld [vmem:[#allocation7 + $0x370] sm:$0xff]
    %v1064 = vld [vmem:[#allocation7 + $0x378] sm:$0xff]
    %v1065 = vld [vmem:[#allocation7 + $0x380] sm:$0xff]
    %v1066 = vld [vmem:[#allocation7 + $0x388] sm:$0xff]
    %v1067 = vld [vmem:[#allocation7 + $0x390] sm:$0xff]
    %v1068 = vld [vmem:[#allocation7 + $0x398] sm:$0xff]
    %v1069 = vld [vmem:[#allocation7 + $0x3a0] sm:$0xff]
    %v1070 = vld [vmem:[#allocation7 + $0x3a8] sm:$0xff]
    %v1071 = vld [vmem:[#allocation7 + $0x3b0] sm:$0xff]
    %v1072 = vld [vmem:[#allocation7 + $0x3b8] sm:$0xff]
    %v1073 = vld [vmem:[#allocation7 + $0x3c0] sm:$0xff]
    %v1074 = vld [vmem:[#allocation7 + $0x3c8] sm:$0xff]
    %v1075 = vld [vmem:[#allocation7 + $0x3d0] sm:$0xff]
    %v1076 = vld [vmem:[#allocation7 + $0x3d8] sm:$0xff]
    %v1077 = vld [vmem:[#allocation7 + $0x3e0] sm:$0xff]
    %v1078 = vld [vmem:[#allocation7 + $0x3e8] sm:$0xff]
    %v1079 = vld [vmem:[#allocation7 + $0x3f0] sm:$0xff]
    %v1080 = vld [vmem:[#allocation7 + $0x3f8] sm:$0xff]
    %v1081 = vld [vmem:[%s10] sm:$0xff]
    %v1082 = vld [vmem:[%s10 + $0x8] sm:$0xff]
    %v1085 = vperm.slane %v1081, 0
    %v1086 = vperm.slane %v1081, 1
    %v1087 = vperm.slane %v1081, 2
    %v1088 = vperm.slane %v1081, 3
    %v1089 = vperm.slane %v1081, 4
    %v1090 = vperm.slane %v1081, 5
    %v1091 = vperm.slane %v1081, 6
    %v1092 = vperm.slane %v1081, 7
    %v1093 = vperm.slane %v1082, 0
    %v1094 = vperm.slane %v1082, 1
    %v1095 = vperm.slane %v1082, 2
    %v1096 = vperm.slane %v1082, 3
    %v1097 = vperm.slane %v1082, 4
    %v1098 = vperm.slane %v1082, 5
    %v1099 = vperm.slane %v1082, 6
    %v1100 = vperm.slane %v1082, 7
    %v1245 = vunpack.c.l.b16 %v953
    %v1246 = vunpack.c.h.b16 %v953
    %v1247 = vunpack.c.l.b16 %v954
    %v1248 = vunpack.c.h.b16 %v954
    %v1249 = vunpack.c.l.b16 %v955
    %v1250 = vunpack.c.h.b16 %v955
    %v1251 = vunpack.c.l.b16 %v956
    %v1252 = vunpack.c.h.b16 %v956
    %v1253 = vunpack.c.l.b16 %v957
    %v1254 = vunpack.c.h.b16 %v957
    %v1255 = vunpack.c.l.b16 %v958
    %v1256 = vunpack.c.h.b16 %v958
    %v1257 = vunpack.c.l.b16 %v959
    %v1258 = vunpack.c.h.b16 %v959
    %v1259 = vunpack.c.l.b16 %v960
    %v1260 = vunpack.c.h.b16 %v960
    %v1261 = vunpack.c.l.b16 %v961
    %v1262 = vunpack.c.h.b16 %v961
    %v1263 = vunpack.c.l.b16 %v962
    %v1264 = vunpack.c.h.b16 %v962
    %v1265 = vunpack.c.l.b16 %v963
    %v1266 = vunpack.c.h.b16 %v963
    %v1267 = vunpack.c.l.b16 %v964
    %v1268 = vunpack.c.h.b16 %v964
    %v1269 = vunpack.c.l.b16 %v965
    %v1270 = vunpack.c.h.b16 %v965
    %v1271 = vunpack.c.l.b16 %v966
    %v1272 = vunpack.c.h.b16 %v966
    %v1273 = vunpack.c.l.b16 %v967
    %v1274 = vunpack.c.h.b16 %v967
    %v1275 = vunpack.c.l.b16 %v968
    %v1276 = vunpack.c.h.b16 %v968
    %v1277 = vunpack.c.l.b16 %v969
    %v1278 = vunpack.c.h.b16 %v969
    %v1279 = vunpack.c.l.b16 %v970
    %v1280 = vunpack.c.h.b16 %v970
    %v1281 = vunpack.c.l.b16 %v971
    %v1282 = vunpack.c.h.b16 %v971
    %v1283 = vunpack.c.l.b16 %v972
    %v1284 = vunpack.c.h.b16 %v972
    %v1285 = vunpack.c.l.b16 %v973
    %v1286 = vunpack.c.h.b16 %v973
    %v1287 = vunpack.c.l.b16 %v974
    %v1288 = vunpack.c.h.b16 %v974
    %v1289 = vunpack.c.l.b16 %v975
    %v1290 = vunpack.c.h.b16 %v975
    %v1291 = vunpack.c.l.b16 %v976
    %v1292 = vunpack.c.h.b16 %v976
    %v1293 = vunpack.c.l.b16 %v977
    %v1294 = vunpack.c.h.b16 %v977
    %v1295 = vunpack.c.l.b16 %v978
    %v1296 = vunpack.c.h.b16 %v978
    %v1297 = vunpack.c.l.b16 %v979
    %v1298 = vunpack.c.h.b16 %v979
    %v1299 = vunpack.c.l.b16 %v980
    %v1300 = vunpack.c.h.b16 %v980
    %v1301 = vunpack.c.l.b16 %v981
    %v1302 = vunpack.c.h.b16 %v981
    %v1303 = vunpack.c.l.b16 %v982
    %v1304 = vunpack.c.h.b16 %v982
    %v1305 = vunpack.c.l.b16 %v983
    %v1306 = vunpack.c.h.b16 %v983
    %v1307 = vunpack.c.l.b16 %v984
    %v1308 = vunpack.c.h.b16 %v984
    %v1309 = vunpack.c.l.b16 %v985
    %v1310 = vunpack.c.h.b16 %v985
    %v1311 = vunpack.c.l.b16 %v986
    %v1312 = vunpack.c.h.b16 %v986
    %v1313 = vunpack.c.l.b16 %v987
    %v1314 = vunpack.c.h.b16 %v987
    %v1315 = vunpack.c.l.b16 %v988
    %v1316 = vunpack.c.h.b16 %v988
    %v1317 = vunpack.c.l.b16 %v989
    %v1318 = vunpack.c.h.b16 %v989
    %v1319 = vunpack.c.l.b16 %v990
    %v1320 = vunpack.c.h.b16 %v990
    %v1321 = vunpack.c.l.b16 %v991
    %v1322 = vunpack.c.h.b16 %v991
    %v1323 = vunpack.c.l.b16 %v992
    %v1324 = vunpack.c.h.b16 %v992
    %v1325 = vunpack.c.l.b16 %v993
    %v1326 = vunpack.c.h.b16 %v993
    %v1327 = vunpack.c.l.b16 %v994
    %v1328 = vunpack.c.h.b16 %v994
    %v1329 = vunpack.c.l.b16 %v995
    %v1330 = vunpack.c.h.b16 %v995
    %v1331 = vunpack.c.l.b16 %v996
    %v1332 = vunpack.c.h.b16 %v996
    %v1333 = vunpack.c.l.b16 %v997
    %v1334 = vunpack.c.h.b16 %v997
    %v1335 = vunpack.c.l.b16 %v998
    %v1336 = vunpack.c.h.b16 %v998
    %v1337 = vunpack.c.l.b16 %v999
    %v1338 = vunpack.c.h.b16 %v999
    %v1339 = vunpack.c.l.b16 %v1000
    %v1340 = vunpack.c.h.b16 %v1000
    %v1341 = vunpack.c.l.b16 %v1001
    %v1342 = vunpack.c.h.b16 %v1001
    %v1343 = vunpack.c.l.b16 %v1002
    %v1344 = vunpack.c.h.b16 %v1002
    %v1345 = vunpack.c.l.b16 %v1003
    %v1346 = vunpack.c.h.b16 %v1003
    %v1347 = vunpack.c.l.b16 %v1004
    %v1348 = vunpack.c.h.b16 %v1004
    %v1349 = vunpack.c.l.b16 %v1005
    %v1350 = vunpack.c.h.b16 %v1005
    %v1351 = vunpack.c.l.b16 %v1006
    %v1352 = vunpack.c.h.b16 %v1006
    %v1353 = vunpack.c.l.b16 %v1007
    %v1354 = vunpack.c.h.b16 %v1007
    %v1355 = vunpack.c.l.b16 %v1008
    %v1356 = vunpack.c.h.b16 %v1008
    %v1357 = vunpack.c.l.b16 %v1009
    %v1358 = vunpack.c.h.b16 %v1009
    %v1359 = vunpack.c.l.b16 %v1010
    %v1360 = vunpack.c.h.b16 %v1010
    %v1361 = vunpack.c.l.b16 %v1011
    %v1362 = vunpack.c.h.b16 %v1011
    %v1363 = vunpack.c.l.b16 %v1012
    %v1364 = vunpack.c.h.b16 %v1012
    %v1365 = vunpack.c.l.b16 %v1013
    %v1366 = vunpack.c.h.b16 %v1013
    %v1367 = vunpack.c.l.b16 %v1014
    %v1368 = vunpack.c.h.b16 %v1014
    %v1369 = vunpack.c.l.b16 %v1015
    %v1370 = vunpack.c.h.b16 %v1015
    %v1371 = vunpack.c.l.b16 %v1016
    %v1372 = vunpack.c.h.b16 %v1016
    %v1373 = vunpack.c.l.b16 %v1017
    %v1374 = vunpack.c.h.b16 %v1017
    %v1375 = vunpack.c.l.b16 %v1018
    %v1376 = vunpack.c.h.b16 %v1018
    %v1377 = vunpack.c.l.b16 %v1019
    %v1378 = vunpack.c.h.b16 %v1019
    %v1379 = vunpack.c.l.b16 %v1020
    %v1380 = vunpack.c.h.b16 %v1020
    %v1381 = vunpack.c.l.b16 %v1021
    %v1382 = vunpack.c.h.b16 %v1021
    %v1383 = vunpack.c.l.b16 %v1022
    %v1384 = vunpack.c.h.b16 %v1022
    %v1385 = vunpack.c.l.b16 %v1023
    %v1386 = vunpack.c.h.b16 %v1023
    %v1387 = vunpack.c.l.b16 %v1024
    %v1388 = vunpack.c.h.b16 %v1024
    %v1389 = vunpack.c.l.b16 %v1025
    %v1390 = vunpack.c.h.b16 %v1025
    %v1391 = vunpack.c.l.b16 %v1026
    %v1392 = vunpack.c.h.b16 %v1026
    %v1393 = vunpack.c.l.b16 %v1027
    %v1394 = vunpack.c.h.b16 %v1027
    %v1395 = vunpack.c.l.b16 %v1028
    %v1396 = vunpack.c.h.b16 %v1028
    %v1397 = vunpack.c.l.b16 %v1029
    %v1398 = vunpack.c.h.b16 %v1029
    %v1399 = vunpack.c.l.b16 %v1030
    %v1400 = vunpack.c.h.b16 %v1030
    %v1401 = vunpack.c.l.b16 %v1031
    %v1402 = vunpack.c.h.b16 %v1031
    %v1403 = vunpack.c.l.b16 %v1032
    %v1404 = vunpack.c.h.b16 %v1032
    %v1405 = vunpack.c.l.b16 %v1033
    %v1406 = vunpack.c.h.b16 %v1033
    %v1407 = vunpack.c.l.b16 %v1034
    %v1408 = vunpack.c.h.b16 %v1034
    %v1409 = vunpack.c.l.b16 %v1035
    %v1410 = vunpack.c.h.b16 %v1035
    %v1411 = vunpack.c.l.b16 %v1036
    %v1412 = vunpack.c.h.b16 %v1036
    %v1413 = vunpack.c.l.b16 %v1037
    %v1414 = vunpack.c.h.b16 %v1037
    %v1415 = vunpack.c.l.b16 %v1038
    %v1416 = vunpack.c.h.b16 %v1038
    %v1417 = vunpack.c.l.b16 %v1039
    %v1418 = vunpack.c.h.b16 %v1039
    %v1419 = vunpack.c.l.b16 %v1040
    %v1420 = vunpack.c.h.b16 %v1040
    %v1421 = vunpack.c.l.b16 %v1041
    %v1422 = vunpack.c.h.b16 %v1041
    %v1423 = vunpack.c.l.b16 %v1042
    %v1424 = vunpack.c.h.b16 %v1042
    %v1425 = vunpack.c.l.b16 %v1043
    %v1426 = vunpack.c.h.b16 %v1043
    %v1427 = vunpack.c.l.b16 %v1044
    %v1428 = vunpack.c.h.b16 %v1044
    %v1429 = vunpack.c.l.b16 %v1045
    %v1430 = vunpack.c.h.b16 %v1045
    %v1431 = vunpack.c.l.b16 %v1046
    %v1432 = vunpack.c.h.b16 %v1046
    %v1433 = vunpack.c.l.b16 %v1047
    %v1434 = vunpack.c.h.b16 %v1047
    %v1435 = vunpack.c.l.b16 %v1048
    %v1436 = vunpack.c.h.b16 %v1048
    %v1437 = vunpack.c.l.b16 %v1049
    %v1438 = vunpack.c.h.b16 %v1049
    %v1439 = vunpack.c.l.b16 %v1050
    %v1440 = vunpack.c.h.b16 %v1050
    %v1441 = vunpack.c.l.b16 %v1051
    %v1442 = vunpack.c.h.b16 %v1051
    %v1443 = vunpack.c.l.b16 %v1052
    %v1444 = vunpack.c.h.b16 %v1052
    %v1445 = vunpack.c.l.b16 %v1053
    %v1446 = vunpack.c.h.b16 %v1053
    %v1447 = vunpack.c.l.b16 %v1054
    %v1448 = vunpack.c.h.b16 %v1054
    %v1449 = vunpack.c.l.b16 %v1055
    %v1450 = vunpack.c.h.b16 %v1055
    %v1451 = vunpack.c.l.b16 %v1056
    %v1452 = vunpack.c.h.b16 %v1056
    %v1453 = vunpack.c.l.b16 %v1057
    %v1454 = vunpack.c.h.b16 %v1057
    %v1455 = vunpack.c.l.b16 %v1058
    %v1456 = vunpack.c.h.b16 %v1058
    %v1457 = vunpack.c.l.b16 %v1059
    %v1458 = vunpack.c.h.b16 %v1059
    %v1459 = vunpack.c.l.b16 %v1060
    %v1460 = vunpack.c.h.b16 %v1060
    %v1461 = vunpack.c.l.b16 %v1061
    %v1462 = vunpack.c.h.b16 %v1061
    %v1463 = vunpack.c.l.b16 %v1062
    %v1464 = vunpack.c.h.b16 %v1062
    %v1465 = vunpack.c.l.b16 %v1063
    %v1466 = vunpack.c.h.b16 %v1063
    %v1467 = vunpack.c.l.b16 %v1064
    %v1468 = vunpack.c.h.b16 %v1064
    %v1469 = vunpack.c.l.b16 %v1065
    %v1470 = vunpack.c.h.b16 %v1065
    %v1471 = vunpack.c.l.b16 %v1066
    %v1472 = vunpack.c.h.b16 %v1066
    %v1473 = vunpack.c.l.b16 %v1067
    %v1474 = vunpack.c.h.b16 %v1067
    %v1475 = vunpack.c.l.b16 %v1068
    %v1476 = vunpack.c.h.b16 %v1068
    %v1477 = vunpack.c.l.b16 %v1069
    %v1478 = vunpack.c.h.b16 %v1069
    %v1479 = vunpack.c.l.b16 %v1070
    %v1480 = vunpack.c.h.b16 %v1070
    %v1481 = vunpack.c.l.b16 %v1071
    %v1482 = vunpack.c.h.b16 %v1071
    %v1483 = vunpack.c.l.b16 %v1072
    %v1484 = vunpack.c.h.b16 %v1072
    %v1485 = vunpack.c.l.b16 %v1073
    %v1486 = vunpack.c.h.b16 %v1073
    %v1487 = vunpack.c.l.b16 %v1074
    %v1488 = vunpack.c.h.b16 %v1074
    %v1489 = vunpack.c.l.b16 %v1075
    %v1490 = vunpack.c.h.b16 %v1075
    %v1491 = vunpack.c.l.b16 %v1076
    %v1492 = vunpack.c.h.b16 %v1076
    %v1493 = vunpack.c.l.b16 %v1077
    %v1494 = vunpack.c.h.b16 %v1077
    %v1495 = vunpack.c.l.b16 %v1078
    %v1496 = vunpack.c.h.b16 %v1078
    %v1497 = vunpack.c.l.b16 %v1079
    %v1498 = vunpack.c.h.b16 %v1079
    %v1499 = vunpack.c.l.b16 %v1080
    %v1500 = vunpack.c.h.b16 %v1080
    %v1501 = vpack.c.b16 %v1261, %v1245
    %v1502 = vpack.c.b16 %v1262, %v1246
    %v1503 = vpack.c.b16 %v1263, %v1247
    %v1504 = vpack.c.b16 %v1264, %v1248
    %v1505 = vpack.c.b16 %v1265, %v1249
    %v1506 = vpack.c.b16 %v1266, %v1250
    %v1507 = vpack.c.b16 %v1267, %v1251
    %v1508 = vpack.c.b16 %v1268, %v1252
    %v1509 = vpack.c.b16 %v1269, %v1253
    %v1510 = vpack.c.b16 %v1270, %v1254
    %v1511 = vpack.c.b16 %v1271, %v1255
    %v1512 = vpack.c.b16 %v1272, %v1256
    %v1513 = vpack.c.b16 %v1273, %v1257
    %v1514 = vpack.c.b16 %v1274, %v1258
    %v1515 = vpack.c.b16 %v1275, %v1259
    %v1516 = vpack.c.b16 %v1276, %v1260
    %v1517 = vpack.c.b16 %v1293, %v1277
    %v1518 = vpack.c.b16 %v1294, %v1278
    %v1519 = vpack.c.b16 %v1295, %v1279
    %v1520 = vpack.c.b16 %v1296, %v1280
    %v1521 = vpack.c.b16 %v1297, %v1281
    %v1522 = vpack.c.b16 %v1298, %v1282
    %v1523 = vpack.c.b16 %v1299, %v1283
    %v1524 = vpack.c.b16 %v1300, %v1284
    %v1525 = vpack.c.b16 %v1301, %v1285
    %v1526 = vpack.c.b16 %v1302, %v1286
    %v1527 = vpack.c.b16 %v1303, %v1287
    %v1528 = vpack.c.b16 %v1304, %v1288
    %v1529 = vpack.c.b16 %v1305, %v1289
    %v1530 = vpack.c.b16 %v1306, %v1290
    %v1531 = vpack.c.b16 %v1307, %v1291
    %v1532 = vpack.c.b16 %v1308, %v1292
    %v1533 = vpack.c.b16 %v1325, %v1309
    %v1534 = vpack.c.b16 %v1326, %v1310
    %v1535 = vpack.c.b16 %v1327, %v1311
    %v1536 = vpack.c.b16 %v1328, %v1312
    %v1537 = vpack.c.b16 %v1329, %v1313
    %v1538 = vpack.c.b16 %v1330, %v1314
    %v1539 = vpack.c.b16 %v1331, %v1315
    %v1540 = vpack.c.b16 %v1332, %v1316
    %v1541 = vpack.c.b16 %v1333, %v1317
    %v1542 = vpack.c.b16 %v1334, %v1318
    %v1543 = vpack.c.b16 %v1335, %v1319
    %v1544 = vpack.c.b16 %v1336, %v1320
    %v1545 = vpack.c.b16 %v1337, %v1321
    %v1546 = vpack.c.b16 %v1338, %v1322
    %v1547 = vpack.c.b16 %v1339, %v1323
    %v1548 = vpack.c.b16 %v1340, %v1324
    %v1549 = vpack.c.b16 %v1357, %v1341
    %v1550 = vpack.c.b16 %v1358, %v1342
    %v1551 = vpack.c.b16 %v1359, %v1343
    %v1552 = vpack.c.b16 %v1360, %v1344
    %v1553 = vpack.c.b16 %v1361, %v1345
    %v1554 = vpack.c.b16 %v1362, %v1346
    %v1555 = vpack.c.b16 %v1363, %v1347
    %v1556 = vpack.c.b16 %v1364, %v1348
    %v1557 = vpack.c.b16 %v1365, %v1349
    %v1558 = vpack.c.b16 %v1366, %v1350
    %v1559 = vpack.c.b16 %v1367, %v1351
    %v1560 = vpack.c.b16 %v1368, %v1352
    %v1561 = vpack.c.b16 %v1369, %v1353
    %v1562 = vpack.c.b16 %v1370, %v1354
    %v1563 = vpack.c.b16 %v1371, %v1355
    %v1564 = vpack.c.b16 %v1372, %v1356
    %v1565 = vpack.c.b16 %v1389, %v1373
    %v1566 = vpack.c.b16 %v1390, %v1374
    %v1567 = vpack.c.b16 %v1391, %v1375
    %v1568 = vpack.c.b16 %v1392, %v1376
    %v1569 = vpack.c.b16 %v1393, %v1377
    %v1570 = vpack.c.b16 %v1394, %v1378
    %v1571 = vpack.c.b16 %v1395, %v1379
    %v1572 = vpack.c.b16 %v1396, %v1380
    %v1573 = vpack.c.b16 %v1397, %v1381
    %v1574 = vpack.c.b16 %v1398, %v1382
    %v1575 = vpack.c.b16 %v1399, %v1383
    %v1576 = vpack.c.b16 %v1400, %v1384
    %v1577 = vpack.c.b16 %v1401, %v1385
    %v1578 = vpack.c.b16 %v1402, %v1386
    %v1579 = vpack.c.b16 %v1403, %v1387
    %v1580 = vpack.c.b16 %v1404, %v1388
    %v1581 = vpack.c.b16 %v1421, %v1405
    %v1582 = vpack.c.b16 %v1422, %v1406
    %v1583 = vpack.c.b16 %v1423, %v1407
    %v1584 = vpack.c.b16 %v1424, %v1408
    %v1585 = vpack.c.b16 %v1425, %v1409
    %v1586 = vpack.c.b16 %v1426, %v1410
    %v1587 = vpack.c.b16 %v1427, %v1411
    %v1588 = vpack.c.b16 %v1428, %v1412
    %v1589 = vpack.c.b16 %v1429, %v1413
    %v1590 = vpack.c.b16 %v1430, %v1414
    %v1591 = vpack.c.b16 %v1431, %v1415
    %v1592 = vpack.c.b16 %v1432, %v1416
    %v1593 = vpack.c.b16 %v1433, %v1417
    %v1594 = vpack.c.b16 %v1434, %v1418
    %v1595 = vpack.c.b16 %v1435, %v1419
    %v1596 = vpack.c.b16 %v1436, %v1420
    %v1597 = vpack.c.b16 %v1453, %v1437
    %v1598 = vpack.c.b16 %v1454, %v1438
    %v1599 = vpack.c.b16 %v1455, %v1439
    %v1600 = vpack.c.b16 %v1456, %v1440
    %v1601 = vpack.c.b16 %v1457, %v1441
    %v1602 = vpack.c.b16 %v1458, %v1442
    %v1603 = vpack.c.b16 %v1459, %v1443
    %v1604 = vpack.c.b16 %v1460, %v1444
    %v1605 = vpack.c.b16 %v1461, %v1445
    %v1606 = vpack.c.b16 %v1462, %v1446
    %v1607 = vpack.c.b16 %v1463, %v1447
    %v1608 = vpack.c.b16 %v1464, %v1448
    %v1609 = vpack.c.b16 %v1465, %v1449
    %v1610 = vpack.c.b16 %v1466, %v1450
    %v1611 = vpack.c.b16 %v1467, %v1451
    %v1612 = vpack.c.b16 %v1468, %v1452
    %v1613 = vpack.c.b16 %v1485, %v1469
    %v1614 = vpack.c.b16 %v1486, %v1470
    %v1615 = vpack.c.b16 %v1487, %v1471
    %v1616 = vpack.c.b16 %v1488, %v1472
    %v1617 = vpack.c.b16 %v1489, %v1473
    %v1618 = vpack.c.b16 %v1490, %v1474
    %v1619 = vpack.c.b16 %v1491, %v1475
    %v1620 = vpack.c.b16 %v1492, %v1476
    %v1621 = vpack.c.b16 %v1493, %v1477
    %v1622 = vpack.c.b16 %v1494, %v1478
    %v1623 = vpack.c.b16 %v1495, %v1479
    %v1624 = vpack.c.b16 %v1496, %v1480
    %v1625 = vpack.c.b16 %v1497, %v1481
    %v1626 = vpack.c.b16 %v1498, %v1482
    %v1627 = vpack.c.b16 %v1499, %v1483
    %v1628 = vpack.c.b16 %v1500, %v1484
    %1757 = vmatpush.bf16.msra.mxu0 %v1613
    %1758 = vmatpush.bf16.msra.mxu0 %v1597
    %1759 = vmatpush.bf16.msra.mxu0 %v1581
    %1760 = vmatpush.bf16.msra.mxu0 %v1565
    %1761 = vmatpush.bf16.msra.mxu0 %v1549
    %1762 = vmatpush.bf16.msra.mxu0 %v1533
    %1763 = vmatpush.bf16.msra.mxu0 %v1517
    %1764 = vmatpush.bf16.msra.mxu0 %v1501
    %1765 = vmatmul.bf16.gmra.mxu0 %v952
    %v1766 = vpop.f32.mrf.mxu0
    %v1767 = vadd.f32 %v1085, %v1766
    %v1768 = vpop.f32.mrf.mxu0
    %1769 = vdwg.mxu0
    %1770 = vmatpush.bf16.msra.mxu0 %v1614
    %1771 = vmatpush.bf16.msra.mxu0 %v1598
    %1772 = vmatpush.bf16.msra.mxu0 %v1582
    %1773 = vmatpush.bf16.msra.mxu0 %v1566
    %1774 = vmatpush.bf16.msra.mxu0 %v1550
    %1775 = vmatpush.bf16.msra.mxu0 %v1534
    %1776 = vmatpush.bf16.msra.mxu0 %v1518
    %1777 = vmatpush.bf16.msra.mxu0 %v1502
    %1778 = vmatmul.bf16.gmra.mxu0 %v952
    %v1779 = vpop.f32.mrf.mxu0
    %v1780 = vadd.f32 %v1086, %v1779
    %v1781 = vpop.f32.mrf.mxu0
    %1782 = vdwg.mxu0
    %1783 = vmatpush.bf16.msra.mxu0 %v1615
    %1784 = vmatpush.bf16.msra.mxu0 %v1599
    %1785 = vmatpush.bf16.msra.mxu0 %v1583
    %1786 = vmatpush.bf16.msra.mxu0 %v1567
    %1787 = vmatpush.bf16.msra.mxu0 %v1551
    %1788 = vmatpush.bf16.msra.mxu0 %v1535
    %1789 = vmatpush.bf16.msra.mxu0 %v1519
    %1790 = vmatpush.bf16.msra.mxu0 %v1503
    %1791 = vmatmul.bf16.gmra.mxu0 %v952
    %v1792 = vpop.f32.mrf.mxu0
    %v1793 = vadd.f32 %v1087, %v1792
    %v1794 = vpop.f32.mrf.mxu0
    %1795 = vdwg.mxu0
    %1796 = vmatpush.bf16.msra.mxu0 %v1616
    %1797 = vmatpush.bf16.msra.mxu0 %v1600
    %1798 = vmatpush.bf16.msra.mxu0 %v1584
    %1799 = vmatpush.bf16.msra.mxu0 %v1568
    %1800 = vmatpush.bf16.msra.mxu0 %v1552
    %1801 = vmatpush.bf16.msra.mxu0 %v1536
    %1802 = vmatpush.bf16.msra.mxu0 %v1520
    %1803 = vmatpush.bf16.msra.mxu0 %v1504
    %1804 = vmatmul.bf16.gmra.mxu0 %v952
    %v1805 = vpop.f32.mrf.mxu0
    %v1806 = vadd.f32 %v1088, %v1805
    %v1807 = vpop.f32.mrf.mxu0
    %1808 = vdwg.mxu0
    %1809 = vmatpush.bf16.msra.mxu0 %v1617
    %1810 = vmatpush.bf16.msra.mxu0 %v1601
    %1811 = vmatpush.bf16.msra.mxu0 %v1585
    %1812 = vmatpush.bf16.msra.mxu0 %v1569
    %1813 = vmatpush.bf16.msra.mxu0 %v1553
    %1814 = vmatpush.bf16.msra.mxu0 %v1537
    %1815 = vmatpush.bf16.msra.mxu0 %v1521
    %1816 = vmatpush.bf16.msra.mxu0 %v1505
    %1817 = vmatmul.bf16.gmra.mxu0 %v952
    %v1818 = vpop.f32.mrf.mxu0
    %v1819 = vadd.f32 %v1089, %v1818
    %v1820 = vpop.f32.mrf.mxu0
    %1821 = vdwg.mxu0
    %1822 = vmatpush.bf16.msra.mxu0 %v1618
    %1823 = vmatpush.bf16.msra.mxu0 %v1602
    %1824 = vmatpush.bf16.msra.mxu0 %v1586
    %1825 = vmatpush.bf16.msra.mxu0 %v1570
    %1826 = vmatpush.bf16.msra.mxu0 %v1554
    %1827 = vmatpush.bf16.msra.mxu0 %v1538
    %1828 = vmatpush.bf16.msra.mxu0 %v1522
    %1829 = vmatpush.bf16.msra.mxu0 %v1506
    %1830 = vmatmul.bf16.gmra.mxu0 %v952
    %v1831 = vpop.f32.mrf.mxu0
    %v1832 = vadd.f32 %v1090, %v1831
    %v1833 = vpop.f32.mrf.mxu0
    %1834 = vdwg.mxu0
    %1835 = vmatpush.bf16.msra.mxu0 %v1619
    %1836 = vmatpush.bf16.msra.mxu0 %v1603
    %1837 = vmatpush.bf16.msra.mxu0 %v1587
    %1838 = vmatpush.bf16.msra.mxu0 %v1571
    %1839 = vmatpush.bf16.msra.mxu0 %v1555
    %1840 = vmatpush.bf16.msra.mxu0 %v1539
    %1841 = vmatpush.bf16.msra.mxu0 %v1523
    %1842 = vmatpush.bf16.msra.mxu0 %v1507
    %1843 = vmatmul.bf16.gmra.mxu0 %v952
    %v1844 = vpop.f32.mrf.mxu0
    %v1845 = vadd.f32 %v1091, %v1844
    %v1846 = vpop.f32.mrf.mxu0
    %1847 = vdwg.mxu0
    %1848 = vmatpush.bf16.msra.mxu0 %v1620
    %1849 = vmatpush.bf16.msra.mxu0 %v1604
    %1850 = vmatpush.bf16.msra.mxu0 %v1588
    %1851 = vmatpush.bf16.msra.mxu0 %v1572
    %1852 = vmatpush.bf16.msra.mxu0 %v1556
    %1853 = vmatpush.bf16.msra.mxu0 %v1540
    %1854 = vmatpush.bf16.msra.mxu0 %v1524
    %1855 = vmatpush.bf16.msra.mxu0 %v1508
    %1856 = vmatmul.bf16.gmra.mxu0 %v952
    %v1857 = vpop.f32.mrf.mxu0
    %v1858 = vadd.f32 %v1092, %v1857
    %v1859 = vpop.f32.mrf.mxu0
    %1860 = vdwg.mxu0
    %1861 = vmatpush.bf16.msra.mxu0 %v1621
    %1862 = vmatpush.bf16.msra.mxu0 %v1605
    %1863 = vmatpush.bf16.msra.mxu0 %v1589
    %1864 = vmatpush.bf16.msra.mxu0 %v1573
    %1865 = vmatpush.bf16.msra.mxu0 %v1557
    %1866 = vmatpush.bf16.msra.mxu0 %v1541
    %1867 = vmatpush.bf16.msra.mxu0 %v1525
    %1868 = vmatpush.bf16.msra.mxu0 %v1509
    %1869 = vmatmul.bf16.gmra.mxu0 %v952
    %v1870 = vpop.f32.mrf.mxu0
    %v1871 = vadd.f32 %v1093, %v1870
    %v1872 = vpop.f32.mrf.mxu0
    %1873 = vdwg.mxu0
    %1874 = vmatpush.bf16.msra.mxu0 %v1622
    %1875 = vmatpush.bf16.msra.mxu0 %v1606
    %1876 = vmatpush.bf16.msra.mxu0 %v1590
    %1877 = vmatpush.bf16.msra.mxu0 %v1574
    %1878 = vmatpush.bf16.msra.mxu0 %v1558
    %1879 = vmatpush.bf16.msra.mxu0 %v1542
    %1880 = vmatpush.bf16.msra.mxu0 %v1526
    %1881 = vmatpush.bf16.msra.mxu0 %v1510
    %1882 = vmatmul.bf16.gmra.mxu0 %v952
    %v1883 = vpop.f32.mrf.mxu0
    %v1884 = vadd.f32 %v1094, %v1883
    %v1885 = vpop.f32.mrf.mxu0
    %1886 = vdwg.mxu0
    %1887 = vmatpush.bf16.msra.mxu0 %v1623
    %1888 = vmatpush.bf16.msra.mxu0 %v1607
    %1889 = vmatpush.bf16.msra.mxu0 %v1591
    %1890 = vmatpush.bf16.msra.mxu0 %v1575
    %1891 = vmatpush.bf16.msra.mxu0 %v1559
    %1892 = vmatpush.bf16.msra.mxu0 %v1543
    %1893 = vmatpush.bf16.msra.mxu0 %v1527
    %1894 = vmatpush.bf16.msra.mxu0 %v1511
    %1895 = vmatmul.bf16.gmra.mxu0 %v952
    %v1896 = vpop.f32.mrf.mxu0
    %v1897 = vadd.f32 %v1095, %v1896
    %v1898 = vpop.f32.mrf.mxu0
    %1899 = vdwg.mxu0
    %1900 = vmatpush.bf16.msra.mxu0 %v1624
    %1901 = vmatpush.bf16.msra.mxu0 %v1608
    %1902 = vmatpush.bf16.msra.mxu0 %v1592
    %1903 = vmatpush.bf16.msra.mxu0 %v1576
    %1904 = vmatpush.bf16.msra.mxu0 %v1560
    %1905 = vmatpush.bf16.msra.mxu0 %v1544
    %1906 = vmatpush.bf16.msra.mxu0 %v1528
    %1907 = vmatpush.bf16.msra.mxu0 %v1512
    %1908 = vmatmul.bf16.gmra.mxu0 %v952
    %v1909 = vpop.f32.mrf.mxu0
    %v1910 = vadd.f32 %v1096, %v1909
    %v1911 = vpop.f32.mrf.mxu0
    %1912 = vdwg.mxu0
    %1913 = vmatpush.bf16.msra.mxu0 %v1625
    %1914 = vmatpush.bf16.msra.mxu0 %v1609
    %1915 = vmatpush.bf16.msra.mxu0 %v1593
    %1916 = vmatpush.bf16.msra.mxu0 %v1577
    %1917 = vmatpush.bf16.msra.mxu0 %v1561
    %1918 = vmatpush.bf16.msra.mxu0 %v1545
    %1919 = vmatpush.bf16.msra.mxu0 %v1529
    %1920 = vmatpush.bf16.msra.mxu0 %v1513
    %1921 = vmatmul.bf16.gmra.mxu0 %v952
    %v1922 = vpop.f32.mrf.mxu0
    %v1923 = vadd.f32 %v1097, %v1922
    %v1924 = vpop.f32.mrf.mxu0
    %1925 = vdwg.mxu0
    %1926 = vmatpush.bf16.msra.mxu0 %v1626
    %1927 = vmatpush.bf16.msra.mxu0 %v1610
    %1928 = vmatpush.bf16.msra.mxu0 %v1594
    %1929 = vmatpush.bf16.msra.mxu0 %v1578
    %1930 = vmatpush.bf16.msra.mxu0 %v1562
    %1931 = vmatpush.bf16.msra.mxu0 %v1546
    %1932 = vmatpush.bf16.msra.mxu0 %v1530
    %1933 = vmatpush.bf16.msra.mxu0 %v1514
    %1934 = vmatmul.bf16.gmra.mxu0 %v952
    %v1935 = vpop.f32.mrf.mxu0
    %v1936 = vadd.f32 %v1098, %v1935
    %v1937 = vpop.f32.mrf.mxu0
    %1938 = vdwg.mxu0
    %1939 = vmatpush.bf16.msra.mxu0 %v1627
    %1940 = vmatpush.bf16.msra.mxu0 %v1611
    %1941 = vmatpush.bf16.msra.mxu0 %v1595
    %1942 = vmatpush.bf16.msra.mxu0 %v1579
    %1943 = vmatpush.bf16.msra.mxu0 %v1563
    %1944 = vmatpush.bf16.msra.mxu0 %v1547
    %1945 = vmatpush.bf16.msra.mxu0 %v1531
    %1946 = vmatpush.bf16.msra.mxu0 %v1515
    %1947 = vmatmul.bf16.gmra.mxu0 %v952
    %v1948 = vpop.f32.mrf.mxu0
    %v1949 = vadd.f32 %v1099, %v1948
    %v1950 = vpop.f32.mrf.mxu0
    %1951 = vdwg.mxu0
    %1952 = vmatpush.bf16.msra.mxu0 %v1628
    %1953 = vmatpush.bf16.msra.mxu0 %v1612
    %1954 = vmatpush.bf16.msra.mxu0 %v1596
    %1955 = vmatpush.bf16.msra.mxu0 %v1580
    %1956 = vmatpush.bf16.msra.mxu0 %v1564
    %1957 = vmatpush.bf16.msra.mxu0 %v1548
    %1958 = vmatpush.bf16.msra.mxu0 %v1532
    %1959 = vmatpush.bf16.msra.mxu0 %v1516
    %1960 = vmatmul.bf16.gmra.mxu0 %v952
    %v1961 = vpop.f32.mrf.mxu0
    %v1962 = vadd.f32 %v1100, %v1961
    %v1963 = vpop.f32.mrf.mxu0
    %1964 = vdwg.mxu0
    %v1965 = vmax.f32 %v1767, 0.0
    %v1966 = vmax.f32 %v1780, 0.0
    %v1967 = vmax.f32 %v1793, 0.0
    %v1968 = vmax.f32 %v1806, 0.0
    %v1969 = vmax.f32 %v1819, 0.0
    %v1970 = vmax.f32 %v1832, 0.0
    %v1971 = vmax.f32 %v1845, 0.0
    %v1972 = vmax.f32 %v1858, 0.0
    %v1973 = vmax.f32 %v1871, 0.0
    %v1974 = vmax.f32 %v1884, 0.0
    %v1975 = vmax.f32 %v1897, 0.0
    %v1976 = vmax.f32 %v1910, 0.0
    %v1977 = vmax.f32 %v1923, 0.0
    %v1978 = vmax.f32 %v1936, 0.0
    %v1979 = vmax.f32 %v1949, 0.0
    %v1980 = vmax.f32 %v1962, 0.0
    %v1981 = vpack.c.bf16 %v1965, %v1965
    %v1982 = vpack.c.bf16 %v1966, %v1966
    %v1983 = vpack.c.bf16 %v1967, %v1967
    %v1984 = vpack.c.bf16 %v1968, %v1968
    %v1985 = vpack.c.bf16 %v1969, %v1969
    %v1986 = vpack.c.bf16 %v1970, %v1970
    %v1987 = vpack.c.bf16 %v1971, %v1971
    %v1988 = vpack.c.bf16 %v1972, %v1972
    %v1989 = vpack.c.bf16 %v1973, %v1973
    %v1990 = vpack.c.bf16 %v1974, %v1974
    %v1991 = vpack.c.bf16 %v1975, %v1975
    %v1992 = vpack.c.bf16 %v1976, %v1976
    %v1993 = vpack.c.bf16 %v1977, %v1977
    %v1994 = vpack.c.bf16 %v1978, %v1978
    %v1995 = vpack.c.bf16 %v1979, %v1979
    %v1996 = vpack.c.bf16 %v1980, %v1980
    %v1997 = vld [vmem:[#allocation8] sm:$0xf]
    %v1998 = vld [vmem:[#allocation8 + $0x4] sm:$0xf]
    %v1999 = vld [vmem:[#allocation8 + $0x8] sm:$0xf]
    %v2000 = vld [vmem:[#allocation8 + $0xc] sm:$0xf]
    %v2001 = vld [vmem:[#allocation8 + $0x10] sm:$0xf]
    %v2002 = vld [vmem:[#allocation8 + $0x14] sm:$0xf]
    %v2003 = vld [vmem:[#allocation8 + $0x18] sm:$0xf]
    %v2004 = vld [vmem:[#allocation8 + $0x1c] sm:$0xf]
    %v2005 = vld [vmem:[#allocation8 + $0x20] sm:$0xf]
    %v2006 = vld [vmem:[#allocation8 + $0x24] sm:$0xf]
    %v2007 = vld [vmem:[#allocation8 + $0x28] sm:$0xf]
    %v2008 = vld [vmem:[#allocation8 + $0x2c] sm:$0xf]
    %v2009 = vld [vmem:[#allocation8 + $0x30] sm:$0xf]
    %v2010 = vld [vmem:[#allocation8 + $0x34] sm:$0xf]
    %v2011 = vld [vmem:[#allocation8 + $0x38] sm:$0xf]
    %v2012 = vld [vmem:[#allocation8 + $0x3c] sm:$0xf]
    %v2013 = vld [vmem:[#allocation8 + $0x40] sm:$0xf]
    %v2014 = vld [vmem:[#allocation8 + $0x44] sm:$0xf]
    %v2015 = vld [vmem:[#allocation8 + $0x48] sm:$0xf]
    %v2016 = vld [vmem:[#allocation8 + $0x4c] sm:$0xf]
    %v2017 = vld [vmem:[#allocation8 + $0x50] sm:$0xf]
    %v2018 = vld [vmem:[#allocation8 + $0x54] sm:$0xf]
    %v2019 = vld [vmem:[#allocation8 + $0x58] sm:$0xf]
    %v2020 = vld [vmem:[#allocation8 + $0x5c] sm:$0xf]
    %v2021 = vld [vmem:[#allocation8 + $0x60] sm:$0xf]
    %v2022 = vld [vmem:[#allocation8 + $0x64] sm:$0xf]
    %v2023 = vld [vmem:[#allocation8 + $0x68] sm:$0xf]
    %v2024 = vld [vmem:[#allocation8 + $0x6c] sm:$0xf]
    %v2025 = vld [vmem:[#allocation8 + $0x70] sm:$0xf]
    %v2026 = vld [vmem:[#allocation8 + $0x74] sm:$0xf]
    %v2027 = vld [vmem:[#allocation8 + $0x78] sm:$0xf]
    %v2028 = vld [vmem:[#allocation8 + $0x7c] sm:$0xf]
    %v2029 = vld [vmem:[#allocation8 + $0x80] sm:$0xf]
    %v2030 = vld [vmem:[#allocation8 + $0x84] sm:$0xf]
    %v2031 = vld [vmem:[#allocation8 + $0x88] sm:$0xf]
    %v2032 = vld [vmem:[#allocation8 + $0x8c] sm:$0xf]
    %v2033 = vld [vmem:[#allocation8 + $0x90] sm:$0xf]
    %v2034 = vld [vmem:[#allocation8 + $0x94] sm:$0xf]
    %v2035 = vld [vmem:[#allocation8 + $0x98] sm:$0xf]
    %v2036 = vld [vmem:[#allocation8 + $0x9c] sm:$0xf]
    %v2037 = vld [vmem:[#allocation8 + $0xa0] sm:$0xf]
    %v2038 = vld [vmem:[#allocation8 + $0xa4] sm:$0xf]
    %v2039 = vld [vmem:[#allocation8 + $0xa8] sm:$0xf]
    %v2040 = vld [vmem:[#allocation8 + $0xac] sm:$0xf]
    %v2041 = vld [vmem:[#allocation8 + $0xb0] sm:$0xf]
    %v2042 = vld [vmem:[#allocation8 + $0xb4] sm:$0xf]
    %v2043 = vld [vmem:[#allocation8 + $0xb8] sm:$0xf]
    %v2044 = vld [vmem:[#allocation8 + $0xbc] sm:$0xf]
    %v2045 = vld [vmem:[#allocation8 + $0xc0] sm:$0xf]
    %v2046 = vld [vmem:[#allocation8 + $0xc4] sm:$0xf]
    %v2047 = vld [vmem:[#allocation8 + $0xc8] sm:$0xf]
    %v2048 = vld [vmem:[#allocation8 + $0xcc] sm:$0xf]
    %v2049 = vld [vmem:[#allocation8 + $0xd0] sm:$0xf]
    %v2050 = vld [vmem:[#allocation8 + $0xd4] sm:$0xf]
    %v2051 = vld [vmem:[#allocation8 + $0xd8] sm:$0xf]
    %v2052 = vld [vmem:[#allocation8 + $0xdc] sm:$0xf]
    %v2053 = vld [vmem:[#allocation8 + $0xe0] sm:$0xf]
    %v2054 = vld [vmem:[#allocation8 + $0xe4] sm:$0xf]
    %v2055 = vld [vmem:[#allocation8 + $0xe8] sm:$0xf]
    %v2056 = vld [vmem:[#allocation8 + $0xec] sm:$0xf]
    %v2057 = vld [vmem:[#allocation8 + $0xf0] sm:$0xf]
    %v2058 = vld [vmem:[#allocation8 + $0xf4] sm:$0xf]
    %v2059 = vld [vmem:[#allocation8 + $0xf8] sm:$0xf]
    %v2060 = vld [vmem:[#allocation8 + $0xfc] sm:$0xf]
    %v2061 = vld [vmem:[#allocation8 + $0x100] sm:$0xf]
    %v2062 = vld [vmem:[#allocation8 + $0x104] sm:$0xf]
    %v2063 = vld [vmem:[#allocation8 + $0x108] sm:$0xf]
    %v2064 = vld [vmem:[#allocation8 + $0x10c] sm:$0xf]
    %v2065 = vld [vmem:[#allocation8 + $0x110] sm:$0xf]
    %v2066 = vld [vmem:[#allocation8 + $0x114] sm:$0xf]
    %v2067 = vld [vmem:[#allocation8 + $0x118] sm:$0xf]
    %v2068 = vld [vmem:[#allocation8 + $0x11c] sm:$0xf]
    %v2069 = vld [vmem:[#allocation8 + $0x120] sm:$0xf]
    %v2070 = vld [vmem:[#allocation8 + $0x124] sm:$0xf]
    %v2071 = vld [vmem:[#allocation8 + $0x128] sm:$0xf]
    %v2072 = vld [vmem:[#allocation8 + $0x12c] sm:$0xf]
    %v2073 = vld [vmem:[#allocation8 + $0x130] sm:$0xf]
    %v2074 = vld [vmem:[#allocation8 + $0x134] sm:$0xf]
    %v2075 = vld [vmem:[#allocation8 + $0x138] sm:$0xf]
    %v2076 = vld [vmem:[#allocation8 + $0x13c] sm:$0xf]
    %v2077 = vld [vmem:[#allocation8 + $0x140] sm:$0xf]
    %v2078 = vld [vmem:[#allocation8 + $0x144] sm:$0xf]
    %v2079 = vld [vmem:[#allocation8 + $0x148] sm:$0xf]
    %v2080 = vld [vmem:[#allocation8 + $0x14c] sm:$0xf]
    %v2081 = vld [vmem:[#allocation8 + $0x150] sm:$0xf]
    %v2082 = vld [vmem:[#allocation8 + $0x154] sm:$0xf]
    %v2083 = vld [vmem:[#allocation8 + $0x158] sm:$0xf]
    %v2084 = vld [vmem:[#allocation8 + $0x15c] sm:$0xf]
    %v2085 = vld [vmem:[#allocation8 + $0x160] sm:$0xf]
    %v2086 = vld [vmem:[#allocation8 + $0x164] sm:$0xf]
    %v2087 = vld [vmem:[#allocation8 + $0x168] sm:$0xf]
    %v2088 = vld [vmem:[#allocation8 + $0x16c] sm:$0xf]
    %v2089 = vld [vmem:[#allocation8 + $0x170] sm:$0xf]
    %v2090 = vld [vmem:[#allocation8 + $0x174] sm:$0xf]
    %v2091 = vld [vmem:[#allocation8 + $0x178] sm:$0xf]
    %v2092 = vld [vmem:[#allocation8 + $0x17c] sm:$0xf]
    %v2093 = vld [vmem:[#allocation8 + $0x180] sm:$0xf]
    %v2094 = vld [vmem:[#allocation8 + $0x184] sm:$0xf]
    %v2095 = vld [vmem:[#allocation8 + $0x188] sm:$0xf]
    %v2096 = vld [vmem:[#allocation8 + $0x18c] sm:$0xf]
    %v2097 = vld [vmem:[#allocation8 + $0x190] sm:$0xf]
    %v2098 = vld [vmem:[#allocation8 + $0x194] sm:$0xf]
    %v2099 = vld [vmem:[#allocation8 + $0x198] sm:$0xf]
    %v2100 = vld [vmem:[#allocation8 + $0x19c] sm:$0xf]
    %v2101 = vld [vmem:[#allocation8 + $0x1a0] sm:$0xf]
    %v2102 = vld [vmem:[#allocation8 + $0x1a4] sm:$0xf]
    %v2103 = vld [vmem:[#allocation8 + $0x1a8] sm:$0xf]
    %v2104 = vld [vmem:[#allocation8 + $0x1ac] sm:$0xf]
    %v2105 = vld [vmem:[#allocation8 + $0x1b0] sm:$0xf]
    %v2106 = vld [vmem:[#allocation8 + $0x1b4] sm:$0xf]
    %v2107 = vld [vmem:[#allocation8 + $0x1b8] sm:$0xf]
    %v2108 = vld [vmem:[#allocation8 + $0x1bc] sm:$0xf]
    %v2109 = vld [vmem:[#allocation8 + $0x1c0] sm:$0xf]
    %v2110 = vld [vmem:[#allocation8 + $0x1c4] sm:$0xf]
    %v2111 = vld [vmem:[#allocation8 + $0x1c8] sm:$0xf]
    %v2112 = vld [vmem:[#allocation8 + $0x1cc] sm:$0xf]
    %v2113 = vld [vmem:[#allocation8 + $0x1d0] sm:$0xf]
    %v2114 = vld [vmem:[#allocation8 + $0x1d4] sm:$0xf]
    %v2115 = vld [vmem:[#allocation8 + $0x1d8] sm:$0xf]
    %v2116 = vld [vmem:[#allocation8 + $0x1dc] sm:$0xf]
    %v2117 = vld [vmem:[#allocation8 + $0x1e0] sm:$0xf]
    %v2118 = vld [vmem:[#allocation8 + $0x1e4] sm:$0xf]
    %v2119 = vld [vmem:[#allocation8 + $0x1e8] sm:$0xf]
    %v2120 = vld [vmem:[#allocation8 + $0x1ec] sm:$0xf]
    %v2121 = vld [vmem:[#allocation8 + $0x1f0] sm:$0xf]
    %v2122 = vld [vmem:[#allocation8 + $0x1f4] sm:$0xf]
    %v2123 = vld [vmem:[#allocation8 + $0x1f8] sm:$0xf]
    %v2124 = vld [vmem:[#allocation8 + $0x1fc] sm:$0xf]
    %v2125 = vld [vmem:[#allocation8 + $0x200] sm:$0xf]
    %v2126 = vld [vmem:[#allocation8 + $0x204] sm:$0xf]
    %v2127 = vld [vmem:[#allocation8 + $0x208] sm:$0xf]
    %v2128 = vld [vmem:[#allocation8 + $0x20c] sm:$0xf]
    %v2129 = vld [vmem:[#allocation8 + $0x210] sm:$0xf]
    %v2130 = vld [vmem:[#allocation8 + $0x214] sm:$0xf]
    %v2131 = vld [vmem:[#allocation8 + $0x218] sm:$0xf]
    %v2132 = vld [vmem:[#allocation8 + $0x21c] sm:$0xf]
    %v2133 = vld [vmem:[#allocation8 + $0x220] sm:$0xf]
    %v2134 = vld [vmem:[#allocation8 + $0x224] sm:$0xf]
    %v2135 = vld [vmem:[#allocation8 + $0x228] sm:$0xf]
    %v2136 = vld [vmem:[#allocation8 + $0x22c] sm:$0xf]
    %v2137 = vld [vmem:[#allocation8 + $0x230] sm:$0xf]
    %v2138 = vld [vmem:[#allocation8 + $0x234] sm:$0xf]
    %v2139 = vld [vmem:[#allocation8 + $0x238] sm:$0xf]
    %v2140 = vld [vmem:[#allocation8 + $0x23c] sm:$0xf]
    %v2141 = vld [vmem:[#allocation8 + $0x240] sm:$0xf]
    %v2142 = vld [vmem:[#allocation8 + $0x244] sm:$0xf]
    %v2143 = vld [vmem:[#allocation8 + $0x248] sm:$0xf]
    %v2144 = vld [vmem:[#allocation8 + $0x24c] sm:$0xf]
    %v2145 = vld [vmem:[#allocation8 + $0x250] sm:$0xf]
    %v2146 = vld [vmem:[#allocation8 + $0x254] sm:$0xf]
    %v2147 = vld [vmem:[#allocation8 + $0x258] sm:$0xf]
    %v2148 = vld [vmem:[#allocation8 + $0x25c] sm:$0xf]
    %v2149 = vld [vmem:[#allocation8 + $0x260] sm:$0xf]
    %v2150 = vld [vmem:[#allocation8 + $0x264] sm:$0xf]
    %v2151 = vld [vmem:[#allocation8 + $0x268] sm:$0xf]
    %v2152 = vld [vmem:[#allocation8 + $0x26c] sm:$0xf]
    %v2153 = vld [vmem:[#allocation8 + $0x270] sm:$0xf]
    %v2154 = vld [vmem:[#allocation8 + $0x274] sm:$0xf]
    %v2155 = vld [vmem:[#allocation8 + $0x278] sm:$0xf]
    %v2156 = vld [vmem:[#allocation8 + $0x27c] sm:$0xf]
    %v2157 = vld [vmem:[#allocation8 + $0x280] sm:$0xf]
    %v2158 = vld [vmem:[#allocation8 + $0x284] sm:$0xf]
    %v2159 = vld [vmem:[#allocation8 + $0x288] sm:$0xf]
    %v2160 = vld [vmem:[#allocation8 + $0x28c] sm:$0xf]
    %v2161 = vld [vmem:[#allocation8 + $0x290] sm:$0xf]
    %v2162 = vld [vmem:[#allocation8 + $0x294] sm:$0xf]
    %v2163 = vld [vmem:[#allocation8 + $0x298] sm:$0xf]
    %v2164 = vld [vmem:[#allocation8 + $0x29c] sm:$0xf]
    %v2165 = vld [vmem:[#allocation8 + $0x2a0] sm:$0xf]
    %v2166 = vld [vmem:[#allocation8 + $0x2a4] sm:$0xf]
    %v2167 = vld [vmem:[#allocation8 + $0x2a8] sm:$0xf]
    %v2168 = vld [vmem:[#allocation8 + $0x2ac] sm:$0xf]
    %v2169 = vld [vmem:[#allocation8 + $0x2b0] sm:$0xf]
    %v2170 = vld [vmem:[#allocation8 + $0x2b4] sm:$0xf]
    %v2171 = vld [vmem:[#allocation8 + $0x2b8] sm:$0xf]
    %v2172 = vld [vmem:[#allocation8 + $0x2bc] sm:$0xf]
    %v2173 = vld [vmem:[#allocation8 + $0x2c0] sm:$0xf]
    %v2174 = vld [vmem:[#allocation8 + $0x2c4] sm:$0xf]
    %v2175 = vld [vmem:[#allocation8 + $0x2c8] sm:$0xf]
    %v2176 = vld [vmem:[#allocation8 + $0x2cc] sm:$0xf]
    %v2177 = vld [vmem:[#allocation8 + $0x2d0] sm:$0xf]
    %v2178 = vld [vmem:[#allocation8 + $0x2d4] sm:$0xf]
    %v2179 = vld [vmem:[#allocation8 + $0x2d8] sm:$0xf]
    %v2180 = vld [vmem:[#allocation8 + $0x2dc] sm:$0xf]
    %v2181 = vld [vmem:[#allocation8 + $0x2e0] sm:$0xf]
    %v2182 = vld [vmem:[#allocation8 + $0x2e4] sm:$0xf]
    %v2183 = vld [vmem:[#allocation8 + $0x2e8] sm:$0xf]
    %v2184 = vld [vmem:[#allocation8 + $0x2ec] sm:$0xf]
    %v2185 = vld [vmem:[#allocation8 + $0x2f0] sm:$0xf]
    %v2186 = vld [vmem:[#allocation8 + $0x2f4] sm:$0xf]
    %v2187 = vld [vmem:[#allocation8 + $0x2f8] sm:$0xf]
    %v2188 = vld [vmem:[#allocation8 + $0x2fc] sm:$0xf]
    %v2189 = vld [vmem:[#allocation8 + $0x300] sm:$0xf]
    %v2190 = vld [vmem:[#allocation8 + $0x304] sm:$0xf]
    %v2191 = vld [vmem:[#allocation8 + $0x308] sm:$0xf]
    %v2192 = vld [vmem:[#allocation8 + $0x30c] sm:$0xf]
    %v2193 = vld [vmem:[#allocation8 + $0x310] sm:$0xf]
    %v2194 = vld [vmem:[#allocation8 + $0x314] sm:$0xf]
    %v2195 = vld [vmem:[#allocation8 + $0x318] sm:$0xf]
    %v2196 = vld [vmem:[#allocation8 + $0x31c] sm:$0xf]
    %v2197 = vld [vmem:[#allocation8 + $0x320] sm:$0xf]
    %v2198 = vld [vmem:[#allocation8 + $0x324] sm:$0xf]
    %v2199 = vld [vmem:[#allocation8 + $0x328] sm:$0xf]
    %v2200 = vld [vmem:[#allocation8 + $0x32c] sm:$0xf]
    %v2201 = vld [vmem:[#allocation8 + $0x330] sm:$0xf]
    %v2202 = vld [vmem:[#allocation8 + $0x334] sm:$0xf]
    %v2203 = vld [vmem:[#allocation8 + $0x338] sm:$0xf]
    %v2204 = vld [vmem:[#allocation8 + $0x33c] sm:$0xf]
    %v2205 = vld [vmem:[#allocation8 + $0x340] sm:$0xf]
    %v2206 = vld [vmem:[#allocation8 + $0x344] sm:$0xf]
    %v2207 = vld [vmem:[#allocation8 + $0x348] sm:$0xf]
    %v2208 = vld [vmem:[#allocation8 + $0x34c] sm:$0xf]
    %v2209 = vld [vmem:[#allocation8 + $0x350] sm:$0xf]
    %v2210 = vld [vmem:[#allocation8 + $0x354] sm:$0xf]
    %v2211 = vld [vmem:[#allocation8 + $0x358] sm:$0xf]
    %v2212 = vld [vmem:[#allocation8 + $0x35c] sm:$0xf]
    %v2213 = vld [vmem:[#allocation8 + $0x360] sm:$0xf]
    %v2214 = vld [vmem:[#allocation8 + $0x364] sm:$0xf]
    %v2215 = vld [vmem:[#allocation8 + $0x368] sm:$0xf]
    %v2216 = vld [vmem:[#allocation8 + $0x36c] sm:$0xf]
    %v2217 = vld [vmem:[#allocation8 + $0x370] sm:$0xf]
    %v2218 = vld [vmem:[#allocation8 + $0x374] sm:$0xf]
    %v2219 = vld [vmem:[#allocation8 + $0x378] sm:$0xf]
    %v2220 = vld [vmem:[#allocation8 + $0x37c] sm:$0xf]
    %v2221 = vld [vmem:[#allocation8 + $0x380] sm:$0xf]
    %v2222 = vld [vmem:[#allocation8 + $0x384] sm:$0xf]
    %v2223 = vld [vmem:[#allocation8 + $0x388] sm:$0xf]
    %v2224 = vld [vmem:[#allocation8 + $0x38c] sm:$0xf]
    %v2225 = vld [vmem:[#allocation8 + $0x390] sm:$0xf]
    %v2226 = vld [vmem:[#allocation8 + $0x394] sm:$0xf]
    %v2227 = vld [vmem:[#allocation8 + $0x398] sm:$0xf]
    %v2228 = vld [vmem:[#allocation8 + $0x39c] sm:$0xf]
    %v2229 = vld [vmem:[#allocation8 + $0x3a0] sm:$0xf]
    %v2230 = vld [vmem:[#allocation8 + $0x3a4] sm:$0xf]
    %v2231 = vld [vmem:[#allocation8 + $0x3a8] sm:$0xf]
    %v2232 = vld [vmem:[#allocation8 + $0x3ac] sm:$0xf]
    %v2233 = vld [vmem:[#allocation8 + $0x3b0] sm:$0xf]
    %v2234 = vld [vmem:[#allocation8 + $0x3b4] sm:$0xf]
    %v2235 = vld [vmem:[#allocation8 + $0x3b8] sm:$0xf]
    %v2236 = vld [vmem:[#allocation8 + $0x3bc] sm:$0xf]
    %v2237 = vld [vmem:[#allocation8 + $0x3c0] sm:$0xf]
    %v2238 = vld [vmem:[#allocation8 + $0x3c4] sm:$0xf]
    %v2239 = vld [vmem:[#allocation8 + $0x3c8] sm:$0xf]
    %v2240 = vld [vmem:[#allocation8 + $0x3cc] sm:$0xf]
    %v2241 = vld [vmem:[#allocation8 + $0x3d0] sm:$0xf]
    %v2242 = vld [vmem:[#allocation8 + $0x3d4] sm:$0xf]
    %v2243 = vld [vmem:[#allocation8 + $0x3d8] sm:$0xf]
    %v2244 = vld [vmem:[#allocation8 + $0x3dc] sm:$0xf]
    %v2245 = vld [vmem:[#allocation8 + $0x3e0] sm:$0xf]
    %v2246 = vld [vmem:[#allocation8 + $0x3e4] sm:$0xf]
    %v2247 = vld [vmem:[#allocation8 + $0x3e8] sm:$0xf]
    %v2248 = vld [vmem:[#allocation8 + $0x3ec] sm:$0xf]
    %v2249 = vld [vmem:[#allocation8 + $0x3f0] sm:$0xf]
    %v2250 = vld [vmem:[#allocation8 + $0x3f4] sm:$0xf]
    %v2251 = vld [vmem:[#allocation8 + $0x3f8] sm:$0xf]
    %v2252 = vld [vmem:[#allocation8 + $0x3fc] sm:$0xf]
    %v2253 = vld [vmem:[%s12] sm:$0x1]
    %v2255 = vperm.slane %v2253, 0
    %v2513 = vunpack.c.l.b16 %v1997
    %v2514 = vunpack.c.l.b16 %v1998
    %v2515 = vunpack.c.l.b16 %v1999
    %v2516 = vunpack.c.l.b16 %v2000
    %v2517 = vunpack.c.l.b16 %v2001
    %v2518 = vunpack.c.l.b16 %v2002
    %v2519 = vunpack.c.l.b16 %v2003
    %v2520 = vunpack.c.l.b16 %v2004
    %v2521 = vunpack.c.l.b16 %v2005
    %v2522 = vunpack.c.l.b16 %v2006
    %v2523 = vunpack.c.l.b16 %v2007
    %v2524 = vunpack.c.l.b16 %v2008
    %v2525 = vunpack.c.l.b16 %v2009
    %v2526 = vunpack.c.l.b16 %v2010
    %v2527 = vunpack.c.l.b16 %v2011
    %v2528 = vunpack.c.l.b16 %v2012
    %v2529 = vunpack.c.l.b16 %v2013
    %v2530 = vunpack.c.l.b16 %v2014
    %v2531 = vunpack.c.l.b16 %v2015
    %v2532 = vunpack.c.l.b16 %v2016
    %v2533 = vunpack.c.l.b16 %v2017
    %v2534 = vunpack.c.l.b16 %v2018
    %v2535 = vunpack.c.l.b16 %v2019
    %v2536 = vunpack.c.l.b16 %v2020
    %v2537 = vunpack.c.l.b16 %v2021
    %v2538 = vunpack.c.l.b16 %v2022
    %v2539 = vunpack.c.l.b16 %v2023
    %v2540 = vunpack.c.l.b16 %v2024
    %v2541 = vunpack.c.l.b16 %v2025
    %v2542 = vunpack.c.l.b16 %v2026
    %v2543 = vunpack.c.l.b16 %v2027
    %v2544 = vunpack.c.l.b16 %v2028
    %v2545 = vunpack.c.l.b16 %v2029
    %v2546 = vunpack.c.l.b16 %v2030
    %v2547 = vunpack.c.l.b16 %v2031
    %v2548 = vunpack.c.l.b16 %v2032
    %v2549 = vunpack.c.l.b16 %v2033
    %v2550 = vunpack.c.l.b16 %v2034
    %v2551 = vunpack.c.l.b16 %v2035
    %v2552 = vunpack.c.l.b16 %v2036
    %v2553 = vunpack.c.l.b16 %v2037
    %v2554 = vunpack.c.l.b16 %v2038
    %v2555 = vunpack.c.l.b16 %v2039
    %v2556 = vunpack.c.l.b16 %v2040
    %v2557 = vunpack.c.l.b16 %v2041
    %v2558 = vunpack.c.l.b16 %v2042
    %v2559 = vunpack.c.l.b16 %v2043
    %v2560 = vunpack.c.l.b16 %v2044
    %v2561 = vunpack.c.l.b16 %v2045
    %v2562 = vunpack.c.l.b16 %v2046
    %v2563 = vunpack.c.l.b16 %v2047
    %v2564 = vunpack.c.l.b16 %v2048
    %v2565 = vunpack.c.l.b16 %v2049
    %v2566 = vunpack.c.l.b16 %v2050
    %v2567 = vunpack.c.l.b16 %v2051
    %v2568 = vunpack.c.l.b16 %v2052
    %v2569 = vunpack.c.l.b16 %v2053
    %v2570 = vunpack.c.l.b16 %v2054
    %v2571 = vunpack.c.l.b16 %v2055
    %v2572 = vunpack.c.l.b16 %v2056
    %v2573 = vunpack.c.l.b16 %v2057
    %v2574 = vunpack.c.l.b16 %v2058
    %v2575 = vunpack.c.l.b16 %v2059
    %v2576 = vunpack.c.l.b16 %v2060
    %v2577 = vunpack.c.l.b16 %v2061
    %v2578 = vunpack.c.l.b16 %v2062
    %v2579 = vunpack.c.l.b16 %v2063
    %v2580 = vunpack.c.l.b16 %v2064
    %v2581 = vunpack.c.l.b16 %v2065
    %v2582 = vunpack.c.l.b16 %v2066
    %v2583 = vunpack.c.l.b16 %v2067
    %v2584 = vunpack.c.l.b16 %v2068
    %v2585 = vunpack.c.l.b16 %v2069
    %v2586 = vunpack.c.l.b16 %v2070
    %v2587 = vunpack.c.l.b16 %v2071
    %v2588 = vunpack.c.l.b16 %v2072
    %v2589 = vunpack.c.l.b16 %v2073
    %v2590 = vunpack.c.l.b16 %v2074
    %v2591 = vunpack.c.l.b16 %v2075
    %v2592 = vunpack.c.l.b16 %v2076
    %v2593 = vunpack.c.l.b16 %v2077
    %v2594 = vunpack.c.l.b16 %v2078
    %v2595 = vunpack.c.l.b16 %v2079
    %v2596 = vunpack.c.l.b16 %v2080
    %v2597 = vunpack.c.l.b16 %v2081
    %v2598 = vunpack.c.l.b16 %v2082
    %v2599 = vunpack.c.l.b16 %v2083
    %v2600 = vunpack.c.l.b16 %v2084
    %v2601 = vunpack.c.l.b16 %v2085
    %v2602 = vunpack.c.l.b16 %v2086
    %v2603 = vunpack.c.l.b16 %v2087
    %v2604 = vunpack.c.l.b16 %v2088
    %v2605 = vunpack.c.l.b16 %v2089
    %v2606 = vunpack.c.l.b16 %v2090
    %v2607 = vunpack.c.l.b16 %v2091
    %v2608 = vunpack.c.l.b16 %v2092
    %v2609 = vunpack.c.l.b16 %v2093
    %v2610 = vunpack.c.l.b16 %v2094
    %v2611 = vunpack.c.l.b16 %v2095
    %v2612 = vunpack.c.l.b16 %v2096
    %v2613 = vunpack.c.l.b16 %v2097
    %v2614 = vunpack.c.l.b16 %v2098
    %v2615 = vunpack.c.l.b16 %v2099
    %v2616 = vunpack.c.l.b16 %v2100
    %v2617 = vunpack.c.l.b16 %v2101
    %v2618 = vunpack.c.l.b16 %v2102
    %v2619 = vunpack.c.l.b16 %v2103
    %v2620 = vunpack.c.l.b16 %v2104
    %v2621 = vunpack.c.l.b16 %v2105
    %v2622 = vunpack.c.l.b16 %v2106
    %v2623 = vunpack.c.l.b16 %v2107
    %v2624 = vunpack.c.l.b16 %v2108
    %v2625 = vunpack.c.l.b16 %v2109
    %v2626 = vunpack.c.l.b16 %v2110
    %v2627 = vunpack.c.l.b16 %v2111
    %v2628 = vunpack.c.l.b16 %v2112
    %v2629 = vunpack.c.l.b16 %v2113
    %v2630 = vunpack.c.l.b16 %v2114
    %v2631 = vunpack.c.l.b16 %v2115
    %v2632 = vunpack.c.l.b16 %v2116
    %v2633 = vunpack.c.l.b16 %v2117
    %v2634 = vunpack.c.l.b16 %v2118
    %v2635 = vunpack.c.l.b16 %v2119
    %v2636 = vunpack.c.l.b16 %v2120
    %v2637 = vunpack.c.l.b16 %v2121
    %v2638 = vunpack.c.l.b16 %v2122
    %v2639 = vunpack.c.l.b16 %v2123
    %v2640 = vunpack.c.l.b16 %v2124
    %v2641 = vunpack.c.l.b16 %v2125
    %v2642 = vunpack.c.l.b16 %v2126
    %v2643 = vunpack.c.l.b16 %v2127
    %v2644 = vunpack.c.l.b16 %v2128
    %v2645 = vunpack.c.l.b16 %v2129
    %v2646 = vunpack.c.l.b16 %v2130
    %v2647 = vunpack.c.l.b16 %v2131
    %v2648 = vunpack.c.l.b16 %v2132
    %v2649 = vunpack.c.l.b16 %v2133
    %v2650 = vunpack.c.l.b16 %v2134
    %v2651 = vunpack.c.l.b16 %v2135
    %v2652 = vunpack.c.l.b16 %v2136
    %v2653 = vunpack.c.l.b16 %v2137
    %v2654 = vunpack.c.l.b16 %v2138
    %v2655 = vunpack.c.l.b16 %v2139
    %v2656 = vunpack.c.l.b16 %v2140
    %v2657 = vunpack.c.l.b16 %v2141
    %v2658 = vunpack.c.l.b16 %v2142
    %v2659 = vunpack.c.l.b16 %v2143
    %v2660 = vunpack.c.l.b16 %v2144
    %v2661 = vunpack.c.l.b16 %v2145
    %v2662 = vunpack.c.l.b16 %v2146
    %v2663 = vunpack.c.l.b16 %v2147
    %v2664 = vunpack.c.l.b16 %v2148
    %v2665 = vunpack.c.l.b16 %v2149
    %v2666 = vunpack.c.l.b16 %v2150
    %v2667 = vunpack.c.l.b16 %v2151
    %v2668 = vunpack.c.l.b16 %v2152
    %v2669 = vunpack.c.l.b16 %v2153
    %v2670 = vunpack.c.l.b16 %v2154
    %v2671 = vunpack.c.l.b16 %v2155
    %v2672 = vunpack.c.l.b16 %v2156
    %v2673 = vunpack.c.l.b16 %v2157
    %v2674 = vunpack.c.l.b16 %v2158
    %v2675 = vunpack.c.l.b16 %v2159
    %v2676 = vunpack.c.l.b16 %v2160
    %v2677 = vunpack.c.l.b16 %v2161
    %v2678 = vunpack.c.l.b16 %v2162
    %v2679 = vunpack.c.l.b16 %v2163
    %v2680 = vunpack.c.l.b16 %v2164
    %v2681 = vunpack.c.l.b16 %v2165
    %v2682 = vunpack.c.l.b16 %v2166
    %v2683 = vunpack.c.l.b16 %v2167
    %v2684 = vunpack.c.l.b16 %v2168
    %v2685 = vunpack.c.l.b16 %v2169
    %v2686 = vunpack.c.l.b16 %v2170
    %v2687 = vunpack.c.l.b16 %v2171
    %v2688 = vunpack.c.l.b16 %v2172
    %v2689 = vunpack.c.l.b16 %v2173
    %v2690 = vunpack.c.l.b16 %v2174
    %v2691 = vunpack.c.l.b16 %v2175
    %v2692 = vunpack.c.l.b16 %v2176
    %v2693 = vunpack.c.l.b16 %v2177
    %v2694 = vunpack.c.l.b16 %v2178
    %v2695 = vunpack.c.l.b16 %v2179
    %v2696 = vunpack.c.l.b16 %v2180
    %v2697 = vunpack.c.l.b16 %v2181
    %v2698 = vunpack.c.l.b16 %v2182
    %v2699 = vunpack.c.l.b16 %v2183
    %v2700 = vunpack.c.l.b16 %v2184
    %v2701 = vunpack.c.l.b16 %v2185
    %v2702 = vunpack.c.l.b16 %v2186
    %v2703 = vunpack.c.l.b16 %v2187
    %v2704 = vunpack.c.l.b16 %v2188
    %v2705 = vunpack.c.l.b16 %v2189
    %v2706 = vunpack.c.l.b16 %v2190
    %v2707 = vunpack.c.l.b16 %v2191
    %v2708 = vunpack.c.l.b16 %v2192
    %v2709 = vunpack.c.l.b16 %v2193
    %v2710 = vunpack.c.l.b16 %v2194
    %v2711 = vunpack.c.l.b16 %v2195
    %v2712 = vunpack.c.l.b16 %v2196
    %v2713 = vunpack.c.l.b16 %v2197
    %v2714 = vunpack.c.l.b16 %v2198
    %v2715 = vunpack.c.l.b16 %v2199
    %v2716 = vunpack.c.l.b16 %v2200
    %v2717 = vunpack.c.l.b16 %v2201
    %v2718 = vunpack.c.l.b16 %v2202
    %v2719 = vunpack.c.l.b16 %v2203
    %v2720 = vunpack.c.l.b16 %v2204
    %v2721 = vunpack.c.l.b16 %v2205
    %v2722 = vunpack.c.l.b16 %v2206
    %v2723 = vunpack.c.l.b16 %v2207
    %v2724 = vunpack.c.l.b16 %v2208
    %v2725 = vunpack.c.l.b16 %v2209
    %v2726 = vunpack.c.l.b16 %v2210
    %v2727 = vunpack.c.l.b16 %v2211
    %v2728 = vunpack.c.l.b16 %v2212
    %v2729 = vunpack.c.l.b16 %v2213
    %v2730 = vunpack.c.l.b16 %v2214
    %v2731 = vunpack.c.l.b16 %v2215
    %v2732 = vunpack.c.l.b16 %v2216
    %v2733 = vunpack.c.l.b16 %v2217
    %v2734 = vunpack.c.l.b16 %v2218
    %v2735 = vunpack.c.l.b16 %v2219
    %v2736 = vunpack.c.l.b16 %v2220
    %v2737 = vunpack.c.l.b16 %v2221
    %v2738 = vunpack.c.l.b16 %v2222
    %v2739 = vunpack.c.l.b16 %v2223
    %v2740 = vunpack.c.l.b16 %v2224
    %v2741 = vunpack.c.l.b16 %v2225
    %v2742 = vunpack.c.l.b16 %v2226
    %v2743 = vunpack.c.l.b16 %v2227
    %v2744 = vunpack.c.l.b16 %v2228
    %v2745 = vunpack.c.l.b16 %v2229
    %v2746 = vunpack.c.l.b16 %v2230
    %v2747 = vunpack.c.l.b16 %v2231
    %v2748 = vunpack.c.l.b16 %v2232
    %v2749 = vunpack.c.l.b16 %v2233
    %v2750 = vunpack.c.l.b16 %v2234
    %v2751 = vunpack.c.l.b16 %v2235
    %v2752 = vunpack.c.l.b16 %v2236
    %v2753 = vunpack.c.l.b16 %v2237
    %v2754 = vunpack.c.l.b16 %v2238
    %v2755 = vunpack.c.l.b16 %v2239
    %v2756 = vunpack.c.l.b16 %v2240
    %v2757 = vunpack.c.l.b16 %v2241
    %v2758 = vunpack.c.l.b16 %v2242
    %v2759 = vunpack.c.l.b16 %v2243
    %v2760 = vunpack.c.l.b16 %v2244
    %v2761 = vunpack.c.l.b16 %v2245
    %v2762 = vunpack.c.l.b16 %v2246
    %v2763 = vunpack.c.l.b16 %v2247
    %v2764 = vunpack.c.l.b16 %v2248
    %v2765 = vunpack.c.l.b16 %v2249
    %v2766 = vunpack.c.l.b16 %v2250
    %v2767 = vunpack.c.l.b16 %v2251
    %v2768 = vunpack.c.l.b16 %v2252
    %v2769 = vpack.c.b16 %v2514, %v2513
    %v2770 = vpack.c.b16 %v2516, %v2515
    %v2771 = vpack.c.b16 %v2518, %v2517
    %v2772 = vpack.c.b16 %v2520, %v2519
    %v2773 = vpack.c.b16 %v2522, %v2521
    %v2774 = vpack.c.b16 %v2524, %v2523
    %v2775 = vpack.c.b16 %v2526, %v2525
    %v2776 = vpack.c.b16 %v2528, %v2527
    %v2777 = vpack.c.b16 %v2530, %v2529
    %v2778 = vpack.c.b16 %v2532, %v2531
    %v2779 = vpack.c.b16 %v2534, %v2533
    %v2780 = vpack.c.b16 %v2536, %v2535
    %v2781 = vpack.c.b16 %v2538, %v2537
    %v2782 = vpack.c.b16 %v2540, %v2539
    %v2783 = vpack.c.b16 %v2542, %v2541
    %v2784 = vpack.c.b16 %v2544, %v2543
    %v2785 = vpack.c.b16 %v2546, %v2545
    %v2786 = vpack.c.b16 %v2548, %v2547
    %v2787 = vpack.c.b16 %v2550, %v2549
    %v2788 = vpack.c.b16 %v2552, %v2551
    %v2789 = vpack.c.b16 %v2554, %v2553
    %v2790 = vpack.c.b16 %v2556, %v2555
    %v2791 = vpack.c.b16 %v2558, %v2557
    %v2792 = vpack.c.b16 %v2560, %v2559
    %v2793 = vpack.c.b16 %v2562, %v2561
    %v2794 = vpack.c.b16 %v2564, %v2563
    %v2795 = vpack.c.b16 %v2566, %v2565
    %v2796 = vpack.c.b16 %v2568, %v2567
    %v2797 = vpack.c.b16 %v2570, %v2569
    %v2798 = vpack.c.b16 %v2572, %v2571
    %v2799 = vpack.c.b16 %v2574, %v2573
    %v2800 = vpack.c.b16 %v2576, %v2575
    %v2801 = vpack.c.b16 %v2578, %v2577
    %v2802 = vpack.c.b16 %v2580, %v2579
    %v2803 = vpack.c.b16 %v2582, %v2581
    %v2804 = vpack.c.b16 %v2584, %v2583
    %v2805 = vpack.c.b16 %v2586, %v2585
    %v2806 = vpack.c.b16 %v2588, %v2587
    %v2807 = vpack.c.b16 %v2590, %v2589
    %v2808 = vpack.c.b16 %v2592, %v2591
    %v2809 = vpack.c.b16 %v2594, %v2593
    %v2810 = vpack.c.b16 %v2596, %v2595
    %v2811 = vpack.c.b16 %v2598, %v2597
    %v2812 = vpack.c.b16 %v2600, %v2599
    %v2813 = vpack.c.b16 %v2602, %v2601
    %v2814 = vpack.c.b16 %v2604, %v2603
    %v2815 = vpack.c.b16 %v2606, %v2605
    %v2816 = vpack.c.b16 %v2608, %v2607
    %v2817 = vpack.c.b16 %v2610, %v2609
    %v2818 = vpack.c.b16 %v2612, %v2611
    %v2819 = vpack.c.b16 %v2614, %v2613
    %v2820 = vpack.c.b16 %v2616, %v2615
    %v2821 = vpack.c.b16 %v2618, %v2617
    %v2822 = vpack.c.b16 %v2620, %v2619
    %v2823 = vpack.c.b16 %v2622, %v2621
    %v2824 = vpack.c.b16 %v2624, %v2623
    %v2825 = vpack.c.b16 %v2626, %v2625
    %v2826 = vpack.c.b16 %v2628, %v2627
    %v2827 = vpack.c.b16 %v2630, %v2629
    %v2828 = vpack.c.b16 %v2632, %v2631
    %v2829 = vpack.c.b16 %v2634, %v2633
    %v2830 = vpack.c.b16 %v2636, %v2635
    %v2831 = vpack.c.b16 %v2638, %v2637
    %v2832 = vpack.c.b16 %v2640, %v2639
    %v2833 = vpack.c.b16 %v2642, %v2641
    %v2834 = vpack.c.b16 %v2644, %v2643
    %v2835 = vpack.c.b16 %v2646, %v2645
    %v2836 = vpack.c.b16 %v2648, %v2647
    %v2837 = vpack.c.b16 %v2650, %v2649
    %v2838 = vpack.c.b16 %v2652, %v2651
    %v2839 = vpack.c.b16 %v2654, %v2653
    %v2840 = vpack.c.b16 %v2656, %v2655
    %v2841 = vpack.c.b16 %v2658, %v2657
    %v2842 = vpack.c.b16 %v2660, %v2659
    %v2843 = vpack.c.b16 %v2662, %v2661
    %v2844 = vpack.c.b16 %v2664, %v2663
    %v2845 = vpack.c.b16 %v2666, %v2665
    %v2846 = vpack.c.b16 %v2668, %v2667
    %v2847 = vpack.c.b16 %v2670, %v2669
    %v2848 = vpack.c.b16 %v2672, %v2671
    %v2849 = vpack.c.b16 %v2674, %v2673
    %v2850 = vpack.c.b16 %v2676, %v2675
    %v2851 = vpack.c.b16 %v2678, %v2677
    %v2852 = vpack.c.b16 %v2680, %v2679
    %v2853 = vpack.c.b16 %v2682, %v2681
    %v2854 = vpack.c.b16 %v2684, %v2683
    %v2855 = vpack.c.b16 %v2686, %v2685
    %v2856 = vpack.c.b16 %v2688, %v2687
    %v2857 = vpack.c.b16 %v2690, %v2689
    %v2858 = vpack.c.b16 %v2692, %v2691
    %v2859 = vpack.c.b16 %v2694, %v2693
    %v2860 = vpack.c.b16 %v2696, %v2695
    %v2861 = vpack.c.b16 %v2698, %v2697
    %v2862 = vpack.c.b16 %v2700, %v2699
    %v2863 = vpack.c.b16 %v2702, %v2701
    %v2864 = vpack.c.b16 %v2704, %v2703
    %v2865 = vpack.c.b16 %v2706, %v2705
    %v2866 = vpack.c.b16 %v2708, %v2707
    %v2867 = vpack.c.b16 %v2710, %v2709
    %v2868 = vpack.c.b16 %v2712, %v2711
    %v2869 = vpack.c.b16 %v2714, %v2713
    %v2870 = vpack.c.b16 %v2716, %v2715
    %v2871 = vpack.c.b16 %v2718, %v2717
    %v2872 = vpack.c.b16 %v2720, %v2719
    %v2873 = vpack.c.b16 %v2722, %v2721
    %v2874 = vpack.c.b16 %v2724, %v2723
    %v2875 = vpack.c.b16 %v2726, %v2725
    %v2876 = vpack.c.b16 %v2728, %v2727
    %v2877 = vpack.c.b16 %v2730, %v2729
    %v2878 = vpack.c.b16 %v2732, %v2731
    %v2879 = vpack.c.b16 %v2734, %v2733
    %v2880 = vpack.c.b16 %v2736, %v2735
    %v2881 = vpack.c.b16 %v2738, %v2737
    %v2882 = vpack.c.b16 %v2740, %v2739
    %v2883 = vpack.c.b16 %v2742, %v2741
    %v2884 = vpack.c.b16 %v2744, %v2743
    %v2885 = vpack.c.b16 %v2746, %v2745
    %v2886 = vpack.c.b16 %v2748, %v2747
    %v2887 = vpack.c.b16 %v2750, %v2749
    %v2888 = vpack.c.b16 %v2752, %v2751
    %v2889 = vpack.c.b16 %v2754, %v2753
    %v2890 = vpack.c.b16 %v2756, %v2755
    %v2891 = vpack.c.b16 %v2758, %v2757
    %v2892 = vpack.c.b16 %v2760, %v2759
    %v2893 = vpack.c.b16 %v2762, %v2761
    %v2894 = vpack.c.b16 %v2764, %v2763
    %v2895 = vpack.c.b16 %v2766, %v2765
    %v2896 = vpack.c.b16 %v2768, %v2767
    %3025 = vmatpush.bf16.msra.mxu0 %v2776
    %3026 = vmatpush.bf16.msra.mxu0 %v2775
    %3027 = vmatpush.bf16.msra.mxu0 %v2774
    %3028 = vmatpush.bf16.msra.mxu0 %v2773
    %3029 = vmatpush.bf16.msra.mxu0 %v2772
    %3030 = vmatpush.bf16.msra.mxu0 %v2771
    %3031 = vmatpush.bf16.msra.mxu0 %v2770
    %3032 = vmatpush.bf16.msra.mxu0 %v2769
    %3033 = vmatmul.bf16.gmra.mxu0 %v1981
    %v3034 = vpop.f32.mrf.mxu0
    %v3035 = vadd.f32 %v2255, %v3034
    %v3036 = vpop.f32.mrf.mxu0
    %3037 = vdwg.mxu0
    %3038 = vmatpush.bf16.msra.mxu0 %v2784
    %3039 = vmatpush.bf16.msra.mxu0 %v2783
    %3040 = vmatpush.bf16.msra.mxu0 %v2782
    %3041 = vmatpush.bf16.msra.mxu0 %v2781
    %3042 = vmatpush.bf16.msra.mxu0 %v2780
    %3043 = vmatpush.bf16.msra.mxu0 %v2779
    %3044 = vmatpush.bf16.msra.mxu0 %v2778
    %3045 = vmatpush.bf16.msra.mxu0 %v2777
    %3046 = vmatmul.bf16.gmra.mxu0 %v1982
    %v3047 = vpop.f32.mrf.mxu0
    %v3048 = vadd.f32 %v3035, %v3047
    %v3049 = vpop.f32.mrf.mxu0
    %3050 = vdwg.mxu0
    %3051 = vmatpush.bf16.msra.mxu0 %v2792
    %3052 = vmatpush.bf16.msra.mxu0 %v2791
    %3053 = vmatpush.bf16.msra.mxu0 %v2790
    %3054 = vmatpush.bf16.msra.mxu0 %v2789
    %3055 = vmatpush.bf16.msra.mxu0 %v2788
    %3056 = vmatpush.bf16.msra.mxu0 %v2787
    %3057 = vmatpush.bf16.msra.mxu0 %v2786
    %3058 = vmatpush.bf16.msra.mxu0 %v2785
    %3059 = vmatmul.bf16.gmra.mxu0 %v1983
    %v3060 = vpop.f32.mrf.mxu0
    %v3061 = vadd.f32 %v3048, %v3060
    %v3062 = vpop.f32.mrf.mxu0
    %3063 = vdwg.mxu0
    %3064 = vmatpush.bf16.msra.mxu0 %v2800
    %3065 = vmatpush.bf16.msra.mxu0 %v2799
    %3066 = vmatpush.bf16.msra.mxu0 %v2798
    %3067 = vmatpush.bf16.msra.mxu0 %v2797
    %3068 = vmatpush.bf16.msra.mxu0 %v2796
    %3069 = vmatpush.bf16.msra.mxu0 %v2795
    %3070 = vmatpush.bf16.msra.mxu0 %v2794
    %3071 = vmatpush.bf16.msra.mxu0 %v2793
    %3072 = vmatmul.bf16.gmra.mxu0 %v1984
    %v3073 = vpop.f32.mrf.mxu0
    %v3074 = vadd.f32 %v3061, %v3073
    %v3075 = vpop.f32.mrf.mxu0
    %3076 = vdwg.mxu0
    %3077 = vmatpush.bf16.msra.mxu0 %v2808
    %3078 = vmatpush.bf16.msra.mxu0 %v2807
    %3079 = vmatpush.bf16.msra.mxu0 %v2806
    %3080 = vmatpush.bf16.msra.mxu0 %v2805
    %3081 = vmatpush.bf16.msra.mxu0 %v2804
    %3082 = vmatpush.bf16.msra.mxu0 %v2803
    %3083 = vmatpush.bf16.msra.mxu0 %v2802
    %3084 = vmatpush.bf16.msra.mxu0 %v2801
    %3085 = vmatmul.bf16.gmra.mxu0 %v1985
    %v3086 = vpop.f32.mrf.mxu0
    %v3087 = vadd.f32 %v3074, %v3086
    %v3088 = vpop.f32.mrf.mxu0
    %3089 = vdwg.mxu0
    %3090 = vmatpush.bf16.msra.mxu0 %v2816
    %3091 = vmatpush.bf16.msra.mxu0 %v2815
    %3092 = vmatpush.bf16.msra.mxu0 %v2814
    %3093 = vmatpush.bf16.msra.mxu0 %v2813
    %3094 = vmatpush.bf16.msra.mxu0 %v2812
    %3095 = vmatpush.bf16.msra.mxu0 %v2811
    %3096 = vmatpush.bf16.msra.mxu0 %v2810
    %3097 = vmatpush.bf16.msra.mxu0 %v2809
    %3098 = vmatmul.bf16.gmra.mxu0 %v1986
    %v3099 = vpop.f32.mrf.mxu0
    %v3100 = vadd.f32 %v3087, %v3099
    %v3101 = vpop.f32.mrf.mxu0
    %3102 = vdwg.mxu0
    %3103 = vmatpush.bf16.msra.mxu0 %v2824
    %3104 = vmatpush.bf16.msra.mxu0 %v2823
    %3105 = vmatpush.bf16.msra.mxu0 %v2822
    %3106 = vmatpush.bf16.msra.mxu0 %v2821
    %3107 = vmatpush.bf16.msra.mxu0 %v2820
    %3108 = vmatpush.bf16.msra.mxu0 %v2819
    %3109 = vmatpush.bf16.msra.mxu0 %v2818
    %3110 = vmatpush.bf16.msra.mxu0 %v2817
    %3111 = vmatmul.bf16.gmra.mxu0 %v1987
    %v3112 = vpop.f32.mrf.mxu0
    %v3113 = vadd.f32 %v3100, %v3112
    %v3114 = vpop.f32.mrf.mxu0
    %3115 = vdwg.mxu0
    %3116 = vmatpush.bf16.msra.mxu0 %v2832
    %3117 = vmatpush.bf16.msra.mxu0 %v2831
    %3118 = vmatpush.bf16.msra.mxu0 %v2830
    %3119 = vmatpush.bf16.msra.mxu0 %v2829
    %3120 = vmatpush.bf16.msra.mxu0 %v2828
    %3121 = vmatpush.bf16.msra.mxu0 %v2827
    %3122 = vmatpush.bf16.msra.mxu0 %v2826
    %3123 = vmatpush.bf16.msra.mxu0 %v2825
    %3124 = vmatmul.bf16.gmra.mxu0 %v1988
    %v3125 = vpop.f32.mrf.mxu0
    %v3126 = vadd.f32 %v3113, %v3125
    %v3127 = vpop.f32.mrf.mxu0
    %3128 = vdwg.mxu0
    %3129 = vmatpush.bf16.msra.mxu0 %v2840
    %3130 = vmatpush.bf16.msra.mxu0 %v2839
    %3131 = vmatpush.bf16.msra.mxu0 %v2838
    %3132 = vmatpush.bf16.msra.mxu0 %v2837
    %3133 = vmatpush.bf16.msra.mxu0 %v2836
    %3134 = vmatpush.bf16.msra.mxu0 %v2835
    %3135 = vmatpush.bf16.msra.mxu0 %v2834
    %3136 = vmatpush.bf16.msra.mxu0 %v2833
    %3137 = vmatmul.bf16.gmra.mxu0 %v1989
    %v3138 = vpop.f32.mrf.mxu0
    %v3139 = vadd.f32 %v3126, %v3138
    %v3140 = vpop.f32.mrf.mxu0
    %3141 = vdwg.mxu0
    %3142 = vmatpush.bf16.msra.mxu0 %v2848
    %3143 = vmatpush.bf16.msra.mxu0 %v2847
    %3144 = vmatpush.bf16.msra.mxu0 %v2846
    %3145 = vmatpush.bf16.msra.mxu0 %v2845
    %3146 = vmatpush.bf16.msra.mxu0 %v2844
    %3147 = vmatpush.bf16.msra.mxu0 %v2843
    %3148 = vmatpush.bf16.msra.mxu0 %v2842
    %3149 = vmatpush.bf16.msra.mxu0 %v2841
    %3150 = vmatmul.bf16.gmra.mxu0 %v1990
    %v3151 = vpop.f32.mrf.mxu0
    %v3152 = vadd.f32 %v3139, %v3151
    %v3153 = vpop.f32.mrf.mxu0
    %3154 = vdwg.mxu0
    %3155 = vmatpush.bf16.msra.mxu0 %v2856
    %3156 = vmatpush.bf16.msra.mxu0 %v2855
    %3157 = vmatpush.bf16.msra.mxu0 %v2854
    %3158 = vmatpush.bf16.msra.mxu0 %v2853
    %3159 = vmatpush.bf16.msra.mxu0 %v2852
    %3160 = vmatpush.bf16.msra.mxu0 %v2851
    %3161 = vmatpush.bf16.msra.mxu0 %v2850
    %3162 = vmatpush.bf16.msra.mxu0 %v2849
    %3163 = vmatmul.bf16.gmra.mxu0 %v1991
    %v3164 = vpop.f32.mrf.mxu0
    %v3165 = vadd.f32 %v3152, %v3164
    %v3166 = vpop.f32.mrf.mxu0
    %3167 = vdwg.mxu0
    %3168 = vmatpush.bf16.msra.mxu0 %v2864
    %3169 = vmatpush.bf16.msra.mxu0 %v2863
    %3170 = vmatpush.bf16.msra.mxu0 %v2862
    %3171 = vmatpush.bf16.msra.mxu0 %v2861
    %3172 = vmatpush.bf16.msra.mxu0 %v2860
    %3173 = vmatpush.bf16.msra.mxu0 %v2859
    %3174 = vmatpush.bf16.msra.mxu0 %v2858
    %3175 = vmatpush.bf16.msra.mxu0 %v2857
    %3176 = vmatmul.bf16.gmra.mxu0 %v1992
    %v3177 = vpop.f32.mrf.mxu0
    %v3178 = vadd.f32 %v3165, %v3177
    %v3179 = vpop.f32.mrf.mxu0
    %3180 = vdwg.mxu0
    %3181 = vmatpush.bf16.msra.mxu0 %v2872
    %3182 = vmatpush.bf16.msra.mxu0 %v2871
    %3183 = vmatpush.bf16.msra.mxu0 %v2870
    %3184 = vmatpush.bf16.msra.mxu0 %v2869
    %3185 = vmatpush.bf16.msra.mxu0 %v2868
    %3186 = vmatpush.bf16.msra.mxu0 %v2867
    %3187 = vmatpush.bf16.msra.mxu0 %v2866
    %3188 = vmatpush.bf16.msra.mxu0 %v2865
    %3189 = vmatmul.bf16.gmra.mxu0 %v1993
    %v3190 = vpop.f32.mrf.mxu0
    %v3191 = vadd.f32 %v3178, %v3190
    %v3192 = vpop.f32.mrf.mxu0
    %3193 = vdwg.mxu0
    %3194 = vmatpush.bf16.msra.mxu0 %v2880
    %3195 = vmatpush.bf16.msra.mxu0 %v2879
    %3196 = vmatpush.bf16.msra.mxu0 %v2878
    %3197 = vmatpush.bf16.msra.mxu0 %v2877
    %3198 = vmatpush.bf16.msra.mxu0 %v2876
    %3199 = vmatpush.bf16.msra.mxu0 %v2875
    %3200 = vmatpush.bf16.msra.mxu0 %v2874
    %3201 = vmatpush.bf16.msra.mxu0 %v2873
    %3202 = vmatmul.bf16.gmra.mxu0 %v1994
    %v3203 = vpop.f32.mrf.mxu0
    %v3204 = vadd.f32 %v3191, %v3203
    %v3205 = vpop.f32.mrf.mxu0
    %3206 = vdwg.mxu0
    %3207 = vmatpush.bf16.msra.mxu0 %v2888
    %3208 = vmatpush.bf16.msra.mxu0 %v2887
    %3209 = vmatpush.bf16.msra.mxu0 %v2886
    %3210 = vmatpush.bf16.msra.mxu0 %v2885
    %3211 = vmatpush.bf16.msra.mxu0 %v2884
    %3212 = vmatpush.bf16.msra.mxu0 %v2883
    %3213 = vmatpush.bf16.msra.mxu0 %v2882
    %3214 = vmatpush.bf16.msra.mxu0 %v2881
    %3215 = vmatmul.bf16.gmra.mxu0 %v1995
    %v3216 = vpop.f32.mrf.mxu0
    %v3217 = vadd.f32 %v3204, %v3216
    %v3218 = vpop.f32.mrf.mxu0
    %3219 = vdwg.mxu0
    %3220 = vmatpush.bf16.msra.mxu0 %v2896
    %3221 = vmatpush.bf16.msra.mxu0 %v2895
    %3222 = vmatpush.bf16.msra.mxu0 %v2894
    %3223 = vmatpush.bf16.msra.mxu0 %v2893
    %3224 = vmatpush.bf16.msra.mxu0 %v2892
    %3225 = vmatpush.bf16.msra.mxu0 %v2891
    %3226 = vmatpush.bf16.msra.mxu0 %v2890
    %3227 = vmatpush.bf16.msra.mxu0 %v2889
    %3228 = vmatmul.bf16.gmra.mxu0 %v1996
    %v3229 = vpop.f32.mrf.mxu0
    %v3230 = vadd.f32 %v3217, %v3229
    %v3231 = vpop.f32.mrf.mxu0
    %3232 = vdwg.mxu0
    %v3233 = vadd.f32 %v951, %v3230
    %v3234 = vld [vmem:[%s13] sm:$0x1]
    %v3235 = vld [vmem:[%s14] sm:$0x1]
    %3236 = vadd.xlane.f32.xlu0 %v3233
    %v3237 = vpop.xlane.xlu0 %3236
    %v3238 = vmul.f32 %v3237, %v925
    %v3239 = vsub.f32 %v3233, %v3238
    %v3240 = vmul.f32 %v3239, %v3239
    %3241 = vadd.xlane.f32.xlu0 %v3240
    %v3242 = vpop.xlane.xlu0 %3241
    %v3243 = vmul.f32 %v3242, %v925
    %v3244 = vadd.f32 %v3243, 1e-05
    %v3245 = vrsqrt.pop %v3244
    %v3246 = vmul.f32 %v3245, %v3244
    %v3247 = vmul.f32 %v3246, %v3245
    %v3248 = vmul.f32 0.5, %v3247
    %v3249 = vsub.f32 1.5, %v3248
    %v3250 = vmul.f32 %v3245, %v3249
    %vm3251 = vweird.f32 %v3244
    %vm3252 = vweird.f32 %v3245
    %vm3253 = vmor %vm3251, %vm3252
    %v3254 = vsel %vm3253, %v3245, %v3250
    %v3255 = vmul.f32 %v3239, %v3254
    %v3257 = vperm.slane %v3234, 0
    %v3259 = vmul.f32 %v3255, %v3257
    %v3261 = vperm.slane %v3235, 0
    %v3263 = vadd.f32 %v3259, %v3261
    %v3264 = vpack.c.bf16 %v3263, %v3263
    %s3265 = scalar_lea.vmem [#allocation2], 64
    %v3266 = vld [vmem:[%s3265] sm:$0xf]
    %v3267 = vld [vmem:[%s3265 + $0x4] sm:$0xf]
    %v3268 = vld [vmem:[%s3265 + $0x8] sm:$0xf]
    %v3269 = vld [vmem:[%s3265 + $0xc] sm:$0xf]
    %v3270 = vld [vmem:[%s3265 + $0x10] sm:$0xf]
    %v3271 = vld [vmem:[%s3265 + $0x14] sm:$0xf]
    %v3272 = vld [vmem:[%s3265 + $0x18] sm:$0xf]
    %v3273 = vld [vmem:[%s3265 + $0x1c] sm:$0xf]
    %v3274 = vld [vmem:[%s3265 + $0x20] sm:$0xf]
    %v3275 = vld [vmem:[%s3265 + $0x24] sm:$0xf]
    %v3276 = vld [vmem:[%s3265 + $0x28] sm:$0xf]
    %v3277 = vld [vmem:[%s3265 + $0x2c] sm:$0xf]
    %v3278 = vld [vmem:[%s3265 + $0x30] sm:$0xf]
    %v3279 = vld [vmem:[%s3265 + $0x34] sm:$0xf]
    %v3280 = vld [vmem:[%s3265 + $0x38] sm:$0xf]
    %v3281 = vld [vmem:[%s3265 + $0x3c] sm:$0xf]
    %s3282 = scalar_lea.vmem %s4, 1
    %v3283 = vld [vmem:[%s3282] sm:$0x1]
    %v3285 = vperm.slane %v3283, 0
    %v3303 = vunpack.c.l.b16 %v3266
    %v3304 = vunpack.c.l.b16 %v3267
    %v3305 = vunpack.c.l.b16 %v3268
    %v3306 = vunpack.c.l.b16 %v3269
    %v3307 = vunpack.c.l.b16 %v3270
    %v3308 = vunpack.c.l.b16 %v3271
    %v3309 = vunpack.c.l.b16 %v3272
    %v3310 = vunpack.c.l.b16 %v3273
    %v3311 = vunpack.c.l.b16 %v3274
    %v3312 = vunpack.c.l.b16 %v3275
    %v3313 = vunpack.c.l.b16 %v3276
    %v3314 = vunpack.c.l.b16 %v3277
    %v3315 = vunpack.c.l.b16 %v3278
    %v3316 = vunpack.c.l.b16 %v3279
    %v3317 = vunpack.c.l.b16 %v3280
    %v3318 = vunpack.c.l.b16 %v3281
    %v3319 = vpack.c.b16 %v3304, %v3303
    %v3320 = vpack.c.b16 %v3306, %v3305
    %v3321 = vpack.c.b16 %v3308, %v3307
    %v3322 = vpack.c.b16 %v3310, %v3309
    %v3323 = vpack.c.b16 %v3312, %v3311
    %v3324 = vpack.c.b16 %v3314, %v3313
    %v3325 = vpack.c.b16 %v3316, %v3315
    %v3326 = vpack.c.b16 %v3318, %v3317
    %3335 = vmatpush.bf16.msra.mxu0 %v3326
    %3336 = vmatpush.bf16.msra.mxu0 %v3325
    %3337 = vmatpush.bf16.msra.mxu0 %v3324
    %3338 = vmatpush.bf16.msra.mxu0 %v3323
    %3339 = vmatpush.bf16.msra.mxu0 %v3322
    %3340 = vmatpush.bf16.msra.mxu0 %v3321
    %3341 = vmatpush.bf16.msra.mxu0 %v3320
    %3342 = vmatpush.bf16.msra.mxu0 %v3319
    %3343 = vmatmul.bf16.gmra.mxu0 %v3264
    %v3344 = vpop.f32.mrf.mxu0
    %v3345 = vadd.f32 %v3285, %v3344
    %v3346 = vpop.f32.mrf.mxu0
    %3347 = vdwg.mxu0
    %v3348 = vpack.c.bf16 %v3345, %v3345
    %s3349 = scalar_lea.vmem [#allocation5], 64
    %v3350 = vld [vmem:[%s3349] sm:$0xf]
    %v3351 = vld [vmem:[%s3349 + $0x4] sm:$0xf]
    %v3352 = vld [vmem:[%s3349 + $0x8] sm:$0xf]
    %v3353 = vld [vmem:[%s3349 + $0xc] sm:$0xf]
    %v3354 = vld [vmem:[%s3349 + $0x10] sm:$0xf]
    %v3355 = vld [vmem:[%s3349 + $0x14] sm:$0xf]
    %v3356 = vld [vmem:[%s3349 + $0x18] sm:$0xf]
    %v3357 = vld [vmem:[%s3349 + $0x1c] sm:$0xf]
    %v3358 = vld [vmem:[%s3349 + $0x20] sm:$0xf]
    %v3359 = vld [vmem:[%s3349 + $0x24] sm:$0xf]
    %v3360 = vld [vmem:[%s3349 + $0x28] sm:$0xf]
    %v3361 = vld [vmem:[%s3349 + $0x2c] sm:$0xf]
    %v3362 = vld [vmem:[%s3349 + $0x30] sm:$0xf]
    %v3363 = vld [vmem:[%s3349 + $0x34] sm:$0xf]
    %v3364 = vld [vmem:[%s3349 + $0x38] sm:$0xf]
    %v3365 = vld [vmem:[%s3349 + $0x3c] sm:$0xf]
    %s3366 = scalar_lea.vmem %s6, 1
    %v3367 = vld [vmem:[%s3366] sm:$0x1]
    %v3369 = vperm.slane %v3367, 0
    %v3387 = vunpack.c.l.b16 %v3350
    %v3388 = vunpack.c.l.b16 %v3351
    %v3389 = vunpack.c.l.b16 %v3352
    %v3390 = vunpack.c.l.b16 %v3353
    %v3391 = vunpack.c.l.b16 %v3354
    %v3392 = vunpack.c.l.b16 %v3355
    %v3393 = vunpack.c.l.b16 %v3356
    %v3394 = vunpack.c.l.b16 %v3357
    %v3395 = vunpack.c.l.b16 %v3358
    %v3396 = vunpack.c.l.b16 %v3359
    %v3397 = vunpack.c.l.b16 %v3360
    %v3398 = vunpack.c.l.b16 %v3361
    %v3399 = vunpack.c.l.b16 %v3362
    %v3400 = vunpack.c.l.b16 %v3363
    %v3401 = vunpack.c.l.b16 %v3364
    %v3402 = vunpack.c.l.b16 %v3365
    %v3403 = vpack.c.b16 %v3388, %v3387
    %v3404 = vpack.c.b16 %v3390, %v3389
    %v3405 = vpack.c.b16 %v3392, %v3391
    %v3406 = vpack.c.b16 %v3394, %v3393
    %v3407 = vpack.c.b16 %v3396, %v3395
    %v3408 = vpack.c.b16 %v3398, %v3397
    %v3409 = vpack.c.b16 %v3400, %v3399
    %v3410 = vpack.c.b16 %v3402, %v3401
    %3419 = vmatpush.bf16.msra.mxu0 %v3410
    %3420 = vmatpush.bf16.msra.mxu0 %v3409
    %3421 = vmatpush.bf16.msra.mxu0 %v3408
    %3422 = vmatpush.bf16.msra.mxu0 %v3407
    %3423 = vmatpush.bf16.msra.mxu0 %v3406
    %3424 = vmatpush.bf16.msra.mxu0 %v3405
    %3425 = vmatpush.bf16.msra.mxu0 %v3404
    %3426 = vmatpush.bf16.msra.mxu0 %v3403
    %3427 = vmatmul.bf16.gmra.mxu0 %v3348
    %v3428 = vpop.f32.mrf.mxu0
    %v3429 = vadd.f32 %v3369, %v3428
    %v3430 = vpop.f32.mrf.mxu0
    %3431 = vdwg.mxu0
    %v3432 = vadd.f32 %v3263, %v3429
    %s3433 = scalar_lea.vmem %s7, 1
    %v3434 = vld [vmem:[%s3433] sm:$0x1]
    %s3435 = scalar_lea.vmem %s8, 1
    %v3436 = vld [vmem:[%s3435] sm:$0x1]
    %3437 = vadd.xlane.f32.xlu0 %v3432
    %v3438 = vpop.xlane.xlu0 %3437
    %v3439 = vmul.f32 %v3438, %v925
    %v3440 = vsub.f32 %v3432, %v3439
    %v3441 = vmul.f32 %v3440, %v3440
    %3442 = vadd.xlane.f32.xlu0 %v3441
    %v3443 = vpop.xlane.xlu0 %3442
    %v3444 = vmul.f32 %v3443, %v925
    %v3445 = vadd.f32 %v3444, 1e-05
    %v3446 = vrsqrt.pop %v3445
    %v3447 = vmul.f32 %v3446, %v3445
    %v3448 = vmul.f32 %v3447, %v3446
    %v3449 = vmul.f32 0.5, %v3448
    %v3450 = vsub.f32 1.5, %v3449
    %v3451 = vmul.f32 %v3446, %v3450
    %vm3452 = vweird.f32 %v3445
    %vm3453 = vweird.f32 %v3446
    %vm3454 = vmor %vm3452, %vm3453
    %v3455 = vsel %vm3454, %v3446, %v3451
    %v3456 = vmul.f32 %v3440, %v3455
    %v3458 = vperm.slane %v3434, 0
    %v3460 = vmul.f32 %v3456, %v3458
    %v3462 = vperm.slane %v3436, 0
    %v3464 = vadd.f32 %v3460, %v3462
    %v3465 = vpack.c.bf16 %v3464, %v3464
    %s3466 = scalar_lea.vmem [#allocation7], 1024
    %v3467 = vld [vmem:[%s3466] sm:$0xff]
    %v3468 = vld [vmem:[%s3466 + $0x8] sm:$0xff]
    %v3469 = vld [vmem:[%s3466 + $0x10] sm:$0xff]
    %v3470 = vld [vmem:[%s3466 + $0x18] sm:$0xff]
    %v3471 = vld [vmem:[%s3466 + $0x20] sm:$0xff]
    %v3472 = vld [vmem:[%s3466 + $0x28] sm:$0xff]
    %v3473 = vld [vmem:[%s3466 + $0x30] sm:$0xff]
    %v3474 = vld [vmem:[%s3466 + $0x38] sm:$0xff]
    %v3475 = vld [vmem:[%s3466 + $0x40] sm:$0xff]
    %v3476 = vld [vmem:[%s3466 + $0x48] sm:$0xff]
    %v3477 = vld [vmem:[%s3466 + $0x50] sm:$0xff]
    %v3478 = vld [vmem:[%s3466 + $0x58] sm:$0xff]
    %v3479 = vld [vmem:[%s3466 + $0x60] sm:$0xff]
    %v3480 = vld [vmem:[%s3466 + $0x68] sm:$0xff]
    %v3481 = vld [vmem:[%s3466 + $0x70] sm:$0xff]
    %v3482 = vld [vmem:[%s3466 + $0x78] sm:$0xff]
    %v3483 = vld [vmem:[%s3466 + $0x80] sm:$0xff]
    %v3484 = vld [vmem:[%s3466 + $0x88] sm:$0xff]
    %v3485 = vld [vmem:[%s3466 + $0x90] sm:$0xff]
    %v3486 = vld [vmem:[%s3466 + $0x98] sm:$0xff]
    %v3487 = vld [vmem:[%s3466 + $0xa0] sm:$0xff]
    %v3488 = vld [vmem:[%s3466 + $0xa8] sm:$0xff]
    %v3489 = vld [vmem:[%s3466 + $0xb0] sm:$0xff]
    %v3490 = vld [vmem:[%s3466 + $0xb8] sm:$0xff]
    %v3491 = vld [vmem:[%s3466 + $0xc0] sm:$0xff]
    %v3492 = vld [vmem:[%s3466 + $0xc8] sm:$0xff]
    %v3493 = vld [vmem:[%s3466 + $0xd0] sm:$0xff]
    %v3494 = vld [vmem:[%s3466 + $0xd8] sm:$0xff]
    %v3495 = vld [vmem:[%s3466 + $0xe0] sm:$0xff]
    %v3496 = vld [vmem:[%s3466 + $0xe8] sm:$0xff]
    %v3497 = vld [vmem:[%s3466 + $0xf0] sm:$0xff]
    %v3498 = vld [vmem:[%s3466 + $0xf8] sm:$0xff]
    %v3499 = vld [vmem:[%s3466 + $0x100] sm:$0xff]
    %v3500 = vld [vmem:[%s3466 + $0x108] sm:$0xff]
    %v3501 = vld [vmem:[%s3466 + $0x110] sm:$0xff]
    %v3502 = vld [vmem:[%s3466 + $0x118] sm:$0xff]
    %v3503 = vld [vmem:[%s3466 + $0x120] sm:$0xff]
    %v3504 = vld [vmem:[%s3466 + $0x128] sm:$0xff]
    %v3505 = vld [vmem:[%s3466 + $0x130] sm:$0xff]
    %v3506 = vld [vmem:[%s3466 + $0x138] sm:$0xff]
    %v3507 = vld [vmem:[%s3466 + $0x140] sm:$0xff]
    %v3508 = vld [vmem:[%s3466 + $0x148] sm:$0xff]
    %v3509 = vld [vmem:[%s3466 + $0x150] sm:$0xff]
    %v3510 = vld [vmem:[%s3466 + $0x158] sm:$0xff]
    %v3511 = vld [vmem:[%s3466 + $0x160] sm:$0xff]
    %v3512 = vld [vmem:[%s3466 + $0x168] sm:$0xff]
    %v3513 = vld [vmem:[%s3466 + $0x170] sm:$0xff]
    %v3514 = vld [vmem:[%s3466 + $0x178] sm:$0xff]
    %v3515 = vld [vmem:[%s3466 + $0x180] sm:$0xff]
    %v3516 = vld [vmem:[%s3466 + $0x188] sm:$0xff]
    %v3517 = vld [vmem:[%s3466 + $0x190] sm:$0xff]
    %v3518 = vld [vmem:[%s3466 + $0x198] sm:$0xff]
    %v3519 = vld [vmem:[%s3466 + $0x1a0] sm:$0xff]
    %v3520 = vld [vmem:[%s3466 + $0x1a8] sm:$0xff]
    %v3521 = vld [vmem:[%s3466 + $0x1b0] sm:$0xff]
    %v3522 = vld [vmem:[%s3466 + $0x1b8] sm:$0xff]
    %v3523 = vld [vmem:[%s3466 + $0x1c0] sm:$0xff]
    %v3524 = vld [vmem:[%s3466 + $0x1c8] sm:$0xff]
    %v3525 = vld [vmem:[%s3466 + $0x1d0] sm:$0xff]
    %v3526 = vld [vmem:[%s3466 + $0x1d8] sm:$0xff]
    %v3527 = vld [vmem:[%s3466 + $0x1e0] sm:$0xff]
    %v3528 = vld [vmem:[%s3466 + $0x1e8] sm:$0xff]
    %v3529 = vld [vmem:[%s3466 + $0x1f0] sm:$0xff]
    %v3530 = vld [vmem:[%s3466 + $0x1f8] sm:$0xff]
    %v3531 = vld [vmem:[%s3466 + $0x200] sm:$0xff]
    %v3532 = vld [vmem:[%s3466 + $0x208] sm:$0xff]
    %v3533 = vld [vmem:[%s3466 + $0x210] sm:$0xff]
    %v3534 = vld [vmem:[%s3466 + $0x218] sm:$0xff]
    %v3535 = vld [vmem:[%s3466 + $0x220] sm:$0xff]
    %v3536 = vld [vmem:[%s3466 + $0x228] sm:$0xff]
    %v3537 = vld [vmem:[%s3466 + $0x230] sm:$0xff]
    %v3538 = vld [vmem:[%s3466 + $0x238] sm:$0xff]
    %v3539 = vld [vmem:[%s3466 + $0x240] sm:$0xff]
    %v3540 = vld [vmem:[%s3466 + $0x248] sm:$0xff]
    %v3541 = vld [vmem:[%s3466 + $0x250] sm:$0xff]
    %v3542 = vld [vmem:[%s3466 + $0x258] sm:$0xff]
    %v3543 = vld [vmem:[%s3466 + $0x260] sm:$0xff]
    %v3544 = vld [vmem:[%s3466 + $0x268] sm:$0xff]
    %v3545 = vld [vmem:[%s3466 + $0x270] sm:$0xff]
    %v3546 = vld [vmem:[%s3466 + $0x278] sm:$0xff]
    %v3547 = vld [vmem:[%s3466 + $0x280] sm:$0xff]
    %v3548 = vld [vmem:[%s3466 + $0x288] sm:$0xff]
    %v3549 = vld [vmem:[%s3466 + $0x290] sm:$0xff]
    %v3550 = vld [vmem:[%s3466 + $0x298] sm:$0xff]
    %v3551 = vld [vmem:[%s3466 + $0x2a0] sm:$0xff]
    %v3552 = vld [vmem:[%s3466 + $0x2a8] sm:$0xff]
    %v3553 = vld [vmem:[%s3466 + $0x2b0] sm:$0xff]
    %v3554 = vld [vmem:[%s3466 + $0x2b8] sm:$0xff]
    %v3555 = vld [vmem:[%s3466 + $0x2c0] sm:$0xff]
    %v3556 = vld [vmem:[%s3466 + $0x2c8] sm:$0xff]
    %v3557 = vld [vmem:[%s3466 + $0x2d0] sm:$0xff]
    %v3558 = vld [vmem:[%s3466 + $0x2d8] sm:$0xff]
    %v3559 = vld [vmem:[%s3466 + $0x2e0] sm:$0xff]
    %v3560 = vld [vmem:[%s3466 + $0x2e8] sm:$0xff]
    %v3561 = vld [vmem:[%s3466 + $0x2f0] sm:$0xff]
    %v3562 = vld [vmem:[%s3466 + $0x2f8] sm:$0xff]
    %v3563 = vld [vmem:[%s3466 + $0x300] sm:$0xff]
    %v3564 = vld [vmem:[%s3466 + $0x308] sm:$0xff]
    %v3565 = vld [vmem:[%s3466 + $0x310] sm:$0xff]
    %v3566 = vld [vmem:[%s3466 + $0x318] sm:$0xff]
    %v3567 = vld [vmem:[%s3466 + $0x320] sm:$0xff]
    %v3568 = vld [vmem:[%s3466 + $0x328] sm:$0xff]
    %v3569 = vld [vmem:[%s3466 + $0x330] sm:$0xff]
    %v3570 = vld [vmem:[%s3466 + $0x338] sm:$0xff]
    %v3571 = vld [vmem:[%s3466 + $0x340] sm:$0xff]
    %v3572 = vld [vmem:[%s3466 + $0x348] sm:$0xff]
    %v3573 = vld [vmem:[%s3466 + $0x350] sm:$0xff]
    %v3574 = vld [vmem:[%s3466 + $0x358] sm:$0xff]
    %v3575 = vld [vmem:[%s3466 + $0x360] sm:$0xff]
    %v3576 = vld [vmem:[%s3466 + $0x368] sm:$0xff]
    %v3577 = vld [vmem:[%s3466 + $0x370] sm:$0xff]
    %v3578 = vld [vmem:[%s3466 + $0x378] sm:$0xff]
    %v3579 = vld [vmem:[%s3466 + $0x380] sm:$0xff]
    %v3580 = vld [vmem:[%s3466 + $0x388] sm:$0xff]
    %v3581 = vld [vmem:[%s3466 + $0x390] sm:$0xff]
    %v3582 = vld [vmem:[%s3466 + $0x398] sm:$0xff]
    %v3583 = vld [vmem:[%s3466 + $0x3a0] sm:$0xff]
    %v3584 = vld [vmem:[%s3466 + $0x3a8] sm:$0xff]
    %v3585 = vld [vmem:[%s3466 + $0x3b0] sm:$0xff]
    %v3586 = vld [vmem:[%s3466 + $0x3b8] sm:$0xff]
    %v3587 = vld [vmem:[%s3466 + $0x3c0] sm:$0xff]
    %v3588 = vld [vmem:[%s3466 + $0x3c8] sm:$0xff]
    %v3589 = vld [vmem:[%s3466 + $0x3d0] sm:$0xff]
    %v3590 = vld [vmem:[%s3466 + $0x3d8] sm:$0xff]
    %v3591 = vld [vmem:[%s3466 + $0x3e0] sm:$0xff]
    %v3592 = vld [vmem:[%s3466 + $0x3e8] sm:$0xff]
    %v3593 = vld [vmem:[%s3466 + $0x3f0] sm:$0xff]
    %v3594 = vld [vmem:[%s3466 + $0x3f8] sm:$0xff]
    %s3595 = scalar_lea.vmem %s10, 16
    %v3596 = vld [vmem:[%s3595] sm:$0xff]
    %v3597 = vld [vmem:[%s3595 + $0x8] sm:$0xff]
    %v3600 = vperm.slane %v3596, 0
    %v3601 = vperm.slane %v3596, 1
    %v3602 = vperm.slane %v3596, 2
    %v3603 = vperm.slane %v3596, 3
    %v3604 = vperm.slane %v3596, 4
    %v3605 = vperm.slane %v3596, 5
    %v3606 = vperm.slane %v3596, 6
    %v3607 = vperm.slane %v3596, 7
    %v3608 = vperm.slane %v3597, 0
    %v3609 = vperm.slane %v3597, 1
    %v3610 = vperm.slane %v3597, 2
    %v3611 = vperm.slane %v3597, 3
    %v3612 = vperm.slane %v3597, 4
    %v3613 = vperm.slane %v3597, 5
    %v3614 = vperm.slane %v3597, 6
    %v3615 = vperm.slane %v3597, 7
    %v3760 = vunpack.c.l.b16 %v3467
    %v3761 = vunpack.c.h.b16 %v3467
    %v3762 = vunpack.c.l.b16 %v3468
    %v3763 = vunpack.c.h.b16 %v3468
    %v3764 = vunpack.c.l.b16 %v3469
    %v3765 = vunpack.c.h.b16 %v3469
    %v3766 = vunpack.c.l.b16 %v3470
    %v3767 = vunpack.c.h.b16 %v3470
    %v3768 = vunpack.c.l.b16 %v3471
    %v3769 = vunpack.c.h.b16 %v3471
    %v3770 = vunpack.c.l.b16 %v3472
    %v3771 = vunpack.c.h.b16 %v3472
    %v3772 = vunpack.c.l.b16 %v3473
    %v3773 = vunpack.c.h.b16 %v3473
    %v3774 = vunpack.c.l.b16 %v3474
    %v3775 = vunpack.c.h.b16 %v3474
    %v3776 = vunpack.c.l.b16 %v3475
    %v3777 = vunpack.c.h.b16 %v3475
    %v3778 = vunpack.c.l.b16 %v3476
    %v3779 = vunpack.c.h.b16 %v3476
    %v3780 = vunpack.c.l.b16 %v3477
    %v3781 = vunpack.c.h.b16 %v3477
    %v3782 = vunpack.c.l.b16 %v3478
    %v3783 = vunpack.c.h.b16 %v3478
    %v3784 = vunpack.c.l.b16 %v3479
    %v3785 = vunpack.c.h.b16 %v3479
    %v3786 = vunpack.c.l.b16 %v3480
    %v3787 = vunpack.c.h.b16 %v3480
    %v3788 = vunpack.c.l.b16 %v3481
    %v3789 = vunpack.c.h.b16 %v3481
    %v3790 = vunpack.c.l.b16 %v3482
    %v3791 = vunpack.c.h.b16 %v3482
    %v3792 = vunpack.c.l.b16 %v3483
    %v3793 = vunpack.c.h.b16 %v3483
    %v3794 = vunpack.c.l.b16 %v3484
    %v3795 = vunpack.c.h.b16 %v3484
    %v3796 = vunpack.c.l.b16 %v3485
    %v3797 = vunpack.c.h.b16 %v3485
    %v3798 = vunpack.c.l.b16 %v3486
    %v3799 = vunpack.c.h.b16 %v3486
    %v3800 = vunpack.c.l.b16 %v3487
    %v3801 = vunpack.c.h.b16 %v3487
    %v3802 = vunpack.c.l.b16 %v3488
    %v3803 = vunpack.c.h.b16 %v3488
    %v3804 = vunpack.c.l.b16 %v3489
    %v3805 = vunpack.c.h.b16 %v3489
    %v3806 = vunpack.c.l.b16 %v3490
    %v3807 = vunpack.c.h.b16 %v3490
    %v3808 = vunpack.c.l.b16 %v3491
    %v3809 = vunpack.c.h.b16 %v3491
    %v3810 = vunpack.c.l.b16 %v3492
    %v3811 = vunpack.c.h.b16 %v3492
    %v3812 = vunpack.c.l.b16 %v3493
    %v3813 = vunpack.c.h.b16 %v3493
    %v3814 = vunpack.c.l.b16 %v3494
    %v3815 = vunpack.c.h.b16 %v3494
    %v3816 = vunpack.c.l.b16 %v3495
    %v3817 = vunpack.c.h.b16 %v3495
    %v3818 = vunpack.c.l.b16 %v3496
    %v3819 = vunpack.c.h.b16 %v3496
    %v3820 = vunpack.c.l.b16 %v3497
    %v3821 = vunpack.c.h.b16 %v3497
    %v3822 = vunpack.c.l.b16 %v3498
    %v3823 = vunpack.c.h.b16 %v3498
    %v3824 = vunpack.c.l.b16 %v3499
    %v3825 = vunpack.c.h.b16 %v3499
    %v3826 = vunpack.c.l.b16 %v3500
    %v3827 = vunpack.c.h.b16 %v3500
    %v3828 = vunpack.c.l.b16 %v3501
    %v3829 = vunpack.c.h.b16 %v3501
    %v3830 = vunpack.c.l.b16 %v3502
    %v3831 = vunpack.c.h.b16 %v3502
    %v3832 = vunpack.c.l.b16 %v3503
    %v3833 = vunpack.c.h.b16 %v3503
    %v3834 = vunpack.c.l.b16 %v3504
    %v3835 = vunpack.c.h.b16 %v3504
    %v3836 = vunpack.c.l.b16 %v3505
    %v3837 = vunpack.c.h.b16 %v3505
    %v3838 = vunpack.c.l.b16 %v3506
    %v3839 = vunpack.c.h.b16 %v3506
    %v3840 = vunpack.c.l.b16 %v3507
    %v3841 = vunpack.c.h.b16 %v3507
    %v3842 = vunpack.c.l.b16 %v3508
    %v3843 = vunpack.c.h.b16 %v3508
    %v3844 = vunpack.c.l.b16 %v3509
    %v3845 = vunpack.c.h.b16 %v3509
    %v3846 = vunpack.c.l.b16 %v3510
    %v3847 = vunpack.c.h.b16 %v3510
    %v3848 = vunpack.c.l.b16 %v3511
    %v3849 = vunpack.c.h.b16 %v3511
    %v3850 = vunpack.c.l.b16 %v3512
    %v3851 = vunpack.c.h.b16 %v3512
    %v3852 = vunpack.c.l.b16 %v3513
    %v3853 = vunpack.c.h.b16 %v3513
    %v3854 = vunpack.c.l.b16 %v3514
    %v3855 = vunpack.c.h.b16 %v3514
    %v3856 = vunpack.c.l.b16 %v3515
    %v3857 = vunpack.c.h.b16 %v3515
    %v3858 = vunpack.c.l.b16 %v3516
    %v3859 = vunpack.c.h.b16 %v3516
    %v3860 = vunpack.c.l.b16 %v3517
    %v3861 = vunpack.c.h.b16 %v3517
    %v3862 = vunpack.c.l.b16 %v3518
    %v3863 = vunpack.c.h.b16 %v3518
    %v3864 = vunpack.c.l.b16 %v3519
    %v3865 = vunpack.c.h.b16 %v3519
    %v3866 = vunpack.c.l.b16 %v3520
    %v3867 = vunpack.c.h.b16 %v3520
    %v3868 = vunpack.c.l.b16 %v3521
    %v3869 = vunpack.c.h.b16 %v3521
    %v3870 = vunpack.c.l.b16 %v3522
    %v3871 = vunpack.c.h.b16 %v3522
    %v3872 = vunpack.c.l.b16 %v3523
    %v3873 = vunpack.c.h.b16 %v3523
    %v3874 = vunpack.c.l.b16 %v3524
    %v3875 = vunpack.c.h.b16 %v3524
    %v3876 = vunpack.c.l.b16 %v3525
    %v3877 = vunpack.c.h.b16 %v3525
    %v3878 = vunpack.c.l.b16 %v3526
    %v3879 = vunpack.c.h.b16 %v3526
    %v3880 = vunpack.c.l.b16 %v3527
    %v3881 = vunpack.c.h.b16 %v3527
    %v3882 = vunpack.c.l.b16 %v3528
    %v3883 = vunpack.c.h.b16 %v3528
    %v3884 = vunpack.c.l.b16 %v3529
    %v3885 = vunpack.c.h.b16 %v3529
    %v3886 = vunpack.c.l.b16 %v3530
    %v3887 = vunpack.c.h.b16 %v3530
    %v3888 = vunpack.c.l.b16 %v3531
    %v3889 = vunpack.c.h.b16 %v3531
    %v3890 = vunpack.c.l.b16 %v3532
    %v3891 = vunpack.c.h.b16 %v3532
    %v3892 = vunpack.c.l.b16 %v3533
    %v3893 = vunpack.c.h.b16 %v3533
    %v3894 = vunpack.c.l.b16 %v3534
    %v3895 = vunpack.c.h.b16 %v3534
    %v3896 = vunpack.c.l.b16 %v3535
    %v3897 = vunpack.c.h.b16 %v3535
    %v3898 = vunpack.c.l.b16 %v3536
    %v3899 = vunpack.c.h.b16 %v3536
    %v3900 = vunpack.c.l.b16 %v3537
    %v3901 = vunpack.c.h.b16 %v3537
    %v3902 = vunpack.c.l.b16 %v3538
    %v3903 = vunpack.c.h.b16 %v3538
    %v3904 = vunpack.c.l.b16 %v3539
    %v3905 = vunpack.c.h.b16 %v3539
    %v3906 = vunpack.c.l.b16 %v3540
    %v3907 = vunpack.c.h.b16 %v3540
    %v3908 = vunpack.c.l.b16 %v3541
    %v3909 = vunpack.c.h.b16 %v3541
    %v3910 = vunpack.c.l.b16 %v3542
    %v3911 = vunpack.c.h.b16 %v3542
    %v3912 = vunpack.c.l.b16 %v3543
    %v3913 = vunpack.c.h.b16 %v3543
    %v3914 = vunpack.c.l.b16 %v3544
    %v3915 = vunpack.c.h.b16 %v3544
    %v3916 = vunpack.c.l.b16 %v3545
    %v3917 = vunpack.c.h.b16 %v3545
    %v3918 = vunpack.c.l.b16 %v3546
    %v3919 = vunpack.c.h.b16 %v3546
    %v3920 = vunpack.c.l.b16 %v3547
    %v3921 = vunpack.c.h.b16 %v3547
    %v3922 = vunpack.c.l.b16 %v3548
    %v3923 = vunpack.c.h.b16 %v3548
    %v3924 = vunpack.c.l.b16 %v3549
    %v3925 = vunpack.c.h.b16 %v3549
    %v3926 = vunpack.c.l.b16 %v3550
    %v3927 = vunpack.c.h.b16 %v3550
    %v3928 = vunpack.c.l.b16 %v3551
    %v3929 = vunpack.c.h.b16 %v3551
    %v3930 = vunpack.c.l.b16 %v3552
    %v3931 = vunpack.c.h.b16 %v3552
    %v3932 = vunpack.c.l.b16 %v3553
    %v3933 = vunpack.c.h.b16 %v3553
    %v3934 = vunpack.c.l.b16 %v3554
    %v3935 = vunpack.c.h.b16 %v3554
    %v3936 = vunpack.c.l.b16 %v3555
    %v3937 = vunpack.c.h.b16 %v3555
    %v3938 = vunpack.c.l.b16 %v3556
    %v3939 = vunpack.c.h.b16 %v3556
    %v3940 = vunpack.c.l.b16 %v3557
    %v3941 = vunpack.c.h.b16 %v3557
    %v3942 = vunpack.c.l.b16 %v3558
    %v3943 = vunpack.c.h.b16 %v3558
    %v3944 = vunpack.c.l.b16 %v3559
    %v3945 = vunpack.c.h.b16 %v3559
    %v3946 = vunpack.c.l.b16 %v3560
    %v3947 = vunpack.c.h.b16 %v3560
    %v3948 = vunpack.c.l.b16 %v3561
    %v3949 = vunpack.c.h.b16 %v3561
    %v3950 = vunpack.c.l.b16 %v3562
    %v3951 = vunpack.c.h.b16 %v3562
    %v3952 = vunpack.c.l.b16 %v3563
    %v3953 = vunpack.c.h.b16 %v3563
    %v3954 = vunpack.c.l.b16 %v3564
    %v3955 = vunpack.c.h.b16 %v3564
    %v3956 = vunpack.c.l.b16 %v3565
    %v3957 = vunpack.c.h.b16 %v3565
    %v3958 = vunpack.c.l.b16 %v3566
    %v3959 = vunpack.c.h.b16 %v3566
    %v3960 = vunpack.c.l.b16 %v3567
    %v3961 = vunpack.c.h.b16 %v3567
    %v3962 = vunpack.c.l.b16 %v3568
    %v3963 = vunpack.c.h.b16 %v3568
    %v3964 = vunpack.c.l.b16 %v3569
    %v3965 = vunpack.c.h.b16 %v3569
    %v3966 = vunpack.c.l.b16 %v3570
    %v3967 = vunpack.c.h.b16 %v3570
    %v3968 = vunpack.c.l.b16 %v3571
    %v3969 = vunpack.c.h.b16 %v3571
    %v3970 = vunpack.c.l.b16 %v3572
    %v3971 = vunpack.c.h.b16 %v3572
    %v3972 = vunpack.c.l.b16 %v3573
    %v3973 = vunpack.c.h.b16 %v3573
    %v3974 = vunpack.c.l.b16 %v3574
    %v3975 = vunpack.c.h.b16 %v3574
    %v3976 = vunpack.c.l.b16 %v3575
    %v3977 = vunpack.c.h.b16 %v3575
    %v3978 = vunpack.c.l.b16 %v3576
    %v3979 = vunpack.c.h.b16 %v3576
    %v3980 = vunpack.c.l.b16 %v3577
    %v3981 = vunpack.c.h.b16 %v3577
    %v3982 = vunpack.c.l.b16 %v3578
    %v3983 = vunpack.c.h.b16 %v3578
    %v3984 = vunpack.c.l.b16 %v3579
    %v3985 = vunpack.c.h.b16 %v3579
    %v3986 = vunpack.c.l.b16 %v3580
    %v3987 = vunpack.c.h.b16 %v3580
    %v3988 = vunpack.c.l.b16 %v3581
    %v3989 = vunpack.c.h.b16 %v3581
    %v3990 = vunpack.c.l.b16 %v3582
    %v3991 = vunpack.c.h.b16 %v3582
    %v3992 = vunpack.c.l.b16 %v3583
    %v3993 = vunpack.c.h.b16 %v3583
    %v3994 = vunpack.c.l.b16 %v3584
    %v3995 = vunpack.c.h.b16 %v3584
    %v3996 = vunpack.c.l.b16 %v3585
    %v3997 = vunpack.c.h.b16 %v3585
    %v3998 = vunpack.c.l.b16 %v3586
    %v3999 = vunpack.c.h.b16 %v3586
    %v4000 = vunpack.c.l.b16 %v3587
    %v4001 = vunpack.c.h.b16 %v3587
    %v4002 = vunpack.c.l.b16 %v3588
    %v4003 = vunpack.c.h.b16 %v3588
    %v4004 = vunpack.c.l.b16 %v3589
    %v4005 = vunpack.c.h.b16 %v3589
    %v4006 = vunpack.c.l.b16 %v3590
    %v4007 = vunpack.c.h.b16 %v3590
    %v4008 = vunpack.c.l.b16 %v3591
    %v4009 = vunpack.c.h.b16 %v3591
    %v4010 = vunpack.c.l.b16 %v3592
    %v4011 = vunpack.c.h.b16 %v3592
    %v4012 = vunpack.c.l.b16 %v3593
    %v4013 = vunpack.c.h.b16 %v3593
    %v4014 = vunpack.c.l.b16 %v3594
    %v4015 = vunpack.c.h.b16 %v3594
    %v4016 = vpack.c.b16 %v3776, %v3760
    %v4017 = vpack.c.b16 %v3777, %v3761
    %v4018 = vpack.c.b16 %v3778, %v3762
    %v4019 = vpack.c.b16 %v3779, %v3763
    %v4020 = vpack.c.b16 %v3780, %v3764
    %v4021 = vpack.c.b16 %v3781, %v3765
    %v4022 = vpack.c.b16 %v3782, %v3766
    %v4023 = vpack.c.b16 %v3783, %v3767
    %v4024 = vpack.c.b16 %v3784, %v3768
    %v4025 = vpack.c.b16 %v3785, %v3769
    %v4026 = vpack.c.b16 %v3786, %v3770
    %v4027 = vpack.c.b16 %v3787, %v3771
    %v4028 = vpack.c.b16 %v3788, %v3772
    %v4029 = vpack.c.b16 %v3789, %v3773
    %v4030 = vpack.c.b16 %v3790, %v3774
    %v4031 = vpack.c.b16 %v3791, %v3775
    %v4032 = vpack.c.b16 %v3808, %v3792
    %v4033 = vpack.c.b16 %v3809, %v3793
    %v4034 = vpack.c.b16 %v3810, %v3794
    %v4035 = vpack.c.b16 %v3811, %v3795
    %v4036 = vpack.c.b16 %v3812, %v3796
    %v4037 = vpack.c.b16 %v3813, %v3797
    %v4038 = vpack.c.b16 %v3814, %v3798
    %v4039 = vpack.c.b16 %v3815, %v3799
    %v4040 = vpack.c.b16 %v3816, %v3800
    %v4041 = vpack.c.b16 %v3817, %v3801
    %v4042 = vpack.c.b16 %v3818, %v3802
    %v4043 = vpack.c.b16 %v3819, %v3803
    %v4044 = vpack.c.b16 %v3820, %v3804
    %v4045 = vpack.c.b16 %v3821, %v3805
    %v4046 = vpack.c.b16 %v3822, %v3806
    %v4047 = vpack.c.b16 %v3823, %v3807
    %v4048 = vpack.c.b16 %v3840, %v3824
    %v4049 = vpack.c.b16 %v3841, %v3825
    %v4050 = vpack.c.b16 %v3842, %v3826
    %v4051 = vpack.c.b16 %v3843, %v3827
    %v4052 = vpack.c.b16 %v3844, %v3828
    %v4053 = vpack.c.b16 %v3845, %v3829
    %v4054 = vpack.c.b16 %v3846, %v3830
    %v4055 = vpack.c.b16 %v3847, %v3831
    %v4056 = vpack.c.b16 %v3848, %v3832
    %v4057 = vpack.c.b16 %v3849, %v3833
    %v4058 = vpack.c.b16 %v3850, %v3834
    %v4059 = vpack.c.b16 %v3851, %v3835
    %v4060 = vpack.c.b16 %v3852, %v3836
    %v4061 = vpack.c.b16 %v3853, %v3837
    %v4062 = vpack.c.b16 %v3854, %v3838
    %v4063 = vpack.c.b16 %v3855, %v3839
    %v4064 = vpack.c.b16 %v3872, %v3856
    %v4065 = vpack.c.b16 %v3873, %v3857
    %v4066 = vpack.c.b16 %v3874, %v3858
    %v4067 = vpack.c.b16 %v3875, %v3859
    %v4068 = vpack.c.b16 %v3876, %v3860
    %v4069 = vpack.c.b16 %v3877, %v3861
    %v4070 = vpack.c.b16 %v3878, %v3862
    %v4071 = vpack.c.b16 %v3879, %v3863
    %v4072 = vpack.c.b16 %v3880, %v3864
    %v4073 = vpack.c.b16 %v3881, %v3865
    %v4074 = vpack.c.b16 %v3882, %v3866
    %v4075 = vpack.c.b16 %v3883, %v3867
    %v4076 = vpack.c.b16 %v3884, %v3868
    %v4077 = vpack.c.b16 %v3885, %v3869
    %v4078 = vpack.c.b16 %v3886, %v3870
    %v4079 = vpack.c.b16 %v3887, %v3871
    %v4080 = vpack.c.b16 %v3904, %v3888
    %v4081 = vpack.c.b16 %v3905, %v3889
    %v4082 = vpack.c.b16 %v3906, %v3890
    %v4083 = vpack.c.b16 %v3907, %v3891
    %v4084 = vpack.c.b16 %v3908, %v3892
    %v4085 = vpack.c.b16 %v3909, %v3893
    %v4086 = vpack.c.b16 %v3910, %v3894
    %v4087 = vpack.c.b16 %v3911, %v3895
    %v4088 = vpack.c.b16 %v3912, %v3896
    %v4089 = vpack.c.b16 %v3913, %v3897
    %v4090 = vpack.c.b16 %v3914, %v3898
    %v4091 = vpack.c.b16 %v3915, %v3899
    %v4092 = vpack.c.b16 %v3916, %v3900
    %v4093 = vpack.c.b16 %v3917, %v3901
    %v4094 = vpack.c.b16 %v3918, %v3902
    %v4095 = vpack.c.b16 %v3919, %v3903
    %v4096 = vpack.c.b16 %v3936, %v3920
    %v4097 = vpack.c.b16 %v3937, %v3921
    %v4098 = vpack.c.b16 %v3938, %v3922
    %v4099 = vpack.c.b16 %v3939, %v3923
    %v4100 = vpack.c.b16 %v3940, %v3924
    %v4101 = vpack.c.b16 %v3941, %v3925
    %v4102 = vpack.c.b16 %v3942, %v3926
    %v4103 = vpack.c.b16 %v3943, %v3927
    %v4104 = vpack.c.b16 %v3944, %v3928
    %v4105 = vpack.c.b16 %v3945, %v3929
    %v4106 = vpack.c.b16 %v3946, %v3930
    %v4107 = vpack.c.b16 %v3947, %v3931
    %v4108 = vpack.c.b16 %v3948, %v3932
    %v4109 = vpack.c.b16 %v3949, %v3933
    %v4110 = vpack.c.b16 %v3950, %v3934
    %v4111 = vpack.c.b16 %v3951, %v3935
    %v4112 = vpack.c.b16 %v3968, %v3952
    %v4113 = vpack.c.b16 %v3969, %v3953
    %v4114 = vpack.c.b16 %v3970, %v3954
    %v4115 = vpack.c.b16 %v3971, %v3955
    %v4116 = vpack.c.b16 %v3972, %v3956
    %v4117 = vpack.c.b16 %v3973, %v3957
    %v4118 = vpack.c.b16 %v3974, %v3958
    %v4119 = vpack.c.b16 %v3975, %v3959
    %v4120 = vpack.c.b16 %v3976, %v3960
    %v4121 = vpack.c.b16 %v3977, %v3961
    %v4122 = vpack.c.b16 %v3978, %v3962
    %v4123 = vpack.c.b16 %v3979, %v3963
    %v4124 = vpack.c.b16 %v3980, %v3964
    %v4125 = vpack.c.b16 %v3981, %v3965
    %v4126 = vpack.c.b16 %v3982, %v3966
    %v4127 = vpack.c.b16 %v3983, %v3967
    %v4128 = vpack.c.b16 %v4000, %v3984
    %v4129 = vpack.c.b16 %v4001, %v3985
    %v4130 = vpack.c.b16 %v4002, %v3986
    %v4131 = vpack.c.b16 %v4003, %v3987
    %v4132 = vpack.c.b16 %v4004, %v3988
    %v4133 = vpack.c.b16 %v4005, %v3989
    %v4134 = vpack.c.b16 %v4006, %v3990
    %v4135 = vpack.c.b16 %v4007, %v3991
    %v4136 = vpack.c.b16 %v4008, %v3992
    %v4137 = vpack.c.b16 %v4009, %v3993
    %v4138 = vpack.c.b16 %v4010, %v3994
    %v4139 = vpack.c.b16 %v4011, %v3995
    %v4140 = vpack.c.b16 %v4012, %v3996
    %v4141 = vpack.c.b16 %v4013, %v3997
    %v4142 = vpack.c.b16 %v4014, %v3998
    %v4143 = vpack.c.b16 %v4015, %v3999
    %4272 = vmatpush.bf16.msra.mxu0 %v4128
    %4273 = vmatpush.bf16.msra.mxu0 %v4112
    %4274 = vmatpush.bf16.msra.mxu0 %v4096
    %4275 = vmatpush.bf16.msra.mxu0 %v4080
    %4276 = vmatpush.bf16.msra.mxu0 %v4064
    %4277 = vmatpush.bf16.msra.mxu0 %v4048
    %4278 = vmatpush.bf16.msra.mxu0 %v4032
    %4279 = vmatpush.bf16.msra.mxu0 %v4016
    %4280 = vmatmul.bf16.gmra.mxu0 %v3465
    %v4281 = vpop.f32.mrf.mxu0
    %v4282 = vadd.f32 %v3600, %v4281
    %v4283 = vpop.f32.mrf.mxu0
    %4284 = vdwg.mxu0
    %4285 = vmatpush.bf16.msra.mxu0 %v4129
    %4286 = vmatpush.bf16.msra.mxu0 %v4113
    %4287 = vmatpush.bf16.msra.mxu0 %v4097
    %4288 = vmatpush.bf16.msra.mxu0 %v4081
    %4289 = vmatpush.bf16.msra.mxu0 %v4065
    %4290 = vmatpush.bf16.msra.mxu0 %v4049
    %4291 = vmatpush.bf16.msra.mxu0 %v4033
    %4292 = vmatpush.bf16.msra.mxu0 %v4017
    %4293 = vmatmul.bf16.gmra.mxu0 %v3465
    %v4294 = vpop.f32.mrf.mxu0
    %v4295 = vadd.f32 %v3601, %v4294
    %v4296 = vpop.f32.mrf.mxu0
    %4297 = vdwg.mxu0
    %4298 = vmatpush.bf16.msra.mxu0 %v4130
    %4299 = vmatpush.bf16.msra.mxu0 %v4114
    %4300 = vmatpush.bf16.msra.mxu0 %v4098
    %4301 = vmatpush.bf16.msra.mxu0 %v4082
    %4302 = vmatpush.bf16.msra.mxu0 %v4066
    %4303 = vmatpush.bf16.msra.mxu0 %v4050
    %4304 = vmatpush.bf16.msra.mxu0 %v4034
    %4305 = vmatpush.bf16.msra.mxu0 %v4018
    %4306 = vmatmul.bf16.gmra.mxu0 %v3465
    %v4307 = vpop.f32.mrf.mxu0
    %v4308 = vadd.f32 %v3602, %v4307
    %v4309 = vpop.f32.mrf.mxu0
    %4310 = vdwg.mxu0
    %4311 = vmatpush.bf16.msra.mxu0 %v4131
    %4312 = vmatpush.bf16.msra.mxu0 %v4115
    %4313 = vmatpush.bf16.msra.mxu0 %v4099
    %4314 = vmatpush.bf16.msra.mxu0 %v4083
    %4315 = vmatpush.bf16.msra.mxu0 %v4067
    %4316 = vmatpush.bf16.msra.mxu0 %v4051
    %4317 = vmatpush.bf16.msra.mxu0 %v4035
    %4318 = vmatpush.bf16.msra.mxu0 %v4019
    %4319 = vmatmul.bf16.gmra.mxu0 %v3465
    %v4320 = vpop.f32.mrf.mxu0
    %v4321 = vadd.f32 %v3603, %v4320
    %v4322 = vpop.f32.mrf.mxu0
    %4323 = vdwg.mxu0
    %4324 = vmatpush.bf16.msra.mxu0 %v4132
    %4325 = vmatpush.bf16.msra.mxu0 %v4116
    %4326 = vmatpush.bf16.msra.mxu0 %v4100
    %4327 = vmatpush.bf16.msra.mxu0 %v4084
    %4328 = vmatpush.bf16.msra.mxu0 %v4068
    %4329 = vmatpush.bf16.msra.mxu0 %v4052
    %4330 = vmatpush.bf16.msra.mxu0 %v4036
    %4331 = vmatpush.bf16.msra.mxu0 %v4020
    %4332 = vmatmul.bf16.gmra.mxu0 %v3465
    %v4333 = vpop.f32.mrf.mxu0
    %v4334 = vadd.f32 %v3604, %v4333
    %v4335 = vpop.f32.mrf.mxu0
    %4336 = vdwg.mxu0
    %4337 = vmatpush.bf16.msra.mxu0 %v4133
    %4338 = vmatpush.bf16.msra.mxu0 %v4117
    %4339 = vmatpush.bf16.msra.mxu0 %v4101
    %4340 = vmatpush.bf16.msra.mxu0 %v4085
    %4341 = vmatpush.bf16.msra.mxu0 %v4069
    %4342 = vmatpush.bf16.msra.mxu0 %v4053
    %4343 = vmatpush.bf16.msra.mxu0 %v4037
    %4344 = vmatpush.bf16.msra.mxu0 %v4021
    %4345 = vmatmul.bf16.gmra.mxu0 %v3465
    %v4346 = vpop.f32.mrf.mxu0
    %v4347 = vadd.f32 %v3605, %v4346
    %v4348 = vpop.f32.mrf.mxu0
    %4349 = vdwg.mxu0
    %4350 = vmatpush.bf16.msra.mxu0 %v4134
    %4351 = vmatpush.bf16.msra.mxu0 %v4118
    %4352 = vmatpush.bf16.msra.mxu0 %v4102
    %4353 = vmatpush.bf16.msra.mxu0 %v4086
    %4354 = vmatpush.bf16.msra.mxu0 %v4070
    %4355 = vmatpush.bf16.msra.mxu0 %v4054
    %4356 = vmatpush.bf16.msra.mxu0 %v4038
    %4357 = vmatpush.bf16.msra.mxu0 %v4022
    %4358 = vmatmul.bf16.gmra.mxu0 %v3465
    %v4359 = vpop.f32.mrf.mxu0
    %v4360 = vadd.f32 %v3606, %v4359
    %v4361 = vpop.f32.mrf.mxu0
    %4362 = vdwg.mxu0
    %4363 = vmatpush.bf16.msra.mxu0 %v4135
    %4364 = vmatpush.bf16.msra.mxu0 %v4119
    %4365 = vmatpush.bf16.msra.mxu0 %v4103
    %4366 = vmatpush.bf16.msra.mxu0 %v4087
    %4367 = vmatpush.bf16.msra.mxu0 %v4071
    %4368 = vmatpush.bf16.msra.mxu0 %v4055
    %4369 = vmatpush.bf16.msra.mxu0 %v4039
    %4370 = vmatpush.bf16.msra.mxu0 %v4023
    %4371 = vmatmul.bf16.gmra.mxu0 %v3465
    %v4372 = vpop.f32.mrf.mxu0
    %v4373 = vadd.f32 %v3607, %v4372
    %v4374 = vpop.f32.mrf.mxu0
    %4375 = vdwg.mxu0
    %4376 = vmatpush.bf16.msra.mxu0 %v4136
    %4377 = vmatpush.bf16.msra.mxu0 %v4120
    %4378 = vmatpush.bf16.msra.mxu0 %v4104
    %4379 = vmatpush.bf16.msra.mxu0 %v4088
    %4380 = vmatpush.bf16.msra.mxu0 %v4072
    %4381 = vmatpush.bf16.msra.mxu0 %v4056
    %4382 = vmatpush.bf16.msra.mxu0 %v4040
    %4383 = vmatpush.bf16.msra.mxu0 %v4024
    %4384 = vmatmul.bf16.gmra.mxu0 %v3465
    %v4385 = vpop.f32.mrf.mxu0
    %v4386 = vadd.f32 %v3608, %v4385
    %v4387 = vpop.f32.mrf.mxu0
    %4388 = vdwg.mxu0
    %4389 = vmatpush.bf16.msra.mxu0 %v4137
    %4390 = vmatpush.bf16.msra.mxu0 %v4121
    %4391 = vmatpush.bf16.msra.mxu0 %v4105
    %4392 = vmatpush.bf16.msra.mxu0 %v4089
    %4393 = vmatpush.bf16.msra.mxu0 %v4073
    %4394 = vmatpush.bf16.msra.mxu0 %v4057
    %4395 = vmatpush.bf16.msra.mxu0 %v4041
    %4396 = vmatpush.bf16.msra.mxu0 %v4025
    %4397 = vmatmul.bf16.gmra.mxu0 %v3465
    %v4398 = vpop.f32.mrf.mxu0
    %v4399 = vadd.f32 %v3609, %v4398
    %v4400 = vpop.f32.mrf.mxu0
    %4401 = vdwg.mxu0
    %4402 = vmatpush.bf16.msra.mxu0 %v4138
    %4403 = vmatpush.bf16.msra.mxu0 %v4122
    %4404 = vmatpush.bf16.msra.mxu0 %v4106
    %4405 = vmatpush.bf16.msra.mxu0 %v4090
    %4406 = vmatpush.bf16.msra.mxu0 %v4074
    %4407 = vmatpush.bf16.msra.mxu0 %v4058
    %4408 = vmatpush.bf16.msra.mxu0 %v4042
    %4409 = vmatpush.bf16.msra.mxu0 %v4026
    %4410 = vmatmul.bf16.gmra.mxu0 %v3465
    %v4411 = vpop.f32.mrf.mxu0
    %v4412 = vadd.f32 %v3610, %v4411
    %v4413 = vpop.f32.mrf.mxu0
    %4414 = vdwg.mxu0
    %4415 = vmatpush.bf16.msra.mxu0 %v4139
    %4416 = vmatpush.bf16.msra.mxu0 %v4123
    %4417 = vmatpush.bf16.msra.mxu0 %v4107
    %4418 = vmatpush.bf16.msra.mxu0 %v4091
    %4419 = vmatpush.bf16.msra.mxu0 %v4075
    %4420 = vmatpush.bf16.msra.mxu0 %v4059
    %4421 = vmatpush.bf16.msra.mxu0 %v4043
    %4422 = vmatpush.bf16.msra.mxu0 %v4027
    %4423 = vmatmul.bf16.gmra.mxu0 %v3465
    %v4424 = vpop.f32.mrf.mxu0
    %v4425 = vadd.f32 %v3611, %v4424
    %v4426 = vpop.f32.mrf.mxu0
    %4427 = vdwg.mxu0
    %4428 = vmatpush.bf16.msra.mxu0 %v4140
    %4429 = vmatpush.bf16.msra.mxu0 %v4124
    %4430 = vmatpush.bf16.msra.mxu0 %v4108
    %4431 = vmatpush.bf16.msra.mxu0 %v4092
    %4432 = vmatpush.bf16.msra.mxu0 %v4076
    %4433 = vmatpush.bf16.msra.mxu0 %v4060
    %4434 = vmatpush.bf16.msra.mxu0 %v4044
    %4435 = vmatpush.bf16.msra.mxu0 %v4028
    %4436 = vmatmul.bf16.gmra.mxu0 %v3465
    %v4437 = vpop.f32.mrf.mxu0
    %v4438 = vadd.f32 %v3612, %v4437
    %v4439 = vpop.f32.mrf.mxu0
    %4440 = vdwg.mxu0
    %4441 = vmatpush.bf16.msra.mxu0 %v4141
    %4442 = vmatpush.bf16.msra.mxu0 %v4125
    %4443 = vmatpush.bf16.msra.mxu0 %v4109
    %4444 = vmatpush.bf16.msra.mxu0 %v4093
    %4445 = vmatpush.bf16.msra.mxu0 %v4077
    %4446 = vmatpush.bf16.msra.mxu0 %v4061
    %4447 = vmatpush.bf16.msra.mxu0 %v4045
    %4448 = vmatpush.bf16.msra.mxu0 %v4029
    %4449 = vmatmul.bf16.gmra.mxu0 %v3465
    %v4450 = vpop.f32.mrf.mxu0
    %v4451 = vadd.f32 %v3613, %v4450
    %v4452 = vpop.f32.mrf.mxu0
    %4453 = vdwg.mxu0
    %4454 = vmatpush.bf16.msra.mxu0 %v4142
    %4455 = vmatpush.bf16.msra.mxu0 %v4126
    %4456 = vmatpush.bf16.msra.mxu0 %v4110
    %4457 = vmatpush.bf16.msra.mxu0 %v4094
    %4458 = vmatpush.bf16.msra.mxu0 %v4078
    %4459 = vmatpush.bf16.msra.mxu0 %v4062
    %4460 = vmatpush.bf16.msra.mxu0 %v4046
    %4461 = vmatpush.bf16.msra.mxu0 %v4030
    %4462 = vmatmul.bf16.gmra.mxu0 %v3465
    %v4463 = vpop.f32.mrf.mxu0
    %v4464 = vadd.f32 %v3614, %v4463
    %v4465 = vpop.f32.mrf.mxu0
    %4466 = vdwg.mxu0
    %4467 = vmatpush.bf16.msra.mxu0 %v4143
    %4468 = vmatpush.bf16.msra.mxu0 %v4127
    %4469 = vmatpush.bf16.msra.mxu0 %v4111
    %4470 = vmatpush.bf16.msra.mxu0 %v4095
    %4471 = vmatpush.bf16.msra.mxu0 %v4079
    %4472 = vmatpush.bf16.msra.mxu0 %v4063
    %4473 = vmatpush.bf16.msra.mxu0 %v4047
    %4474 = vmatpush.bf16.msra.mxu0 %v4031
    %4475 = vmatmul.bf16.gmra.mxu0 %v3465
    %v4476 = vpop.f32.mrf.mxu0
    %v4477 = vadd.f32 %v3615, %v4476
    %v4478 = vpop.f32.mrf.mxu0
    %4479 = vdwg.mxu0
    %v4480 = vmax.f32 %v4282, 0.0
    %v4481 = vmax.f32 %v4295, 0.0
    %v4482 = vmax.f32 %v4308, 0.0
    %v4483 = vmax.f32 %v4321, 0.0
    %v4484 = vmax.f32 %v4334, 0.0
    %v4485 = vmax.f32 %v4347, 0.0
    %v4486 = vmax.f32 %v4360, 0.0
    %v4487 = vmax.f32 %v4373, 0.0
    %v4488 = vmax.f32 %v4386, 0.0
    %v4489 = vmax.f32 %v4399, 0.0
    %v4490 = vmax.f32 %v4412, 0.0
    %v4491 = vmax.f32 %v4425, 0.0
    %v4492 = vmax.f32 %v4438, 0.0
    %v4493 = vmax.f32 %v4451, 0.0
    %v4494 = vmax.f32 %v4464, 0.0
    %v4495 = vmax.f32 %v4477, 0.0
    %v4496 = vpack.c.bf16 %v4480, %v4480
    %v4497 = vpack.c.bf16 %v4481, %v4481
    %v4498 = vpack.c.bf16 %v4482, %v4482
    %v4499 = vpack.c.bf16 %v4483, %v4483
    %v4500 = vpack.c.bf16 %v4484, %v4484
    %v4501 = vpack.c.bf16 %v4485, %v4485
    %v4502 = vpack.c.bf16 %v4486, %v4486
    %v4503 = vpack.c.bf16 %v4487, %v4487
    %v4504 = vpack.c.bf16 %v4488, %v4488
    %v4505 = vpack.c.bf16 %v4489, %v4489
    %v4506 = vpack.c.bf16 %v4490, %v4490
    %v4507 = vpack.c.bf16 %v4491, %v4491
    %v4508 = vpack.c.bf16 %v4492, %v4492
    %v4509 = vpack.c.bf16 %v4493, %v4493
    %v4510 = vpack.c.bf16 %v4494, %v4494
    %v4511 = vpack.c.bf16 %v4495, %v4495
    %s4512 = scalar_lea.vmem [#allocation8], 1024
    %v4513 = vld [vmem:[%s4512] sm:$0xf]
    %v4514 = vld [vmem:[%s4512 + $0x4] sm:$0xf]
    %v4515 = vld [vmem:[%s4512 + $0x8] sm:$0xf]
    %v4516 = vld [vmem:[%s4512 + $0xc] sm:$0xf]
    %v4517 = vld [vmem:[%s4512 + $0x10] sm:$0xf]
    %v4518 = vld [vmem:[%s4512 + $0x14] sm:$0xf]
    %v4519 = vld [vmem:[%s4512 + $0x18] sm:$0xf]
    %v4520 = vld [vmem:[%s4512 + $0x1c] sm:$0xf]
    %v4521 = vld [vmem:[%s4512 + $0x20] sm:$0xf]
    %v4522 = vld [vmem:[%s4512 + $0x24] sm:$0xf]
    %v4523 = vld [vmem:[%s4512 + $0x28] sm:$0xf]
    %v4524 = vld [vmem:[%s4512 + $0x2c] sm:$0xf]
    %v4525 = vld [vmem:[%s4512 + $0x30] sm:$0xf]
    %v4526 = vld [vmem:[%s4512 + $0x34] sm:$0xf]
    %v4527 = vld [vmem:[%s4512 + $0x38] sm:$0xf]
    %v4528 = vld [vmem:[%s4512 + $0x3c] sm:$0xf]
    %v4529 = vld [vmem:[%s4512 + $0x40] sm:$0xf]
    %v4530 = vld [vmem:[%s4512 + $0x44] sm:$0xf]
    %v4531 = vld [vmem:[%s4512 + $0x48] sm:$0xf]
    %v4532 = vld [vmem:[%s4512 + $0x4c] sm:$0xf]
    %v4533 = vld [vmem:[%s4512 + $0x50] sm:$0xf]
    %v4534 = vld [vmem:[%s4512 + $0x54] sm:$0xf]
    %v4535 = vld [vmem:[%s4512 + $0x58] sm:$0xf]
    %v4536 = vld [vmem:[%s4512 + $0x5c] sm:$0xf]
    %v4537 = vld [vmem:[%s4512 + $0x60] sm:$0xf]
    %v4538 = vld [vmem:[%s4512 + $0x64] sm:$0xf]
    %v4539 = vld [vmem:[%s4512 + $0x68] sm:$0xf]
    %v4540 = vld [vmem:[%s4512 + $0x6c] sm:$0xf]
    %v4541 = vld [vmem:[%s4512 + $0x70] sm:$0xf]
    %v4542 = vld [vmem:[%s4512 + $0x74] sm:$0xf]
    %v4543 = vld [vmem:[%s4512 + $0x78] sm:$0xf]
    %v4544 = vld [vmem:[%s4512 + $0x7c] sm:$0xf]
    %v4545 = vld [vmem:[%s4512 + $0x80] sm:$0xf]
    %v4546 = vld [vmem:[%s4512 + $0x84] sm:$0xf]
    %v4547 = vld [vmem:[%s4512 + $0x88] sm:$0xf]
    %v4548 = vld [vmem:[%s4512 + $0x8c] sm:$0xf]
    %v4549 = vld [vmem:[%s4512 + $0x90] sm:$0xf]
    %v4550 = vld [vmem:[%s4512 + $0x94] sm:$0xf]
    %v4551 = vld [vmem:[%s4512 + $0x98] sm:$0xf]
    %v4552 = vld [vmem:[%s4512 + $0x9c] sm:$0xf]
    %v4553 = vld [vmem:[%s4512 + $0xa0] sm:$0xf]
    %v4554 = vld [vmem:[%s4512 + $0xa4] sm:$0xf]
    %v4555 = vld [vmem:[%s4512 + $0xa8] sm:$0xf]
    %v4556 = vld [vmem:[%s4512 + $0xac] sm:$0xf]
    %v4557 = vld [vmem:[%s4512 + $0xb0] sm:$0xf]
    %v4558 = vld [vmem:[%s4512 + $0xb4] sm:$0xf]
    %v4559 = vld [vmem:[%s4512 + $0xb8] sm:$0xf]
    %v4560 = vld [vmem:[%s4512 + $0xbc] sm:$0xf]
    %v4561 = vld [vmem:[%s4512 + $0xc0] sm:$0xf]
    %v4562 = vld [vmem:[%s4512 + $0xc4] sm:$0xf]
    %v4563 = vld [vmem:[%s4512 + $0xc8] sm:$0xf]
    %v4564 = vld [vmem:[%s4512 + $0xcc] sm:$0xf]
    %v4565 = vld [vmem:[%s4512 + $0xd0] sm:$0xf]
    %v4566 = vld [vmem:[%s4512 + $0xd4] sm:$0xf]
    %v4567 = vld [vmem:[%s4512 + $0xd8] sm:$0xf]
    %v4568 = vld [vmem:[%s4512 + $0xdc] sm:$0xf]
    %v4569 = vld [vmem:[%s4512 + $0xe0] sm:$0xf]
    %v4570 = vld [vmem:[%s4512 + $0xe4] sm:$0xf]
    %v4571 = vld [vmem:[%s4512 + $0xe8] sm:$0xf]
    %v4572 = vld [vmem:[%s4512 + $0xec] sm:$0xf]
    %v4573 = vld [vmem:[%s4512 + $0xf0] sm:$0xf]
    %v4574 = vld [vmem:[%s4512 + $0xf4] sm:$0xf]
    %v4575 = vld [vmem:[%s4512 + $0xf8] sm:$0xf]
    %v4576 = vld [vmem:[%s4512 + $0xfc] sm:$0xf]
    %v4577 = vld [vmem:[%s4512 + $0x100] sm:$0xf]
    %v4578 = vld [vmem:[%s4512 + $0x104] sm:$0xf]
    %v4579 = vld [vmem:[%s4512 + $0x108] sm:$0xf]
    %v4580 = vld [vmem:[%s4512 + $0x10c] sm:$0xf]
    %v4581 = vld [vmem:[%s4512 + $0x110] sm:$0xf]
    %v4582 = vld [vmem:[%s4512 + $0x114] sm:$0xf]
    %v4583 = vld [vmem:[%s4512 + $0x118] sm:$0xf]
    %v4584 = vld [vmem:[%s4512 + $0x11c] sm:$0xf]
    %v4585 = vld [vmem:[%s4512 + $0x120] sm:$0xf]
    %v4586 = vld [vmem:[%s4512 + $0x124] sm:$0xf]
    %v4587 = vld [vmem:[%s4512 + $0x128] sm:$0xf]
    %v4588 = vld [vmem:[%s4512 + $0x12c] sm:$0xf]
    %v4589 = vld [vmem:[%s4512 + $0x130] sm:$0xf]
    %v4590 = vld [vmem:[%s4512 + $0x134] sm:$0xf]
    %v4591 = vld [vmem:[%s4512 + $0x138] sm:$0xf]
    %v4592 = vld [vmem:[%s4512 + $0x13c] sm:$0xf]
    %v4593 = vld [vmem:[%s4512 + $0x140] sm:$0xf]
    %v4594 = vld [vmem:[%s4512 + $0x144] sm:$0xf]
    %v4595 = vld [vmem:[%s4512 + $0x148] sm:$0xf]
    %v4596 = vld [vmem:[%s4512 + $0x14c] sm:$0xf]
    %v4597 = vld [vmem:[%s4512 + $0x150] sm:$0xf]
    %v4598 = vld [vmem:[%s4512 + $0x154] sm:$0xf]
    %v4599 = vld [vmem:[%s4512 + $0x158] sm:$0xf]
    %v4600 = vld [vmem:[%s4512 + $0x15c] sm:$0xf]
    %v4601 = vld [vmem:[%s4512 + $0x160] sm:$0xf]
    %v4602 = vld [vmem:[%s4512 + $0x164] sm:$0xf]
    %v4603 = vld [vmem:[%s4512 + $0x168] sm:$0xf]
    %v4604 = vld [vmem:[%s4512 + $0x16c] sm:$0xf]
    %v4605 = vld [vmem:[%s4512 + $0x170] sm:$0xf]
    %v4606 = vld [vmem:[%s4512 + $0x174] sm:$0xf]
    %v4607 = vld [vmem:[%s4512 + $0x178] sm:$0xf]
    %v4608 = vld [vmem:[%s4512 + $0x17c] sm:$0xf]
    %v4609 = vld [vmem:[%s4512 + $0x180] sm:$0xf]
    %v4610 = vld [vmem:[%s4512 + $0x184] sm:$0xf]
    %v4611 = vld [vmem:[%s4512 + $0x188] sm:$0xf]
    %v4612 = vld [vmem:[%s4512 + $0x18c] sm:$0xf]
    %v4613 = vld [vmem:[%s4512 + $0x190] sm:$0xf]
    %v4614 = vld [vmem:[%s4512 + $0x194] sm:$0xf]
    %v4615 = vld [vmem:[%s4512 + $0x198] sm:$0xf]
    %v4616 = vld [vmem:[%s4512 + $0x19c] sm:$0xf]
    %v4617 = vld [vmem:[%s4512 + $0x1a0] sm:$0xf]
    %v4618 = vld [vmem:[%s4512 + $0x1a4] sm:$0xf]
    %v4619 = vld [vmem:[%s4512 + $0x1a8] sm:$0xf]
    %v4620 = vld [vmem:[%s4512 + $0x1ac] sm:$0xf]
    %v4621 = vld [vmem:[%s4512 + $0x1b0] sm:$0xf]
    %v4622 = vld [vmem:[%s4512 + $0x1b4] sm:$0xf]
    %v4623 = vld [vmem:[%s4512 + $0x1b8] sm:$0xf]
    %v4624 = vld [vmem:[%s4512 + $0x1bc] sm:$0xf]
    %v4625 = vld [vmem:[%s4512 + $0x1c0] sm:$0xf]
    %v4626 = vld [vmem:[%s4512 + $0x1c4] sm:$0xf]
    %v4627 = vld [vmem:[%s4512 + $0x1c8] sm:$0xf]
    %v4628 = vld [vmem:[%s4512 + $0x1cc] sm:$0xf]
    %v4629 = vld [vmem:[%s4512 + $0x1d0] sm:$0xf]
    %v4630 = vld [vmem:[%s4512 + $0x1d4] sm:$0xf]
    %v4631 = vld [vmem:[%s4512 + $0x1d8] sm:$0xf]
    %v4632 = vld [vmem:[%s4512 + $0x1dc] sm:$0xf]
    %v4633 = vld [vmem:[%s4512 + $0x1e0] sm:$0xf]
    %v4634 = vld [vmem:[%s4512 + $0x1e4] sm:$0xf]
    %v4635 = vld [vmem:[%s4512 + $0x1e8] sm:$0xf]
    %v4636 = vld [vmem:[%s4512 + $0x1ec] sm:$0xf]
    %v4637 = vld [vmem:[%s4512 + $0x1f0] sm:$0xf]
    %v4638 = vld [vmem:[%s4512 + $0x1f4] sm:$0xf]
    %v4639 = vld [vmem:[%s4512 + $0x1f8] sm:$0xf]
    %v4640 = vld [vmem:[%s4512 + $0x1fc] sm:$0xf]
    %v4641 = vld [vmem:[%s4512 + $0x200] sm:$0xf]
    %v4642 = vld [vmem:[%s4512 + $0x204] sm:$0xf]
    %v4643 = vld [vmem:[%s4512 + $0x208] sm:$0xf]
    %v4644 = vld [vmem:[%s4512 + $0x20c] sm:$0xf]
    %v4645 = vld [vmem:[%s4512 + $0x210] sm:$0xf]
    %v4646 = vld [vmem:[%s4512 + $0x214] sm:$0xf]
    %v4647 = vld [vmem:[%s4512 + $0x218] sm:$0xf]
    %v4648 = vld [vmem:[%s4512 + $0x21c] sm:$0xf]
    %v4649 = vld [vmem:[%s4512 + $0x220] sm:$0xf]
    %v4650 = vld [vmem:[%s4512 + $0x224] sm:$0xf]
    %v4651 = vld [vmem:[%s4512 + $0x228] sm:$0xf]
    %v4652 = vld [vmem:[%s4512 + $0x22c] sm:$0xf]
    %v4653 = vld [vmem:[%s4512 + $0x230] sm:$0xf]
    %v4654 = vld [vmem:[%s4512 + $0x234] sm:$0xf]
    %v4655 = vld [vmem:[%s4512 + $0x238] sm:$0xf]
    %v4656 = vld [vmem:[%s4512 + $0x23c] sm:$0xf]
    %v4657 = vld [vmem:[%s4512 + $0x240] sm:$0xf]
    %v4658 = vld [vmem:[%s4512 + $0x244] sm:$0xf]
    %v4659 = vld [vmem:[%s4512 + $0x248] sm:$0xf]
    %v4660 = vld [vmem:[%s4512 + $0x24c] sm:$0xf]
    %v4661 = vld [vmem:[%s4512 + $0x250] sm:$0xf]
    %v4662 = vld [vmem:[%s4512 + $0x254] sm:$0xf]
    %v4663 = vld [vmem:[%s4512 + $0x258] sm:$0xf]
    %v4664 = vld [vmem:[%s4512 + $0x25c] sm:$0xf]
    %v4665 = vld [vmem:[%s4512 + $0x260] sm:$0xf]
    %v4666 = vld [vmem:[%s4512 + $0x264] sm:$0xf]
    %v4667 = vld [vmem:[%s4512 + $0x268] sm:$0xf]
    %v4668 = vld [vmem:[%s4512 + $0x26c] sm:$0xf]
    %v4669 = vld [vmem:[%s4512 + $0x270] sm:$0xf]
    %v4670 = vld [vmem:[%s4512 + $0x274] sm:$0xf]
    %v4671 = vld [vmem:[%s4512 + $0x278] sm:$0xf]
    %v4672 = vld [vmem:[%s4512 + $0x27c] sm:$0xf]
    %v4673 = vld [vmem:[%s4512 + $0x280] sm:$0xf]
    %v4674 = vld [vmem:[%s4512 + $0x284] sm:$0xf]
    %v4675 = vld [vmem:[%s4512 + $0x288] sm:$0xf]
    %v4676 = vld [vmem:[%s4512 + $0x28c] sm:$0xf]
    %v4677 = vld [vmem:[%s4512 + $0x290] sm:$0xf]
    %v4678 = vld [vmem:[%s4512 + $0x294] sm:$0xf]
    %v4679 = vld [vmem:[%s4512 + $0x298] sm:$0xf]
    %v4680 = vld [vmem:[%s4512 + $0x29c] sm:$0xf]
    %v4681 = vld [vmem:[%s4512 + $0x2a0] sm:$0xf]
    %v4682 = vld [vmem:[%s4512 + $0x2a4] sm:$0xf]
    %v4683 = vld [vmem:[%s4512 + $0x2a8] sm:$0xf]
    %v4684 = vld [vmem:[%s4512 + $0x2ac] sm:$0xf]
    %v4685 = vld [vmem:[%s4512 + $0x2b0] sm:$0xf]
    %v4686 = vld [vmem:[%s4512 + $0x2b4] sm:$0xf]
    %v4687 = vld [vmem:[%s4512 + $0x2b8] sm:$0xf]
    %v4688 = vld [vmem:[%s4512 + $0x2bc] sm:$0xf]
    %v4689 = vld [vmem:[%s4512 + $0x2c0] sm:$0xf]
    %v4690 = vld [vmem:[%s4512 + $0x2c4] sm:$0xf]
    %v4691 = vld [vmem:[%s4512 + $0x2c8] sm:$0xf]
    %v4692 = vld [vmem:[%s4512 + $0x2cc] sm:$0xf]
    %v4693 = vld [vmem:[%s4512 + $0x2d0] sm:$0xf]
    %v4694 = vld [vmem:[%s4512 + $0x2d4] sm:$0xf]
    %v4695 = vld [vmem:[%s4512 + $0x2d8] sm:$0xf]
    %v4696 = vld [vmem:[%s4512 + $0x2dc] sm:$0xf]
    %v4697 = vld [vmem:[%s4512 + $0x2e0] sm:$0xf]
    %v4698 = vld [vmem:[%s4512 + $0x2e4] sm:$0xf]
    %v4699 = vld [vmem:[%s4512 + $0x2e8] sm:$0xf]
    %v4700 = vld [vmem:[%s4512 + $0x2ec] sm:$0xf]
    %v4701 = vld [vmem:[%s4512 + $0x2f0] sm:$0xf]
    %v4702 = vld [vmem:[%s4512 + $0x2f4] sm:$0xf]
    %v4703 = vld [vmem:[%s4512 + $0x2f8] sm:$0xf]
    %v4704 = vld [vmem:[%s4512 + $0x2fc] sm:$0xf]
    %v4705 = vld [vmem:[%s4512 + $0x300] sm:$0xf]
    %v4706 = vld [vmem:[%s4512 + $0x304] sm:$0xf]
    %v4707 = vld [vmem:[%s4512 + $0x308] sm:$0xf]
    %v4708 = vld [vmem:[%s4512 + $0x30c] sm:$0xf]
    %v4709 = vld [vmem:[%s4512 + $0x310] sm:$0xf]
    %v4710 = vld [vmem:[%s4512 + $0x314] sm:$0xf]
    %v4711 = vld [vmem:[%s4512 + $0x318] sm:$0xf]
    %v4712 = vld [vmem:[%s4512 + $0x31c] sm:$0xf]
    %v4713 = vld [vmem:[%s4512 + $0x320] sm:$0xf]
    %v4714 = vld [vmem:[%s4512 + $0x324] sm:$0xf]
    %v4715 = vld [vmem:[%s4512 + $0x328] sm:$0xf]
    %v4716 = vld [vmem:[%s4512 + $0x32c] sm:$0xf]
    %v4717 = vld [vmem:[%s4512 + $0x330] sm:$0xf]
    %v4718 = vld [vmem:[%s4512 + $0x334] sm:$0xf]
    %v4719 = vld [vmem:[%s4512 + $0x338] sm:$0xf]
    %v4720 = vld [vmem:[%s4512 + $0x33c] sm:$0xf]
    %v4721 = vld [vmem:[%s4512 + $0x340] sm:$0xf]
    %v4722 = vld [vmem:[%s4512 + $0x344] sm:$0xf]
    %v4723 = vld [vmem:[%s4512 + $0x348] sm:$0xf]
    %v4724 = vld [vmem:[%s4512 + $0x34c] sm:$0xf]
    %v4725 = vld [vmem:[%s4512 + $0x350] sm:$0xf]
    %v4726 = vld [vmem:[%s4512 + $0x354] sm:$0xf]
    %v4727 = vld [vmem:[%s4512 + $0x358] sm:$0xf]
    %v4728 = vld [vmem:[%s4512 + $0x35c] sm:$0xf]
    %v4729 = vld [vmem:[%s4512 + $0x360] sm:$0xf]
    %v4730 = vld [vmem:[%s4512 + $0x364] sm:$0xf]
    %v4731 = vld [vmem:[%s4512 + $0x368] sm:$0xf]
    %v4732 = vld [vmem:[%s4512 + $0x36c] sm:$0xf]
    %v4733 = vld [vmem:[%s4512 + $0x370] sm:$0xf]
    %v4734 = vld [vmem:[%s4512 + $0x374] sm:$0xf]
    %v4735 = vld [vmem:[%s4512 + $0x378] sm:$0xf]
    %v4736 = vld [vmem:[%s4512 + $0x37c] sm:$0xf]
    %v4737 = vld [vmem:[%s4512 + $0x380] sm:$0xf]
    %v4738 = vld [vmem:[%s4512 + $0x384] sm:$0xf]
    %v4739 = vld [vmem:[%s4512 + $0x388] sm:$0xf]
    %v4740 = vld [vmem:[%s4512 + $0x38c] sm:$0xf]
    %v4741 = vld [vmem:[%s4512 + $0x390] sm:$0xf]
    %v4742 = vld [vmem:[%s4512 + $0x394] sm:$0xf]
    %v4743 = vld [vmem:[%s4512 + $0x398] sm:$0xf]
    %v4744 = vld [vmem:[%s4512 + $0x39c] sm:$0xf]
    %v4745 = vld [vmem:[%s4512 + $0x3a0] sm:$0xf]
    %v4746 = vld [vmem:[%s4512 + $0x3a4] sm:$0xf]
    %v4747 = vld [vmem:[%s4512 + $0x3a8] sm:$0xf]
    %v4748 = vld [vmem:[%s4512 + $0x3ac] sm:$0xf]
    %v4749 = vld [vmem:[%s4512 + $0x3b0] sm:$0xf]
    %v4750 = vld [vmem:[%s4512 + $0x3b4] sm:$0xf]
    %v4751 = vld [vmem:[%s4512 + $0x3b8] sm:$0xf]
    %v4752 = vld [vmem:[%s4512 + $0x3bc] sm:$0xf]
    %v4753 = vld [vmem:[%s4512 + $0x3c0] sm:$0xf]
    %v4754 = vld [vmem:[%s4512 + $0x3c4] sm:$0xf]
    %v4755 = vld [vmem:[%s4512 + $0x3c8] sm:$0xf]
    %v4756 = vld [vmem:[%s4512 + $0x3cc] sm:$0xf]
    %v4757 = vld [vmem:[%s4512 + $0x3d0] sm:$0xf]
    %v4758 = vld [vmem:[%s4512 + $0x3d4] sm:$0xf]
    %v4759 = vld [vmem:[%s4512 + $0x3d8] sm:$0xf]
    %v4760 = vld [vmem:[%s4512 + $0x3dc] sm:$0xf]
    %v4761 = vld [vmem:[%s4512 + $0x3e0] sm:$0xf]
    %v4762 = vld [vmem:[%s4512 + $0x3e4] sm:$0xf]
    %v4763 = vld [vmem:[%s4512 + $0x3e8] sm:$0xf]
    %v4764 = vld [vmem:[%s4512 + $0x3ec] sm:$0xf]
    %v4765 = vld [vmem:[%s4512 + $0x3f0] sm:$0xf]
    %v4766 = vld [vmem:[%s4512 + $0x3f4] sm:$0xf]
    %v4767 = vld [vmem:[%s4512 + $0x3f8] sm:$0xf]
    %v4768 = vld [vmem:[%s4512 + $0x3fc] sm:$0xf]
    %s4769 = scalar_lea.vmem %s12, 1
    %v4770 = vld [vmem:[%s4769] sm:$0x1]
    %v4772 = vperm.slane %v4770, 0
    %v5030 = vunpack.c.l.b16 %v4513
    %v5031 = vunpack.c.l.b16 %v4514
    %v5032 = vunpack.c.l.b16 %v4515
    %v5033 = vunpack.c.l.b16 %v4516
    %v5034 = vunpack.c.l.b16 %v4517
    %v5035 = vunpack.c.l.b16 %v4518
    %v5036 = vunpack.c.l.b16 %v4519
    %v5037 = vunpack.c.l.b16 %v4520
    %v5038 = vunpack.c.l.b16 %v4521
    %v5039 = vunpack.c.l.b16 %v4522
    %v5040 = vunpack.c.l.b16 %v4523
    %v5041 = vunpack.c.l.b16 %v4524
    %v5042 = vunpack.c.l.b16 %v4525
    %v5043 = vunpack.c.l.b16 %v4526
    %v5044 = vunpack.c.l.b16 %v4527
    %v5045 = vunpack.c.l.b16 %v4528
    %v5046 = vunpack.c.l.b16 %v4529
    %v5047 = vunpack.c.l.b16 %v4530
    %v5048 = vunpack.c.l.b16 %v4531
    %v5049 = vunpack.c.l.b16 %v4532
    %v5050 = vunpack.c.l.b16 %v4533
    %v5051 = vunpack.c.l.b16 %v4534
    %v5052 = vunpack.c.l.b16 %v4535
    %v5053 = vunpack.c.l.b16 %v4536
    %v5054 = vunpack.c.l.b16 %v4537
    %v5055 = vunpack.c.l.b16 %v4538
    %v5056 = vunpack.c.l.b16 %v4539
    %v5057 = vunpack.c.l.b16 %v4540
    %v5058 = vunpack.c.l.b16 %v4541
    %v5059 = vunpack.c.l.b16 %v4542
    %v5060 = vunpack.c.l.b16 %v4543
    %v5061 = vunpack.c.l.b16 %v4544
    %v5062 = vunpack.c.l.b16 %v4545
    %v5063 = vunpack.c.l.b16 %v4546
    %v5064 = vunpack.c.l.b16 %v4547
    %v5065 = vunpack.c.l.b16 %v4548
    %v5066 = vunpack.c.l.b16 %v4549
    %v5067 = vunpack.c.l.b16 %v4550
    %v5068 = vunpack.c.l.b16 %v4551
    %v5069 = vunpack.c.l.b16 %v4552
    %v5070 = vunpack.c.l.b16 %v4553
    %v5071 = vunpack.c.l.b16 %v4554
    %v5072 = vunpack.c.l.b16 %v4555
    %v5073 = vunpack.c.l.b16 %v4556
    %v5074 = vunpack.c.l.b16 %v4557
    %v5075 = vunpack.c.l.b16 %v4558
    %v5076 = vunpack.c.l.b16 %v4559
    %v5077 = vunpack.c.l.b16 %v4560
    %v5078 = vunpack.c.l.b16 %v4561
    %v5079 = vunpack.c.l.b16 %v4562
    %v5080 = vunpack.c.l.b16 %v4563
    %v5081 = vunpack.c.l.b16 %v4564
    %v5082 = vunpack.c.l.b16 %v4565
    %v5083 = vunpack.c.l.b16 %v4566
    %v5084 = vunpack.c.l.b16 %v4567
    %v5085 = vunpack.c.l.b16 %v4568
    %v5086 = vunpack.c.l.b16 %v4569
    %v5087 = vunpack.c.l.b16 %v4570
    %v5088 = vunpack.c.l.b16 %v4571
    %v5089 = vunpack.c.l.b16 %v4572
    %v5090 = vunpack.c.l.b16 %v4573
    %v5091 = vunpack.c.l.b16 %v4574
    %v5092 = vunpack.c.l.b16 %v4575
    %v5093 = vunpack.c.l.b16 %v4576
    %v5094 = vunpack.c.l.b16 %v4577
    %v5095 = vunpack.c.l.b16 %v4578
    %v5096 = vunpack.c.l.b16 %v4579
    %v5097 = vunpack.c.l.b16 %v4580
    %v5098 = vunpack.c.l.b16 %v4581
    %v5099 = vunpack.c.l.b16 %v4582
    %v5100 = vunpack.c.l.b16 %v4583
    %v5101 = vunpack.c.l.b16 %v4584
    %v5102 = vunpack.c.l.b16 %v4585
    %v5103 = vunpack.c.l.b16 %v4586
    %v5104 = vunpack.c.l.b16 %v4587
    %v5105 = vunpack.c.l.b16 %v4588
    %v5106 = vunpack.c.l.b16 %v4589
    %v5107 = vunpack.c.l.b16 %v4590
    %v5108 = vunpack.c.l.b16 %v4591
    %v5109 = vunpack.c.l.b16 %v4592
    %v5110 = vunpack.c.l.b16 %v4593
    %v5111 = vunpack.c.l.b16 %v4594
    %v5112 = vunpack.c.l.b16 %v4595
    %v5113 = vunpack.c.l.b16 %v4596
    %v5114 = vunpack.c.l.b16 %v4597
    %v5115 = vunpack.c.l.b16 %v4598
    %v5116 = vunpack.c.l.b16 %v4599
    %v5117 = vunpack.c.l.b16 %v4600
    %v5118 = vunpack.c.l.b16 %v4601
    %v5119 = vunpack.c.l.b16 %v4602
    %v5120 = vunpack.c.l.b16 %v4603
    %v5121 = vunpack.c.l.b16 %v4604
    %v5122 = vunpack.c.l.b16 %v4605
    %v5123 = vunpack.c.l.b16 %v4606
    %v5124 = vunpack.c.l.b16 %v4607
    %v5125 = vunpack.c.l.b16 %v4608
    %v5126 = vunpack.c.l.b16 %v4609
    %v5127 = vunpack.c.l.b16 %v4610
    %v5128 = vunpack.c.l.b16 %v4611
    %v5129 = vunpack.c.l.b16 %v4612
    %v5130 = vunpack.c.l.b16 %v4613
    %v5131 = vunpack.c.l.b16 %v4614
    %v5132 = vunpack.c.l.b16 %v4615
    %v5133 = vunpack.c.l.b16 %v4616
    %v5134 = vunpack.c.l.b16 %v4617
    %v5135 = vunpack.c.l.b16 %v4618
    %v5136 = vunpack.c.l.b16 %v4619
    %v5137 = vunpack.c.l.b16 %v4620
    %v5138 = vunpack.c.l.b16 %v4621
    %v5139 = vunpack.c.l.b16 %v4622
    %v5140 = vunpack.c.l.b16 %v4623
    %v5141 = vunpack.c.l.b16 %v4624
    %v5142 = vunpack.c.l.b16 %v4625
    %v5143 = vunpack.c.l.b16 %v4626
    %v5144 = vunpack.c.l.b16 %v4627
    %v5145 = vunpack.c.l.b16 %v4628
    %v5146 = vunpack.c.l.b16 %v4629
    %v5147 = vunpack.c.l.b16 %v4630
    %v5148 = vunpack.c.l.b16 %v4631
    %v5149 = vunpack.c.l.b16 %v4632
    %v5150 = vunpack.c.l.b16 %v4633
    %v5151 = vunpack.c.l.b16 %v4634
    %v5152 = vunpack.c.l.b16 %v4635
    %v5153 = vunpack.c.l.b16 %v4636
    %v5154 = vunpack.c.l.b16 %v4637
    %v5155 = vunpack.c.l.b16 %v4638
    %v5156 = vunpack.c.l.b16 %v4639
    %v5157 = vunpack.c.l.b16 %v4640
    %v5158 = vunpack.c.l.b16 %v4641
    %v5159 = vunpack.c.l.b16 %v4642
    %v5160 = vunpack.c.l.b16 %v4643
    %v5161 = vunpack.c.l.b16 %v4644
    %v5162 = vunpack.c.l.b16 %v4645
    %v5163 = vunpack.c.l.b16 %v4646
    %v5164 = vunpack.c.l.b16 %v4647
    %v5165 = vunpack.c.l.b16 %v4648
    %v5166 = vunpack.c.l.b16 %v4649
    %v5167 = vunpack.c.l.b16 %v4650
    %v5168 = vunpack.c.l.b16 %v4651
    %v5169 = vunpack.c.l.b16 %v4652
    %v5170 = vunpack.c.l.b16 %v4653
    %v5171 = vunpack.c.l.b16 %v4654
    %v5172 = vunpack.c.l.b16 %v4655
    %v5173 = vunpack.c.l.b16 %v4656
    %v5174 = vunpack.c.l.b16 %v4657
    %v5175 = vunpack.c.l.b16 %v4658
    %v5176 = vunpack.c.l.b16 %v4659
    %v5177 = vunpack.c.l.b16 %v4660
    %v5178 = vunpack.c.l.b16 %v4661
    %v5179 = vunpack.c.l.b16 %v4662
    %v5180 = vunpack.c.l.b16 %v4663
    %v5181 = vunpack.c.l.b16 %v4664
    %v5182 = vunpack.c.l.b16 %v4665
    %v5183 = vunpack.c.l.b16 %v4666
    %v5184 = vunpack.c.l.b16 %v4667
    %v5185 = vunpack.c.l.b16 %v4668
    %v5186 = vunpack.c.l.b16 %v4669
    %v5187 = vunpack.c.l.b16 %v4670
    %v5188 = vunpack.c.l.b16 %v4671
    %v5189 = vunpack.c.l.b16 %v4672
    %v5190 = vunpack.c.l.b16 %v4673
    %v5191 = vunpack.c.l.b16 %v4674
    %v5192 = vunpack.c.l.b16 %v4675
    %v5193 = vunpack.c.l.b16 %v4676
    %v5194 = vunpack.c.l.b16 %v4677
    %v5195 = vunpack.c.l.b16 %v4678
    %v5196 = vunpack.c.l.b16 %v4679
    %v5197 = vunpack.c.l.b16 %v4680
    %v5198 = vunpack.c.l.b16 %v4681
    %v5199 = vunpack.c.l.b16 %v4682
    %v5200 = vunpack.c.l.b16 %v4683
    %v5201 = vunpack.c.l.b16 %v4684
    %v5202 = vunpack.c.l.b16 %v4685
    %v5203 = vunpack.c.l.b16 %v4686
    %v5204 = vunpack.c.l.b16 %v4687
    %v5205 = vunpack.c.l.b16 %v4688
    %v5206 = vunpack.c.l.b16 %v4689
    %v5207 = vunpack.c.l.b16 %v4690
    %v5208 = vunpack.c.l.b16 %v4691
    %v5209 = vunpack.c.l.b16 %v4692
    %v5210 = vunpack.c.l.b16 %v4693
    %v5211 = vunpack.c.l.b16 %v4694
    %v5212 = vunpack.c.l.b16 %v4695
    %v5213 = vunpack.c.l.b16 %v4696
    %v5214 = vunpack.c.l.b16 %v4697
    %v5215 = vunpack.c.l.b16 %v4698
    %v5216 = vunpack.c.l.b16 %v4699
    %v5217 = vunpack.c.l.b16 %v4700
    %v5218 = vunpack.c.l.b16 %v4701
    %v5219 = vunpack.c.l.b16 %v4702
    %v5220 = vunpack.c.l.b16 %v4703
    %v5221 = vunpack.c.l.b16 %v4704
    %v5222 = vunpack.c.l.b16 %v4705
    %v5223 = vunpack.c.l.b16 %v4706
    %v5224 = vunpack.c.l.b16 %v4707
    %v5225 = vunpack.c.l.b16 %v4708
    %v5226 = vunpack.c.l.b16 %v4709
    %v5227 = vunpack.c.l.b16 %v4710
    %v5228 = vunpack.c.l.b16 %v4711
    %v5229 = vunpack.c.l.b16 %v4712
    %v5230 = vunpack.c.l.b16 %v4713
    %v5231 = vunpack.c.l.b16 %v4714
    %v5232 = vunpack.c.l.b16 %v4715
    %v5233 = vunpack.c.l.b16 %v4716
    %v5234 = vunpack.c.l.b16 %v4717
    %v5235 = vunpack.c.l.b16 %v4718
    %v5236 = vunpack.c.l.b16 %v4719
    %v5237 = vunpack.c.l.b16 %v4720
    %v5238 = vunpack.c.l.b16 %v4721
    %v5239 = vunpack.c.l.b16 %v4722
    %v5240 = vunpack.c.l.b16 %v4723
    %v5241 = vunpack.c.l.b16 %v4724
    %v5242 = vunpack.c.l.b16 %v4725
    %v5243 = vunpack.c.l.b16 %v4726
    %v5244 = vunpack.c.l.b16 %v4727
    %v5245 = vunpack.c.l.b16 %v4728
    %v5246 = vunpack.c.l.b16 %v4729
    %v5247 = vunpack.c.l.b16 %v4730
    %v5248 = vunpack.c.l.b16 %v4731
    %v5249 = vunpack.c.l.b16 %v4732
    %v5250 = vunpack.c.l.b16 %v4733
    %v5251 = vunpack.c.l.b16 %v4734
    %v5252 = vunpack.c.l.b16 %v4735
    %v5253 = vunpack.c.l.b16 %v4736
    %v5254 = vunpack.c.l.b16 %v4737
    %v5255 = vunpack.c.l.b16 %v4738
    %v5256 = vunpack.c.l.b16 %v4739
    %v5257 = vunpack.c.l.b16 %v4740
    %v5258 = vunpack.c.l.b16 %v4741
    %v5259 = vunpack.c.l.b16 %v4742
    %v5260 = vunpack.c.l.b16 %v4743
    %v5261 = vunpack.c.l.b16 %v4744
    %v5262 = vunpack.c.l.b16 %v4745
    %v5263 = vunpack.c.l.b16 %v4746
    %v5264 = vunpack.c.l.b16 %v4747
    %v5265 = vunpack.c.l.b16 %v4748
    %v5266 = vunpack.c.l.b16 %v4749
    %v5267 = vunpack.c.l.b16 %v4750
    %v5268 = vunpack.c.l.b16 %v4751
    %v5269 = vunpack.c.l.b16 %v4752
    %v5270 = vunpack.c.l.b16 %v4753
    %v5271 = vunpack.c.l.b16 %v4754
    %v5272 = vunpack.c.l.b16 %v4755
    %v5273 = vunpack.c.l.b16 %v4756
    %v5274 = vunpack.c.l.b16 %v4757
    %v5275 = vunpack.c.l.b16 %v4758
    %v5276 = vunpack.c.l.b16 %v4759
    %v5277 = vunpack.c.l.b16 %v4760
    %v5278 = vunpack.c.l.b16 %v4761
    %v5279 = vunpack.c.l.b16 %v4762
    %v5280 = vunpack.c.l.b16 %v4763
    %v5281 = vunpack.c.l.b16 %v4764
    %v5282 = vunpack.c.l.b16 %v4765
    %v5283 = vunpack.c.l.b16 %v4766
    %v5284 = vunpack.c.l.b16 %v4767
    %v5285 = vunpack.c.l.b16 %v4768
    %v5286 = vpack.c.b16 %v5031, %v5030
    %v5287 = vpack.c.b16 %v5033, %v5032
    %v5288 = vpack.c.b16 %v5035, %v5034
    %v5289 = vpack.c.b16 %v5037, %v5036
    %v5290 = vpack.c.b16 %v5039, %v5038
    %v5291 = vpack.c.b16 %v5041, %v5040
    %v5292 = vpack.c.b16 %v5043, %v5042
    %v5293 = vpack.c.b16 %v5045, %v5044
    %v5294 = vpack.c.b16 %v5047, %v5046
    %v5295 = vpack.c.b16 %v5049, %v5048
    %v5296 = vpack.c.b16 %v5051, %v5050
    %v5297 = vpack.c.b16 %v5053, %v5052
    %v5298 = vpack.c.b16 %v5055, %v5054
    %v5299 = vpack.c.b16 %v5057, %v5056
    %v5300 = vpack.c.b16 %v5059, %v5058
    %v5301 = vpack.c.b16 %v5061, %v5060
    %v5302 = vpack.c.b16 %v5063, %v5062
    %v5303 = vpack.c.b16 %v5065, %v5064
    %v5304 = vpack.c.b16 %v5067, %v5066
    %v5305 = vpack.c.b16 %v5069, %v5068
    %v5306 = vpack.c.b16 %v5071, %v5070
    %v5307 = vpack.c.b16 %v5073, %v5072
    %v5308 = vpack.c.b16 %v5075, %v5074
    %v5309 = vpack.c.b16 %v5077, %v5076
    %v5310 = vpack.c.b16 %v5079, %v5078
    %v5311 = vpack.c.b16 %v5081, %v5080
    %v5312 = vpack.c.b16 %v5083, %v5082
    %v5313 = vpack.c.b16 %v5085, %v5084
    %v5314 = vpack.c.b16 %v5087, %v5086
    %v5315 = vpack.c.b16 %v5089, %v5088
    %v5316 = vpack.c.b16 %v5091, %v5090
    %v5317 = vpack.c.b16 %v5093, %v5092
    %v5318 = vpack.c.b16 %v5095, %v5094
    %v5319 = vpack.c.b16 %v5097, %v5096
    %v5320 = vpack.c.b16 %v5099, %v5098
    %v5321 = vpack.c.b16 %v5101, %v5100
    %v5322 = vpack.c.b16 %v5103, %v5102
    %v5323 = vpack.c.b16 %v5105, %v5104
    %v5324 = vpack.c.b16 %v5107, %v5106
    %v5325 = vpack.c.b16 %v5109, %v5108
    %v5326 = vpack.c.b16 %v5111, %v5110
    %v5327 = vpack.c.b16 %v5113, %v5112
    %v5328 = vpack.c.b16 %v5115, %v5114
    %v5329 = vpack.c.b16 %v5117, %v5116
    %v5330 = vpack.c.b16 %v5119, %v5118
    %v5331 = vpack.c.b16 %v5121, %v5120
    %v5332 = vpack.c.b16 %v5123, %v5122
    %v5333 = vpack.c.b16 %v5125, %v5124
    %v5334 = vpack.c.b16 %v5127, %v5126
    %v5335 = vpack.c.b16 %v5129, %v5128
    %v5336 = vpack.c.b16 %v5131, %v5130
    %v5337 = vpack.c.b16 %v5133, %v5132
    %v5338 = vpack.c.b16 %v5135, %v5134
    %v5339 = vpack.c.b16 %v5137, %v5136
    %v5340 = vpack.c.b16 %v5139, %v5138
    %v5341 = vpack.c.b16 %v5141, %v5140
    %v5342 = vpack.c.b16 %v5143, %v5142
    %v5343 = vpack.c.b16 %v5145, %v5144
    %v5344 = vpack.c.b16 %v5147, %v5146
    %v5345 = vpack.c.b16 %v5149, %v5148
    %v5346 = vpack.c.b16 %v5151, %v5150
    %v5347 = vpack.c.b16 %v5153, %v5152
    %v5348 = vpack.c.b16 %v5155, %v5154
    %v5349 = vpack.c.b16 %v5157, %v5156
    %v5350 = vpack.c.b16 %v5159, %v5158
    %v5351 = vpack.c.b16 %v5161, %v5160
    %v5352 = vpack.c.b16 %v5163, %v5162
    %v5353 = vpack.c.b16 %v5165, %v5164
    %v5354 = vpack.c.b16 %v5167, %v5166
    %v5355 = vpack.c.b16 %v5169, %v5168
    %v5356 = vpack.c.b16 %v5171, %v5170
    %v5357 = vpack.c.b16 %v5173, %v5172
    %v5358 = vpack.c.b16 %v5175, %v5174
    %v5359 = vpack.c.b16 %v5177, %v5176
    %v5360 = vpack.c.b16 %v5179, %v5178
    %v5361 = vpack.c.b16 %v5181, %v5180
    %v5362 = vpack.c.b16 %v5183, %v5182
    %v5363 = vpack.c.b16 %v5185, %v5184
    %v5364 = vpack.c.b16 %v5187, %v5186
    %v5365 = vpack.c.b16 %v5189, %v5188
    %v5366 = vpack.c.b16 %v5191, %v5190
    %v5367 = vpack.c.b16 %v5193, %v5192
    %v5368 = vpack.c.b16 %v5195, %v5194
    %v5369 = vpack.c.b16 %v5197, %v5196
    %v5370 = vpack.c.b16 %v5199, %v5198
    %v5371 = vpack.c.b16 %v5201, %v5200
    %v5372 = vpack.c.b16 %v5203, %v5202
    %v5373 = vpack.c.b16 %v5205, %v5204
    %v5374 = vpack.c.b16 %v5207, %v5206
    %v5375 = vpack.c.b16 %v5209, %v5208
    %v5376 = vpack.c.b16 %v5211, %v5210
    %v5377 = vpack.c.b16 %v5213, %v5212
    %v5378 = vpack.c.b16 %v5215, %v5214
    %v5379 = vpack.c.b16 %v5217, %v5216
    %v5380 = vpack.c.b16 %v5219, %v5218
    %v5381 = vpack.c.b16 %v5221, %v5220
    %v5382 = vpack.c.b16 %v5223, %v5222
    %v5383 = vpack.c.b16 %v5225, %v5224
    %v5384 = vpack.c.b16 %v5227, %v5226
    %v5385 = vpack.c.b16 %v5229, %v5228
    %v5386 = vpack.c.b16 %v5231, %v5230
    %v5387 = vpack.c.b16 %v5233, %v5232
    %v5388 = vpack.c.b16 %v5235, %v5234
    %v5389 = vpack.c.b16 %v5237, %v5236
    %v5390 = vpack.c.b16 %v5239, %v5238
    %v5391 = vpack.c.b16 %v5241, %v5240
    %v5392 = vpack.c.b16 %v5243, %v5242
    %v5393 = vpack.c.b16 %v5245, %v5244
    %v5394 = vpack.c.b16 %v5247, %v5246
    %v5395 = vpack.c.b16 %v5249, %v5248
    %v5396 = vpack.c.b16 %v5251, %v5250
    %v5397 = vpack.c.b16 %v5253, %v5252
    %v5398 = vpack.c.b16 %v5255, %v5254
    %v5399 = vpack.c.b16 %v5257, %v5256
    %v5400 = vpack.c.b16 %v5259, %v5258
    %v5401 = vpack.c.b16 %v5261, %v5260
    %v5402 = vpack.c.b16 %v5263, %v5262
    %v5403 = vpack.c.b16 %v5265, %v5264
    %v5404 = vpack.c.b16 %v5267, %v5266
    %v5405 = vpack.c.b16 %v5269, %v5268
    %v5406 = vpack.c.b16 %v5271, %v5270
    %v5407 = vpack.c.b16 %v5273, %v5272
    %v5408 = vpack.c.b16 %v5275, %v5274
    %v5409 = vpack.c.b16 %v5277, %v5276
    %v5410 = vpack.c.b16 %v5279, %v5278
    %v5411 = vpack.c.b16 %v5281, %v5280
    %v5412 = vpack.c.b16 %v5283, %v5282
    %v5413 = vpack.c.b16 %v5285, %v5284
    %5542 = vmatpush.bf16.msra.mxu0 %v5293
    %5543 = vmatpush.bf16.msra.mxu0 %v5292
    %5544 = vmatpush.bf16.msra.mxu0 %v5291
    %5545 = vmatpush.bf16.msra.mxu0 %v5290
    %5546 = vmatpush.bf16.msra.mxu0 %v5289
    %5547 = vmatpush.bf16.msra.mxu0 %v5288
    %5548 = vmatpush.bf16.msra.mxu0 %v5287
    %5549 = vmatpush.bf16.msra.mxu0 %v5286
    %5550 = vmatmul.bf16.gmra.mxu0 %v4496
    %v5551 = vpop.f32.mrf.mxu0
    %v5552 = vadd.f32 %v4772, %v5551
    %v5553 = vpop.f32.mrf.mxu0
    %5554 = vdwg.mxu0
    %5555 = vmatpush.bf16.msra.mxu0 %v5301
    %5556 = vmatpush.bf16.msra.mxu0 %v5300
    %5557 = vmatpush.bf16.msra.mxu0 %v5299
    %5558 = vmatpush.bf16.msra.mxu0 %v5298
    %5559 = vmatpush.bf16.msra.mxu0 %v5297
    %5560 = vmatpush.bf16.msra.mxu0 %v5296
    %5561 = vmatpush.bf16.msra.mxu0 %v5295
    %5562 = vmatpush.bf16.msra.mxu0 %v5294
    %5563 = vmatmul.bf16.gmra.mxu0 %v4497
    %v5564 = vpop.f32.mrf.mxu0
    %v5565 = vadd.f32 %v5552, %v5564
    %v5566 = vpop.f32.mrf.mxu0
    %5567 = vdwg.mxu0
    %5568 = vmatpush.bf16.msra.mxu0 %v5309
    %5569 = vmatpush.bf16.msra.mxu0 %v5308
    %5570 = vmatpush.bf16.msra.mxu0 %v5307
    %5571 = vmatpush.bf16.msra.mxu0 %v5306
    %5572 = vmatpush.bf16.msra.mxu0 %v5305
    %5573 = vmatpush.bf16.msra.mxu0 %v5304
    %5574 = vmatpush.bf16.msra.mxu0 %v5303
    %5575 = vmatpush.bf16.msra.mxu0 %v5302
    %5576 = vmatmul.bf16.gmra.mxu0 %v4498
    %v5577 = vpop.f32.mrf.mxu0
    %v5578 = vadd.f32 %v5565, %v5577
    %v5579 = vpop.f32.mrf.mxu0
    %5580 = vdwg.mxu0
    %5581 = vmatpush.bf16.msra.mxu0 %v5317
    %5582 = vmatpush.bf16.msra.mxu0 %v5316
    %5583 = vmatpush.bf16.msra.mxu0 %v5315
    %5584 = vmatpush.bf16.msra.mxu0 %v5314
    %5585 = vmatpush.bf16.msra.mxu0 %v5313
    %5586 = vmatpush.bf16.msra.mxu0 %v5312
    %5587 = vmatpush.bf16.msra.mxu0 %v5311
    %5588 = vmatpush.bf16.msra.mxu0 %v5310
    %5589 = vmatmul.bf16.gmra.mxu0 %v4499
    %v5590 = vpop.f32.mrf.mxu0
    %v5591 = vadd.f32 %v5578, %v5590
    %v5592 = vpop.f32.mrf.mxu0
    %5593 = vdwg.mxu0
    %5594 = vmatpush.bf16.msra.mxu0 %v5325
    %5595 = vmatpush.bf16.msra.mxu0 %v5324
    %5596 = vmatpush.bf16.msra.mxu0 %v5323
    %5597 = vmatpush.bf16.msra.mxu0 %v5322
    %5598 = vmatpush.bf16.msra.mxu0 %v5321
    %5599 = vmatpush.bf16.msra.mxu0 %v5320
    %5600 = vmatpush.bf16.msra.mxu0 %v5319
    %5601 = vmatpush.bf16.msra.mxu0 %v5318
    %5602 = vmatmul.bf16.gmra.mxu0 %v4500
    %v5603 = vpop.f32.mrf.mxu0
    %v5604 = vadd.f32 %v5591, %v5603
    %v5605 = vpop.f32.mrf.mxu0
    %5606 = vdwg.mxu0
    %5607 = vmatpush.bf16.msra.mxu0 %v5333
    %5608 = vmatpush.bf16.msra.mxu0 %v5332
    %5609 = vmatpush.bf16.msra.mxu0 %v5331
    %5610 = vmatpush.bf16.msra.mxu0 %v5330
    %5611 = vmatpush.bf16.msra.mxu0 %v5329
    %5612 = vmatpush.bf16.msra.mxu0 %v5328
    %5613 = vmatpush.bf16.msra.mxu0 %v5327
    %5614 = vmatpush.bf16.msra.mxu0 %v5326
    %5615 = vmatmul.bf16.gmra.mxu0 %v4501
    %v5616 = vpop.f32.mrf.mxu0
    %v5617 = vadd.f32 %v5604, %v5616
    %v5618 = vpop.f32.mrf.mxu0
    %5619 = vdwg.mxu0
    %5620 = vmatpush.bf16.msra.mxu0 %v5341
    %5621 = vmatpush.bf16.msra.mxu0 %v5340
    %5622 = vmatpush.bf16.msra.mxu0 %v5339
    %5623 = vmatpush.bf16.msra.mxu0 %v5338
    %5624 = vmatpush.bf16.msra.mxu0 %v5337
    %5625 = vmatpush.bf16.msra.mxu0 %v5336
    %5626 = vmatpush.bf16.msra.mxu0 %v5335
    %5627 = vmatpush.bf16.msra.mxu0 %v5334
    %5628 = vmatmul.bf16.gmra.mxu0 %v4502
    %v5629 = vpop.f32.mrf.mxu0
    %v5630 = vadd.f32 %v5617, %v5629
    %v5631 = vpop.f32.mrf.mxu0
    %5632 = vdwg.mxu0
    %5633 = vmatpush.bf16.msra.mxu0 %v5349
    %5634 = vmatpush.bf16.msra.mxu0 %v5348
    %5635 = vmatpush.bf16.msra.mxu0 %v5347
    %5636 = vmatpush.bf16.msra.mxu0 %v5346
    %5637 = vmatpush.bf16.msra.mxu0 %v5345
    %5638 = vmatpush.bf16.msra.mxu0 %v5344
    %5639 = vmatpush.bf16.msra.mxu0 %v5343
    %5640 = vmatpush.bf16.msra.mxu0 %v5342
    %5641 = vmatmul.bf16.gmra.mxu0 %v4503
    %v5642 = vpop.f32.mrf.mxu0
    %v5643 = vadd.f32 %v5630, %v5642
    %v5644 = vpop.f32.mrf.mxu0
    %5645 = vdwg.mxu0
    %5646 = vmatpush.bf16.msra.mxu0 %v5357
    %5647 = vmatpush.bf16.msra.mxu0 %v5356
    %5648 = vmatpush.bf16.msra.mxu0 %v5355
    %5649 = vmatpush.bf16.msra.mxu0 %v5354
    %5650 = vmatpush.bf16.msra.mxu0 %v5353
    %5651 = vmatpush.bf16.msra.mxu0 %v5352
    %5652 = vmatpush.bf16.msra.mxu0 %v5351
    %5653 = vmatpush.bf16.msra.mxu0 %v5350
    %5654 = vmatmul.bf16.gmra.mxu0 %v4504
    %v5655 = vpop.f32.mrf.mxu0
    %v5656 = vadd.f32 %v5643, %v5655
    %v5657 = vpop.f32.mrf.mxu0
    %5658 = vdwg.mxu0
    %5659 = vmatpush.bf16.msra.mxu0 %v5365
    %5660 = vmatpush.bf16.msra.mxu0 %v5364
    %5661 = vmatpush.bf16.msra.mxu0 %v5363
    %5662 = vmatpush.bf16.msra.mxu0 %v5362
    %5663 = vmatpush.bf16.msra.mxu0 %v5361
    %5664 = vmatpush.bf16.msra.mxu0 %v5360
    %5665 = vmatpush.bf16.msra.mxu0 %v5359
    %5666 = vmatpush.bf16.msra.mxu0 %v5358
    %5667 = vmatmul.bf16.gmra.mxu0 %v4505
    %v5668 = vpop.f32.mrf.mxu0
    %v5669 = vadd.f32 %v5656, %v5668
    %v5670 = vpop.f32.mrf.mxu0
    %5671 = vdwg.mxu0
    %5672 = vmatpush.bf16.msra.mxu0 %v5373
    %5673 = vmatpush.bf16.msra.mxu0 %v5372
    %5674 = vmatpush.bf16.msra.mxu0 %v5371
    %5675 = vmatpush.bf16.msra.mxu0 %v5370
    %5676 = vmatpush.bf16.msra.mxu0 %v5369
    %5677 = vmatpush.bf16.msra.mxu0 %v5368
    %5678 = vmatpush.bf16.msra.mxu0 %v5367
    %5679 = vmatpush.bf16.msra.mxu0 %v5366
    %5680 = vmatmul.bf16.gmra.mxu0 %v4506
    %v5681 = vpop.f32.mrf.mxu0
    %v5682 = vadd.f32 %v5669, %v5681
    %v5683 = vpop.f32.mrf.mxu0
    %5684 = vdwg.mxu0
    %5685 = vmatpush.bf16.msra.mxu0 %v5381
    %5686 = vmatpush.bf16.msra.mxu0 %v5380
    %5687 = vmatpush.bf16.msra.mxu0 %v5379
    %5688 = vmatpush.bf16.msra.mxu0 %v5378
    %5689 = vmatpush.bf16.msra.mxu0 %v5377
    %5690 = vmatpush.bf16.msra.mxu0 %v5376
    %5691 = vmatpush.bf16.msra.mxu0 %v5375
    %5692 = vmatpush.bf16.msra.mxu0 %v5374
    %5693 = vmatmul.bf16.gmra.mxu0 %v4507
    %v5694 = vpop.f32.mrf.mxu0
    %v5695 = vadd.f32 %v5682, %v5694
    %v5696 = vpop.f32.mrf.mxu0
    %5697 = vdwg.mxu0
    %5698 = vmatpush.bf16.msra.mxu0 %v5389
    %5699 = vmatpush.bf16.msra.mxu0 %v5388
    %5700 = vmatpush.bf16.msra.mxu0 %v5387
    %5701 = vmatpush.bf16.msra.mxu0 %v5386
    %5702 = vmatpush.bf16.msra.mxu0 %v5385
    %5703 = vmatpush.bf16.msra.mxu0 %v5384
    %5704 = vmatpush.bf16.msra.mxu0 %v5383
    %5705 = vmatpush.bf16.msra.mxu0 %v5382
    %5706 = vmatmul.bf16.gmra.mxu0 %v4508
    %v5707 = vpop.f32.mrf.mxu0
    %v5708 = vadd.f32 %v5695, %v5707
    %v5709 = vpop.f32.mrf.mxu0
    %5710 = vdwg.mxu0
    %5711 = vmatpush.bf16.msra.mxu0 %v5397
    %5712 = vmatpush.bf16.msra.mxu0 %v5396
    %5713 = vmatpush.bf16.msra.mxu0 %v5395
    %5714 = vmatpush.bf16.msra.mxu0 %v5394
    %5715 = vmatpush.bf16.msra.mxu0 %v5393
    %5716 = vmatpush.bf16.msra.mxu0 %v5392
    %5717 = vmatpush.bf16.msra.mxu0 %v5391
    %5718 = vmatpush.bf16.msra.mxu0 %v5390
    %5719 = vmatmul.bf16.gmra.mxu0 %v4509
    %v5720 = vpop.f32.mrf.mxu0
    %v5721 = vadd.f32 %v5708, %v5720
    %v5722 = vpop.f32.mrf.mxu0
    %5723 = vdwg.mxu0
    %5724 = vmatpush.bf16.msra.mxu0 %v5405
    %5725 = vmatpush.bf16.msra.mxu0 %v5404
    %5726 = vmatpush.bf16.msra.mxu0 %v5403
    %5727 = vmatpush.bf16.msra.mxu0 %v5402
    %5728 = vmatpush.bf16.msra.mxu0 %v5401
    %5729 = vmatpush.bf16.msra.mxu0 %v5400
    %5730 = vmatpush.bf16.msra.mxu0 %v5399
    %5731 = vmatpush.bf16.msra.mxu0 %v5398
    %5732 = vmatmul.bf16.gmra.mxu0 %v4510
    %v5733 = vpop.f32.mrf.mxu0
    %v5734 = vadd.f32 %v5721, %v5733
    %v5735 = vpop.f32.mrf.mxu0
    %5736 = vdwg.mxu0
    %5737 = vmatpush.bf16.msra.mxu0 %v5413
    %5738 = vmatpush.bf16.msra.mxu0 %v5412
    %5739 = vmatpush.bf16.msra.mxu0 %v5411
    %5740 = vmatpush.bf16.msra.mxu0 %v5410
    %5741 = vmatpush.bf16.msra.mxu0 %v5409
    %5742 = vmatpush.bf16.msra.mxu0 %v5408
    %5743 = vmatpush.bf16.msra.mxu0 %v5407
    %5744 = vmatpush.bf16.msra.mxu0 %v5406
    %5745 = vmatmul.bf16.gmra.mxu0 %v4511
    %v5746 = vpop.f32.mrf.mxu0
    %v5747 = vadd.f32 %v5734, %v5746
    %v5748 = vpop.f32.mrf.mxu0
    %5749 = vdwg.mxu0
    %v5750 = vadd.f32 %v3464, %v5747
    %s5751 = scalar_lea.vmem %s13, 1
    %v5752 = vld [vmem:[%s5751] sm:$0x1]
    %s5753 = scalar_lea.vmem %s14, 1
    %v5754 = vld [vmem:[%s5753] sm:$0x1]
    %5755 = vadd.xlane.f32.xlu0 %v5750
    %v5756 = vpop.xlane.xlu0 %5755
    %v5757 = vmul.f32 %v5756, %v925
    %v5758 = vsub.f32 %v5750, %v5757
    %v5759 = vmul.f32 %v5758, %v5758
    %5760 = vadd.xlane.f32.xlu0 %v5759
    %v5761 = vpop.xlane.xlu0 %5760
    %v5762 = vmul.f32 %v5761, %v925
    %v5763 = vadd.f32 %v5762, 1e-05
    %v5764 = vrsqrt.pop %v5763
    %v5765 = vmul.f32 %v5764, %v5763
    %v5766 = vmul.f32 %v5765, %v5764
    %v5767 = vmul.f32 0.5, %v5766
    %v5768 = vsub.f32 1.5, %v5767
    %v5769 = vmul.f32 %v5764, %v5768
    %vm5770 = vweird.f32 %v5763
    %vm5771 = vweird.f32 %v5764
    %vm5772 = vmor %vm5770, %vm5771
    %v5773 = vsel %vm5772, %v5764, %v5769
    %v5774 = vmul.f32 %v5758, %v5773
    %v5776 = vperm.slane %v5752, 0
    %v5778 = vmul.f32 %v5774, %v5776
    %v5780 = vperm.slane %v5754, 0
    %v5782 = vadd.f32 %v5778, %v5780
    %5783 = vst [vmem:[#allocation10] sm:$0xff] %v5782
    // Predicated region
    $region78: #{transformer_condition_encoder.1} parent=1 // pred_check
      _
    $region79: #{transformer_condition_encoder.1} parent=1 // pred_check_branch
      %5785 = sbr.rel (0) target = $region81
    $region80: #{transformer_condition_encoder.1} parent=1 // pred_region
      %5787 = vsyncadd [#allocation4], 0
      %s5789 = sshll.u32 [#allocation10], 4
      %s5790 = int_to_ptr.vmem [resolvable:$true] %s5789
      %s5791 = sshll.u32 %s15, 4
      %s5792 = int_to_ptr.hbm [resolvable:$true] %s5791
      %5794 = dma.vmem_to_hbm [thread:$0]  %s5790, 128, %s5792, [#allocation4]
    $region81: #{transformer_condition_encoder.1} parent=1 // pred_fallthru
      _
    // Predicated region
    $region82: #{transformer_condition_encoder.1} parent=1 // pred_check
      _
    $region83: #{transformer_condition_encoder.1} parent=1 // pred_check_branch
      %5796 = sbr.rel (0) target = $region85
    $region84: #{transformer_condition_encoder.1} parent=1 // pred_region
      %5798 = dma.done [#allocation4], 128
    $region85: #{transformer_condition_encoder.1} parent=1 // pred_fallthru
      _
    %5799 = vsyncpa [#allocation3], 1
    %5800 = vsyncpa [#allocation6], 1
    %5801 = vsyncpa [#allocation9], 1
    %5802 = vsyncpa [#allocation4], 1

</llo_original>
